<compile_context>
chip_gen: v6e
topology: v6e:2x2x1
jax: 0.10.0
libtpu: 0.0.40
codegen_flags: <defaults>
</compile_context>

<pallas_src>
from functools import partial

import jax
import jax.numpy as jnp
from jax.experimental import pallas as pl
from jax.experimental.pallas import tpu as pltpu

EPS = 1e-5
NEG_BIG = -1e30   # finite causal-mask sentinel (robust vs. -inf arithmetic)


def transformer_block_kernel(x_ref, wqkv_ref, wo_ref, bo_ref,
                             s1_ref, h1_ref, s2_ref, h2_ref,
                             o_ref, *, num_heads, seq_len):
    x = x_ref[...]                      # (N, D), N = Bb * T rows
    w_qkv = wqkv_ref[...]               # (D, 3D) = [wq/sqrt(hd) | wk | wv]
    wo = wo_ref[...]                    # (D, D)
    N, D = x.shape
    T = seq_len
    Bb = N // T                         # batch elements handled this grid step
    H = num_heads
    hd = D // H

    # Hoisted broadcasts / constants shared by both attention calls
    # (JAX does not CSE broadcast_in_dim).
    bo_full = jnp.broadcast_to(bo_ref[...], (N, D))                    # (N, D)
    row = jax.lax.broadcasted_iota(jnp.int32, (T, T), 0)
    col = jax.lax.broadcasted_iota(jnp.int32, (T, T), 1)
    mask_bias = jnp.where(col > row, NEG_BIG, 0.0).astype(jnp.float32)  # (T, T)

    def layernorm(z, scale, shift):
        mean = jnp.mean(z, axis=-1, keepdims=True)
        var = jnp.mean(z * z, axis=-1, keepdims=True) - mean * mean    # biased, matches torch unbiased=False
        return scale * ((z - mean) * jax.lax.rsqrt(var + EPS)) + shift

    def causal_mha(z):
        # Fused QKV projection: one (N, D) x (D, 3D) MXU matmul.
        qkv = jnp.dot(z, w_qkv, preferred_element_type=jnp.float32)    # (N, 3D)
        qkv = qkv.reshape(Bb, T, 3 * D)                                 # tile-aligned leading split
        out = bo_full                    # vreg accumulator; out-proj bias pre-added
        for h in range(H):               # static, fully unrolled head loop
            q_h = qkv[:, :, h * hd:(h + 1) * hd]                        # (Bb, T, hd), pre-scaled
            k_h = qkv[:, :, D + h * hd:D + (h + 1) * hd]
            v_h = qkv[:, :, 2 * D + h * hd:2 * D + (h + 1) * hd]
            s = jnp.einsum('bqd,bkd->bqk', q_h, k_h,
                           preferred_element_type=jnp.float32)          # (Bb, T, T)
            s = s + mask_bias                                           # (T,T) broadcast over Bb
            m = jnp.max(s, axis=-1, keepdims=True)
            p = jnp.exp(s - m)
            denom = jnp.sum(p, axis=-1, keepdims=True)
            w = p * pl.reciprocal(denom, approx=False)                  # EUP, not VPU divide
            # attention-dropout is identity at inference
            ctx_h = jnp.einsum('bqk,bkd->bqd', w, v_h,
                               preferred_element_type=jnp.float32)      # (Bb, T, hd)
            # Fold W_o into the head loop: accumulate in vregs, no VMEM
            # scratch, no masked partial-lane stores, no reload stall.
            out = out + jnp.dot(ctx_h.reshape(N, hd),
                                wo[h * hd:(h + 1) * hd, :],
                                preferred_element_type=jnp.float32)     # (N, D)
        return out

    # sub-block 1: x + attn(norm1(x))       (drop_shortcut = identity in eval)
    x1 = causal_mha(layernorm(x, s1_ref[...], h1_ref[...])) + x
    # sub-block 2: x1 + attn(norm2(x1))     (reference calls self.attn again, not self.ff)
    o_ref[...] = causal_mha(layernorm(x1, s2_ref[...], h2_ref[...])) + x1


def _default_batch_block(batch, seq_len):
    """Keep the whole batch in one grid step unless a dual-TensorCore chip
    (v7x) has enough per-core work (>= ~512 rows) to amortize the split."""
    try:
        kind = jax.devices()[0].device_kind.lower()
    except Exception:
        kind = ""
    if "v7" in kind and batch % 2 == 0 and (batch * seq_len) // 2 >= 512:
        return batch // 2
    return batch


def transformer_block(x, wq, wk, wv, wo, bo, s1, h1, s2, h2, *,
                      num_heads, batch_block=None):
    B, T, D = x.shape
    hd = D // num_heads
    if batch_block is None:
        batch_block = _default_batch_block(B, T)
    assert B % batch_block == 0
    n_steps = B // batch_block
    N = batch_block * T                       # rows handled per grid step

    # Fuse projections into one lane-dense (D, 3D) matrix; fold 1/sqrt(hd)
    # into the Q columns (one-time parameter op, not a per-token prescale).
    inv_sqrt_hd = 1.0 / float(hd) ** 0.5
    w_qkv = jnp.concatenate([wq * inv_sqrt_hd, wk, wv], axis=1)

    # (B, T, D) -> (B*T, D): row-major contiguous, free metadata reshape.
    x2d = x.reshape(B * T, D)

    kernel = partial(transformer_block_kernel, num_heads=num_heads, seq_len=T)
    act_spec = pl.BlockSpec((N, D), lambda i: (i, 0))

    def full_spec(shape):
        return pl.BlockSpec(shape, lambda i: (0,) * len(shape))

    out2d = pl.pallas_call(
        kernel,
        out_shape=jax.ShapeDtypeStruct((B * T, D), jnp.float32),
        grid_spec=pltpu.PrefetchScalarGridSpec(
            num_scalar_prefetch=0,
            grid=(n_steps,),
            in_specs=[act_spec,
                      full_spec((D, 3 * D)),    # fused W_qkv (Q pre-scaled)
                      full_spec((D, D)),        # W_out
                      full_spec((1, D)),        # out-proj bias
                      full_spec((1, D)),        # norm1.scale
                      full_spec((1, D)),        # norm1.shift
                      full_spec((1, D)),        # norm2.scale
                      full_spec((1, D))],       # norm2.shift
            out_specs=act_spec,
        ),
        compiler_params=pltpu.CompilerParams(
            dimension_semantics=("parallel",),
            # Actual usage is a few hundred KiB; explicit limit keeps the
            # kernel portable to v7x's 64 MiB VMEM if scaled up.
            vmem_limit_bytes=32 * 1024 * 1024,
        ),
    )(x2d, w_qkv, wo, bo, s1, h1, s2, h2)
    return out2d.reshape(B, T, D)


def reference_block(x, wq, wk, wv, wo, bo, s1, h1, s2, h2, *, num_heads):
    """Pure-JAX reference for correctness checking (mirrors the PyTorch module)."""
    def ln(z, scale, shift):
        m = jnp.mean(z, axis=-1, keepdims=True)
        v = jnp.mean((z - m) ** 2, axis=-1, keepdims=True)
        return scale * (z - m) / jnp.sqrt(v + EPS) + shift

    def attn(z):
        B, T, D = z.shape
        hd = D // num_heads
        q = (z @ wq).reshape(B, T, num_heads, hd).transpose(0, 2, 1, 3)
        k = (z @ wk).reshape(B, T, num_heads, hd).transpose(0, 2, 1, 3)
        v = (z @ wv).reshape(B, T, num_heads, hd).transpose(0, 2, 1, 3)
        s = jnp.einsum("bhtd,bhsd->bhts", q, k)
        mask = jnp.triu(jnp.ones((T, T), dtype=bool), k=1)
        s = jnp.where(mask, -jnp.inf, s) / (hd ** 0.5)
        w = jax.nn.softmax(s, axis=-1)
        ctx = jnp.einsum("bhts,bhsd->bhtd", w, v).transpose(0, 2, 1, 3).reshape(B, T, D)
        return ctx @ wo + bo

    sc = x
    y = attn(ln(x, s1, h1)) + sc
    sc = y
    return attn(ln(y, s2, h2)) + sc


if __name__ == "__main__":
    # cfg: embedding_dim=32, context_length=8, heads=4, droprate=0.0, qkv_bias=False
    B, T, D, H = 2, 8, 32, 4

    key = jax.random.PRNGKey(0)
    kx, kq, kk, kv, ko = jax.random.split(key, 5)

    x = jax.random.normal(kx, (B, T, D), dtype=jnp.float32)
    # Linear weights stored as (d_in, d_out) so the kernel computes x @ W (+ b).
    wq = 0.02 * jax.random.normal(kq, (D, D), dtype=jnp.float32)
    wk = 0.02 * jax.random.normal(kk, (D, D), dtype=jnp.float32)
    wv = 0.02 * jax.random.normal(kv, (D, D), dtype=jnp.float32)
    wo = 0.02 * jax.random.normal(ko, (D, D), dtype=jnp.float32)
    bo = jnp.zeros((1, D), dtype=jnp.float32)            # out_proj bias
    s1 = jnp.ones((1, D), dtype=jnp.float32)             # norm1.scale
    h1 = jnp.zeros((1, D), dtype=jnp.float32)            # norm1.shift
    s2 = jnp.ones((1, D), dtype=jnp.float32)             # norm2.scale
    h2 = jnp.zeros((1, D), dtype=jnp.float32)            # norm2.shift

    out = transformer_block(x, wq, wk, wv, wo, bo, s1, h1, s2, h2, num_heads=H)
    out = jax.block_until_ready(out)

    ref = reference_block(x, wq, wk, wv, wo, bo, s1, h1, s2, h2, num_heads=H)
    assert out.shape == (B, T, D)
    assert jnp.max(jnp.abs(out - ref)) < 1e-4, "mismatch vs. JAX reference"

    print("KERNEL_OK")
</pallas_src>

<mosaic_0001>
module attributes {stable_mosaic.version = 11 : i64} {
  func.func @transformer_block_kernel(%arg0: i32, %arg1: memref<16x32xf32, #tpu.memory_space<vmem>>, %arg2: memref<32x96xf32, #tpu.memory_space<vmem>>, %arg3: memref<32x32xf32, #tpu.memory_space<vmem>>, %arg4: memref<1x32xf32, #tpu.memory_space<vmem>>, %arg5: memref<1x32xf32, #tpu.memory_space<vmem>>, %arg6: memref<1x32xf32, #tpu.memory_space<vmem>>, %arg7: memref<1x32xf32, #tpu.memory_space<vmem>>, %arg8: memref<1x32xf32, #tpu.memory_space<vmem>>, %arg9: memref<16x32xf32, #tpu.memory_space<vmem>>) attributes {dimension_semantics = [#tpu.dimension_semantics<parallel>], iteration_bounds = array<i64: 1>, scalar_prefetch = 0 : i64, scratch_operands = 0 : i64, tpu.core_type = #tpu.core_type<tc>, window_params = [{transform_indices = @transform_0, window_bounds = array<i64: 16, 32>}, {pipeline_mode = #tpu.pipeline_mode<synchronous>, transform_indices = @transform_1, window_bounds = array<i64: 32, 96>}, {pipeline_mode = #tpu.pipeline_mode<synchronous>, transform_indices = @transform_2, window_bounds = array<i64: 32, 32>}, {pipeline_mode = #tpu.pipeline_mode<synchronous>, transform_indices = @transform_3, window_bounds = array<i64: 1, 32>}, {pipeline_mode = #tpu.pipeline_mode<synchronous>, transform_indices = @transform_4, window_bounds = array<i64: 1, 32>}, {pipeline_mode = #tpu.pipeline_mode<synchronous>, transform_indices = @transform_5, window_bounds = array<i64: 1, 32>}, {pipeline_mode = #tpu.pipeline_mode<synchronous>, transform_indices = @transform_6, window_bounds = array<i64: 1, 32>}, {pipeline_mode = #tpu.pipeline_mode<synchronous>, transform_indices = @transform_7, window_bounds = array<i64: 1, 32>}, {transform_indices = @transform_8, window_bounds = array<i64: 16, 32>}]} {
    %c0 = arith.constant 0 : index
    %c0_0 = arith.constant 0 : index
    %0 = vector.load %arg1[%c0, %c0_0] : memref<16x32xf32, #tpu.memory_space<vmem>>, vector<16x32xf32>
    %c0_1 = arith.constant 0 : index
    %c0_2 = arith.constant 0 : index
    %1 = vector.load %arg2[%c0_1, %c0_2] : memref<32x96xf32, #tpu.memory_space<vmem>>, vector<32x96xf32>
    %c0_3 = arith.constant 0 : index
    %c0_4 = arith.constant 0 : index
    %2 = vector.load %arg3[%c0_3, %c0_4] : memref<32x32xf32, #tpu.memory_space<vmem>>, vector<32x32xf32>
    %c0_5 = arith.constant 0 : index
    %c0_6 = arith.constant 0 : index
    %3 = vector.load %arg4[%c0_5, %c0_6] : memref<1x32xf32, #tpu.memory_space<vmem>>, vector<1x32xf32>
    %4 = vector.shape_cast %3 : vector<1x32xf32> to vector<1x32xf32>
    %5 = vector.broadcast %4 : vector<1x32xf32> to vector<16x32xf32>
    %6 = tpu.iota {dimensions = array<i32: 0>} : vector<8x8xi32>
    %7 = tpu.iota {dimensions = array<i32: 1>} : vector<8x8xi32>
    %8 = arith.cmpi sgt, %7, %6 : vector<8x8xi32>
    %cst = arith.constant -1.000000e+30 : f32
    %cst_7 = arith.constant 0.000000e+00 : f32
    %9 = vector.broadcast %cst : f32 to vector<8x8xf32>
    %10 = vector.broadcast %cst_7 : f32 to vector<8x8xf32>
    %11 = arith.select %8, %9, %10 : vector<8x8xi1>, vector<8x8xf32>
    %c0_8 = arith.constant 0 : index
    %c0_9 = arith.constant 0 : index
    %12 = vector.load %arg5[%c0_8, %c0_9] : memref<1x32xf32, #tpu.memory_space<vmem>>, vector<1x32xf32>
    %c0_10 = arith.constant 0 : index
    %c0_11 = arith.constant 0 : index
    %13 = vector.load %arg6[%c0_10, %c0_11] : memref<1x32xf32, #tpu.memory_space<vmem>>, vector<1x32xf32>
    %cst_12 = arith.constant dense<0.000000e+00> : vector<16xf32>
    %14 = vector.multi_reduction <add>, %0, %cst_12 [1] : vector<16x32xf32> to vector<16xf32>
    %15 = vector.shape_cast %14 : vector<16xf32> to vector<16x1xf32>
    %cst_13 = arith.constant 3.200000e+01 : f32
    %16 = vector.broadcast %cst_13 : f32 to vector<16x1xf32>
    %17 = arith.divf %15, %16 : vector<16x1xf32>
    %18 = arith.mulf %0, %0 : vector<16x32xf32>
    %cst_14 = arith.constant dense<0.000000e+00> : vector<16xf32>
    %19 = vector.multi_reduction <add>, %18, %cst_14 [1] : vector<16x32xf32> to vector<16xf32>
    %20 = vector.shape_cast %19 : vector<16xf32> to vector<16x1xf32>
    %cst_15 = arith.constant 3.200000e+01 : f32
    %21 = vector.broadcast %cst_15 : f32 to vector<16x1xf32>
    %22 = arith.divf %20, %21 : vector<16x1xf32>
    %23 = arith.mulf %17, %17 : vector<16x1xf32>
    %24 = arith.subf %22, %23 : vector<16x1xf32>
    %25 = vector.broadcast %17 : vector<16x1xf32> to vector<16x32xf32>
    %26 = arith.subf %0, %25 : vector<16x32xf32>
    %cst_16 = arith.constant 9.99999974E-6 : f32
    %27 = vector.broadcast %cst_16 : f32 to vector<16x1xf32>
    %28 = arith.addf %24, %27 : vector<16x1xf32>
    %29 = math.rsqrt %28 : vector<16x1xf32>
    %30 = vector.broadcast %29 : vector<16x1xf32> to vector<16x32xf32>
    %31 = arith.mulf %26, %30 : vector<16x32xf32>
    %32 = vector.broadcast %12 : vector<1x32xf32> to vector<16x32xf32>
    %33 = arith.mulf %32, %31 : vector<16x32xf32>
    %34 = vector.broadcast %13 : vector<1x32xf32> to vector<16x32xf32>
    %35 = arith.addf %33, %34 : vector<16x32xf32>
    %cst_17 = arith.constant dense<0.000000e+00> : vector<16x96xf32>
    %36 = tpu.matmul %35, %1, %cst_17 {dimension_numbers = #tpu.dot_dimension_numbers<[1], [0], [0], [1], [0, 0, 1, 1], [], []>} : vector<16x32xf32>, vector<32x96xf32>, vector<16x96xf32> -> vector<16x96xf32>
    %37 = vector.shape_cast %36 : vector<16x96xf32> to vector<2x8x96xf32>
    %38 = vector.extract_strided_slice %37 {offsets = [0, 0, 0], sizes = [2, 8, 8], strides = [1, 1, 1]} : vector<2x8x96xf32> to vector<2x8x8xf32>
    %39 = vector.extract_strided_slice %37 {offsets = [0, 0, 32], sizes = [2, 8, 8], strides = [1, 1, 1]} : vector<2x8x96xf32> to vector<2x8x8xf32>
    %40 = vector.extract_strided_slice %37 {offsets = [0, 0, 64], sizes = [2, 8, 8], strides = [1, 1, 1]} : vector<2x8x96xf32> to vector<2x8x8xf32>
    "tpu.trace_start"() <{level = 10 : i32, message = "bqd,bkd->bqk"}> : () -> ()
    %cst_18 = arith.constant dense<0.000000e+00> : vector<2x8x8xf32>
    %41 = tpu.matmul %38, %39, %cst_18 {dimension_numbers = #tpu.dot_dimension_numbers<[2], [2], [1], [1], [0, 0, 0, 1, 1, 1], [0], [0]>} : vector<2x8x8xf32>, vector<2x8x8xf32>, vector<2x8x8xf32> -> vector<2x8x8xf32>
    "tpu.trace_stop"() : () -> ()
    %42 = vector.shape_cast %11 : vector<8x8xf32> to vector<1x8x8xf32>
    %43 = vector.broadcast %42 : vector<1x8x8xf32> to vector<2x8x8xf32>
    %44 = arith.addf %41, %43 : vector<2x8x8xf32>
    %cst_19 = arith.constant dense<0xFF800000> : vector<2x8xf32>
    %45 = vector.multi_reduction <maximumf>, %44, %cst_19 [2] : vector<2x8x8xf32> to vector<2x8xf32>
    %46 = vector.shape_cast %45 : vector<2x8xf32> to vector<2x8x1xf32>
    %47 = vector.broadcast %46 : vector<2x8x1xf32> to vector<2x8x8xf32>
    %48 = arith.subf %44, %47 : vector<2x8x8xf32>
    %49 = math.exp %48 : vector<2x8x8xf32>
    %cst_20 = arith.constant dense<0.000000e+00> : vector<2x8xf32>
    %50 = vector.multi_reduction <add>, %49, %cst_20 [2] : vector<2x8x8xf32> to vector<2x8xf32>
    %51 = vector.shape_cast %50 : vector<2x8xf32> to vector<2x8x1xf32>
    %52 = tpu.reciprocal %51 : vector<2x8x1xf32> -> vector<2x8x1xf32>
    %53 = vector.broadcast %52 : vector<2x8x1xf32> to vector<2x8x8xf32>
    %54 = arith.mulf %49, %53 : vector<2x8x8xf32>
    "tpu.trace_start"() <{level = 10 : i32, message = "bqk,bkd->bqd"}> : () -> ()
    %cst_21 = arith.constant dense<0.000000e+00> : vector<2x8x8xf32>
    %55 = tpu.matmul %54, %40, %cst_21 {dimension_numbers = #tpu.dot_dimension_numbers<[2], [1], [1], [2], [0, 0, 0, 1, 1, 2], [0], [0]>} : vector<2x8x8xf32>, vector<2x8x8xf32>, vector<2x8x8xf32> -> vector<2x8x8xf32>
    "tpu.trace_stop"() : () -> ()
    %56 = vector.shape_cast %55 : vector<2x8x8xf32> to vector<16x8xf32>
    %57 = vector.extract_strided_slice %2 {offsets = [0, 0], sizes = [8, 32], strides = [1, 1]} : vector<32x32xf32> to vector<8x32xf32>
    %cst_22 = arith.constant dense<0.000000e+00> : vector<16x32xf32>
    %58 = tpu.matmul %56, %57, %cst_22 {dimension_numbers = #tpu.dot_dimension_numbers<[1], [0], [0], [1], [0, 0, 1, 1], [], []>} : vector<16x8xf32>, vector<8x32xf32>, vector<16x32xf32> -> vector<16x32xf32>
    %59 = arith.addf %5, %58 : vector<16x32xf32>
    %60 = vector.extract_strided_slice %37 {offsets = [0, 0, 8], sizes = [2, 8, 8], strides = [1, 1, 1]} : vector<2x8x96xf32> to vector<2x8x8xf32>
    %61 = vector.extract_strided_slice %37 {offsets = [0, 0, 40], sizes = [2, 8, 8], strides = [1, 1, 1]} : vector<2x8x96xf32> to vector<2x8x8xf32>
    %62 = vector.extract_strided_slice %37 {offsets = [0, 0, 72], sizes = [2, 8, 8], strides = [1, 1, 1]} : vector<2x8x96xf32> to vector<2x8x8xf32>
    "tpu.trace_start"() <{level = 10 : i32, message = "bqd,bkd->bqk"}> : () -> ()
    %cst_23 = arith.constant dense<0.000000e+00> : vector<2x8x8xf32>
    %63 = tpu.matmul %60, %61, %cst_23 {dimension_numbers = #tpu.dot_dimension_numbers<[2], [2], [1], [1], [0, 0, 0, 1, 1, 1], [0], [0]>} : vector<2x8x8xf32>, vector<2x8x8xf32>, vector<2x8x8xf32> -> vector<2x8x8xf32>
    "tpu.trace_stop"() : () -> ()
    %64 = vector.shape_cast %11 : vector<8x8xf32> to vector<1x8x8xf32>
    %65 = vector.broadcast %64 : vector<1x8x8xf32> to vector<2x8x8xf32>
    %66 = arith.addf %63, %65 : vector<2x8x8xf32>
    %cst_24 = arith.constant dense<0xFF800000> : vector<2x8xf32>
    %67 = vector.multi_reduction <maximumf>, %66, %cst_24 [2] : vector<2x8x8xf32> to vector<2x8xf32>
    %68 = vector.shape_cast %67 : vector<2x8xf32> to vector<2x8x1xf32>
    %69 = vector.broadcast %68 : vector<2x8x1xf32> to vector<2x8x8xf32>
    %70 = arith.subf %66, %69 : vector<2x8x8xf32>
    %71 = math.exp %70 : vector<2x8x8xf32>
    %cst_25 = arith.constant dense<0.000000e+00> : vector<2x8xf32>
    %72 = vector.multi_reduction <add>, %71, %cst_25 [2] : vector<2x8x8xf32> to vector<2x8xf32>
    %73 = vector.shape_cast %72 : vector<2x8xf32> to vector<2x8x1xf32>
    %74 = tpu.reciprocal %73 : vector<2x8x1xf32> -> vector<2x8x1xf32>
    %75 = vector.broadcast %74 : vector<2x8x1xf32> to vector<2x8x8xf32>
    %76 = arith.mulf %71, %75 : vector<2x8x8xf32>
    "tpu.trace_start"() <{level = 10 : i32, message = "bqk,bkd->bqd"}> : () -> ()
    %cst_26 = arith.constant dense<0.000000e+00> : vector<2x8x8xf32>
    %77 = tpu.matmul %76, %62, %cst_26 {dimension_numbers = #tpu.dot_dimension_numbers<[2], [1], [1], [2], [0, 0, 0, 1, 1, 2], [0], [0]>} : vector<2x8x8xf32>, vector<2x8x8xf32>, vector<2x8x8xf32> -> vector<2x8x8xf32>
    "tpu.trace_stop"() : () -> ()
    %78 = vector.shape_cast %77 : vector<2x8x8xf32> to vector<16x8xf32>
    %79 = vector.extract_strided_slice %2 {offsets = [8, 0], sizes = [8, 32], strides = [1, 1]} : vector<32x32xf32> to vector<8x32xf32>
    %cst_27 = arith.constant dense<0.000000e+00> : vector<16x32xf32>
    %80 = tpu.matmul %78, %79, %cst_27 {dimension_numbers = #tpu.dot_dimension_numbers<[1], [0], [0], [1], [0, 0, 1, 1], [], []>} : vector<16x8xf32>, vector<8x32xf32>, vector<16x32xf32> -> vector<16x32xf32>
    %81 = arith.addf %59, %80 : vector<16x32xf32>
    %82 = vector.extract_strided_slice %37 {offsets = [0, 0, 16], sizes = [2, 8, 8], strides = [1, 1, 1]} : vector<2x8x96xf32> to vector<2x8x8xf32>
    %83 = vector.extract_strided_slice %37 {offsets = [0, 0, 48], sizes = [2, 8, 8], strides = [1, 1, 1]} : vector<2x8x96xf32> to vector<2x8x8xf32>
    %84 = vector.extract_strided_slice %37 {offsets = [0, 0, 80], sizes = [2, 8, 8], strides = [1, 1, 1]} : vector<2x8x96xf32> to vector<2x8x8xf32>
    "tpu.trace_start"() <{level = 10 : i32, message = "bqd,bkd->bqk"}> : () -> ()
    %cst_28 = arith.constant dense<0.000000e+00> : vector<2x8x8xf32>
    %85 = tpu.matmul %82, %83, %cst_28 {dimension_numbers = #tpu.dot_dimension_numbers<[2], [2], [1], [1], [0, 0, 0, 1, 1, 1], [0], [0]>} : vector<2x8x8xf32>, vector<2x8x8xf32>, vector<2x8x8xf32> -> vector<2x8x8xf32>
    "tpu.trace_stop"() : () -> ()
    %86 = vector.shape_cast %11 : vector<8x8xf32> to vector<1x8x8xf32>
    %87 = vector.broadcast %86 : vector<1x8x8xf32> to vector<2x8x8xf32>
    %88 = arith.addf %85, %87 : vector<2x8x8xf32>
    %cst_29 = arith.constant dense<0xFF800000> : vector<2x8xf32>
    %89 = vector.multi_reduction <maximumf>, %88, %cst_29 [2] : vector<2x8x8xf32> to vector<2x8xf32>
    %90 = vector.shape_cast %89 : vector<2x8xf32> to vector<2x8x1xf32>
    %91 = vector.broadcast %90 : vector<2x8x1xf32> to vector<2x8x8xf32>
    %92 = arith.subf %88, %91 : vector<2x8x8xf32>
    %93 = math.exp %92 : vector<2x8x8xf32>
    %cst_30 = arith.constant dense<0.000000e+00> : vector<2x8xf32>
    %94 = vector.multi_reduction <add>, %93, %cst_30 [2] : vector<2x8x8xf32> to vector<2x8xf32>
    %95 = vector.shape_cast %94 : vector<2x8xf32> to vector<2x8x1xf32>
    %96 = tpu.reciprocal %95 : vector<2x8x1xf32> -> vector<2x8x1xf32>
    %97 = vector.broadcast %96 : vector<2x8x1xf32> to vector<2x8x8xf32>
    %98 = arith.mulf %93, %97 : vector<2x8x8xf32>
    "tpu.trace_start"() <{level = 10 : i32, message = "bqk,bkd->bqd"}> : () -> ()
    %cst_31 = arith.constant dense<0.000000e+00> : vector<2x8x8xf32>
    %99 = tpu.matmul %98, %84, %cst_31 {dimension_numbers = #tpu.dot_dimension_numbers<[2], [1], [1], [2], [0, 0, 0, 1, 1, 2], [0], [0]>} : vector<2x8x8xf32>, vector<2x8x8xf32>, vector<2x8x8xf32> -> vector<2x8x8xf32>
    "tpu.trace_stop"() : () -> ()
    %100 = vector.shape_cast %99 : vector<2x8x8xf32> to vector<16x8xf32>
    %101 = vector.extract_strided_slice %2 {offsets = [16, 0], sizes = [8, 32], strides = [1, 1]} : vector<32x32xf32> to vector<8x32xf32>
    %cst_32 = arith.constant dense<0.000000e+00> : vector<16x32xf32>
    %102 = tpu.matmul %100, %101, %cst_32 {dimension_numbers = #tpu.dot_dimension_numbers<[1], [0], [0], [1], [0, 0, 1, 1], [], []>} : vector<16x8xf32>, vector<8x32xf32>, vector<16x32xf32> -> vector<16x32xf32>
    %103 = arith.addf %81, %102 : vector<16x32xf32>
    %104 = vector.extract_strided_slice %37 {offsets = [0, 0, 24], sizes = [2, 8, 8], strides = [1, 1, 1]} : vector<2x8x96xf32> to vector<2x8x8xf32>
    %105 = vector.extract_strided_slice %37 {offsets = [0, 0, 56], sizes = [2, 8, 8], strides = [1, 1, 1]} : vector<2x8x96xf32> to vector<2x8x8xf32>
    %106 = vector.extract_strided_slice %37 {offsets = [0, 0, 88], sizes = [2, 8, 8], strides = [1, 1, 1]} : vector<2x8x96xf32> to vector<2x8x8xf32>
    "tpu.trace_start"() <{level = 10 : i32, message = "bqd,bkd->bqk"}> : () -> ()
    %cst_33 = arith.constant dense<0.000000e+00> : vector<2x8x8xf32>
    %107 = tpu.matmul %104, %105, %cst_33 {dimension_numbers = #tpu.dot_dimension_numbers<[2], [2], [1], [1], [0, 0, 0, 1, 1, 1], [0], [0]>} : vector<2x8x8xf32>, vector<2x8x8xf32>, vector<2x8x8xf32> -> vector<2x8x8xf32>
    "tpu.trace_stop"() : () -> ()
    %108 = vector.shape_cast %11 : vector<8x8xf32> to vector<1x8x8xf32>
    %109 = vector.broadcast %108 : vector<1x8x8xf32> to vector<2x8x8xf32>
    %110 = arith.addf %107, %109 : vector<2x8x8xf32>
    %cst_34 = arith.constant dense<0xFF800000> : vector<2x8xf32>
    %111 = vector.multi_reduction <maximumf>, %110, %cst_34 [2] : vector<2x8x8xf32> to vector<2x8xf32>
    %112 = vector.shape_cast %111 : vector<2x8xf32> to vector<2x8x1xf32>
    %113 = vector.broadcast %112 : vector<2x8x1xf32> to vector<2x8x8xf32>
    %114 = arith.subf %110, %113 : vector<2x8x8xf32>
    %115 = math.exp %114 : vector<2x8x8xf32>
    %cst_35 = arith.constant dense<0.000000e+00> : vector<2x8xf32>
    %116 = vector.multi_reduction <add>, %115, %cst_35 [2] : vector<2x8x8xf32> to vector<2x8xf32>
    %117 = vector.shape_cast %116 : vector<2x8xf32> to vector<2x8x1xf32>
    %118 = tpu.reciprocal %117 : vector<2x8x1xf32> -> vector<2x8x1xf32>
    %119 = vector.broadcast %118 : vector<2x8x1xf32> to vector<2x8x8xf32>
    %120 = arith.mulf %115, %119 : vector<2x8x8xf32>
    "tpu.trace_start"() <{level = 10 : i32, message = "bqk,bkd->bqd"}> : () -> ()
    %cst_36 = arith.constant dense<0.000000e+00> : vector<2x8x8xf32>
    %121 = tpu.matmul %120, %106, %cst_36 {dimension_numbers = #tpu.dot_dimension_numbers<[2], [1], [1], [2], [0, 0, 0, 1, 1, 2], [0], [0]>} : vector<2x8x8xf32>, vector<2x8x8xf32>, vector<2x8x8xf32> -> vector<2x8x8xf32>
    "tpu.trace_stop"() : () -> ()
    %122 = vector.shape_cast %121 : vector<2x8x8xf32> to vector<16x8xf32>
    %123 = vector.extract_strided_slice %2 {offsets = [24, 0], sizes = [8, 32], strides = [1, 1]} : vector<32x32xf32> to vector<8x32xf32>
    %cst_37 = arith.constant dense<0.000000e+00> : vector<16x32xf32>
    %124 = tpu.matmul %122, %123, %cst_37 {dimension_numbers = #tpu.dot_dimension_numbers<[1], [0], [0], [1], [0, 0, 1, 1], [], []>} : vector<16x8xf32>, vector<8x32xf32>, vector<16x32xf32> -> vector<16x32xf32>
    %125 = arith.addf %103, %124 : vector<16x32xf32>
    %126 = arith.addf %125, %0 : vector<16x32xf32>
    %c0_38 = arith.constant 0 : index
    %c0_39 = arith.constant 0 : index
    %127 = vector.load %arg7[%c0_38, %c0_39] : memref<1x32xf32, #tpu.memory_space<vmem>>, vector<1x32xf32>
    %c0_40 = arith.constant 0 : index
    %c0_41 = arith.constant 0 : index
    %128 = vector.load %arg8[%c0_40, %c0_41] : memref<1x32xf32, #tpu.memory_space<vmem>>, vector<1x32xf32>
    %cst_42 = arith.constant dense<0.000000e+00> : vector<16xf32>
    %129 = vector.multi_reduction <add>, %126, %cst_42 [1] : vector<16x32xf32> to vector<16xf32>
    %130 = vector.shape_cast %129 : vector<16xf32> to vector<16x1xf32>
    %cst_43 = arith.constant 3.200000e+01 : f32
    %131 = vector.broadcast %cst_43 : f32 to vector<16x1xf32>
    %132 = arith.divf %130, %131 : vector<16x1xf32>
    %133 = arith.mulf %126, %126 : vector<16x32xf32>
    %cst_44 = arith.constant dense<0.000000e+00> : vector<16xf32>
    %134 = vector.multi_reduction <add>, %133, %cst_44 [1] : vector<16x32xf32> to vector<16xf32>
    %135 = vector.shape_cast %134 : vector<16xf32> to vector<16x1xf32>
    %cst_45 = arith.constant 3.200000e+01 : f32
    %136 = vector.broadcast %cst_45 : f32 to vector<16x1xf32>
    %137 = arith.divf %135, %136 : vector<16x1xf32>
    %138 = arith.mulf %132, %132 : vector<16x1xf32>
    %139 = arith.subf %137, %138 : vector<16x1xf32>
    %140 = vector.broadcast %132 : vector<16x1xf32> to vector<16x32xf32>
    %141 = arith.subf %126, %140 : vector<16x32xf32>
    %cst_46 = arith.constant 9.99999974E-6 : f32
    %142 = vector.broadcast %cst_46 : f32 to vector<16x1xf32>
    %143 = arith.addf %139, %142 : vector<16x1xf32>
    %144 = math.rsqrt %143 : vector<16x1xf32>
    %145 = vector.broadcast %144 : vector<16x1xf32> to vector<16x32xf32>
    %146 = arith.mulf %141, %145 : vector<16x32xf32>
    %147 = vector.broadcast %127 : vector<1x32xf32> to vector<16x32xf32>
    %148 = arith.mulf %147, %146 : vector<16x32xf32>
    %149 = vector.broadcast %128 : vector<1x32xf32> to vector<16x32xf32>
    %150 = arith.addf %148, %149 : vector<16x32xf32>
    %cst_47 = arith.constant dense<0.000000e+00> : vector<16x96xf32>
    %151 = tpu.matmul %150, %1, %cst_47 {dimension_numbers = #tpu.dot_dimension_numbers<[1], [0], [0], [1], [0, 0, 1, 1], [], []>} : vector<16x32xf32>, vector<32x96xf32>, vector<16x96xf32> -> vector<16x96xf32>
    %152 = vector.shape_cast %151 : vector<16x96xf32> to vector<2x8x96xf32>
    %153 = vector.extract_strided_slice %152 {offsets = [0, 0, 0], sizes = [2, 8, 8], strides = [1, 1, 1]} : vector<2x8x96xf32> to vector<2x8x8xf32>
    %154 = vector.extract_strided_slice %152 {offsets = [0, 0, 32], sizes = [2, 8, 8], strides = [1, 1, 1]} : vector<2x8x96xf32> to vector<2x8x8xf32>
    %155 = vector.extract_strided_slice %152 {offsets = [0, 0, 64], sizes = [2, 8, 8], strides = [1, 1, 1]} : vector<2x8x96xf32> to vector<2x8x8xf32>
    "tpu.trace_start"() <{level = 10 : i32, message = "bqd,bkd->bqk"}> : () -> ()
    %cst_48 = arith.constant dense<0.000000e+00> : vector<2x8x8xf32>
    %156 = tpu.matmul %153, %154, %cst_48 {dimension_numbers = #tpu.dot_dimension_numbers<[2], [2], [1], [1], [0, 0, 0, 1, 1, 1], [0], [0]>} : vector<2x8x8xf32>, vector<2x8x8xf32>, vector<2x8x8xf32> -> vector<2x8x8xf32>
    "tpu.trace_stop"() : () -> ()
    %157 = vector.shape_cast %11 : vector<8x8xf32> to vector<1x8x8xf32>
    %158 = vector.broadcast %157 : vector<1x8x8xf32> to vector<2x8x8xf32>
    %159 = arith.addf %156, %158 : vector<2x8x8xf32>
    %cst_49 = arith.constant dense<0xFF800000> : vector<2x8xf32>
    %160 = vector.multi_reduction <maximumf>, %159, %cst_49 [2] : vector<2x8x8xf32> to vector<2x8xf32>
    %161 = vector.shape_cast %160 : vector<2x8xf32> to vector<2x8x1xf32>
    %162 = vector.broadcast %161 : vector<2x8x1xf32> to vector<2x8x8xf32>
    %163 = arith.subf %159, %162 : vector<2x8x8xf32>
    %164 = math.exp %163 : vector<2x8x8xf32>
    %cst_50 = arith.constant dense<0.000000e+00> : vector<2x8xf32>
    %165 = vector.multi_reduction <add>, %164, %cst_50 [2] : vector<2x8x8xf32> to vector<2x8xf32>
    %166 = vector.shape_cast %165 : vector<2x8xf32> to vector<2x8x1xf32>
    %167 = tpu.reciprocal %166 : vector<2x8x1xf32> -> vector<2x8x1xf32>
    %168 = vector.broadcast %167 : vector<2x8x1xf32> to vector<2x8x8xf32>
    %169 = arith.mulf %164, %168 : vector<2x8x8xf32>
    "tpu.trace_start"() <{level = 10 : i32, message = "bqk,bkd->bqd"}> : () -> ()
    %cst_51 = arith.constant dense<0.000000e+00> : vector<2x8x8xf32>
    %170 = tpu.matmul %169, %155, %cst_51 {dimension_numbers = #tpu.dot_dimension_numbers<[2], [1], [1], [2], [0, 0, 0, 1, 1, 2], [0], [0]>} : vector<2x8x8xf32>, vector<2x8x8xf32>, vector<2x8x8xf32> -> vector<2x8x8xf32>
    "tpu.trace_stop"() : () -> ()
    %171 = vector.shape_cast %170 : vector<2x8x8xf32> to vector<16x8xf32>
    %172 = vector.extract_strided_slice %2 {offsets = [0, 0], sizes = [8, 32], strides = [1, 1]} : vector<32x32xf32> to vector<8x32xf32>
    %cst_52 = arith.constant dense<0.000000e+00> : vector<16x32xf32>
    %173 = tpu.matmul %171, %172, %cst_52 {dimension_numbers = #tpu.dot_dimension_numbers<[1], [0], [0], [1], [0, 0, 1, 1], [], []>} : vector<16x8xf32>, vector<8x32xf32>, vector<16x32xf32> -> vector<16x32xf32>
    %174 = arith.addf %5, %173 : vector<16x32xf32>
    %175 = vector.extract_strided_slice %152 {offsets = [0, 0, 8], sizes = [2, 8, 8], strides = [1, 1, 1]} : vector<2x8x96xf32> to vector<2x8x8xf32>
    %176 = vector.extract_strided_slice %152 {offsets = [0, 0, 40], sizes = [2, 8, 8], strides = [1, 1, 1]} : vector<2x8x96xf32> to vector<2x8x8xf32>
    %177 = vector.extract_strided_slice %152 {offsets = [0, 0, 72], sizes = [2, 8, 8], strides = [1, 1, 1]} : vector<2x8x96xf32> to vector<2x8x8xf32>
    "tpu.trace_start"() <{level = 10 : i32, message = "bqd,bkd->bqk"}> : () -> ()
    %cst_53 = arith.constant dense<0.000000e+00> : vector<2x8x8xf32>
    %178 = tpu.matmul %175, %176, %cst_53 {dimension_numbers = #tpu.dot_dimension_numbers<[2], [2], [1], [1], [0, 0, 0, 1, 1, 1], [0], [0]>} : vector<2x8x8xf32>, vector<2x8x8xf32>, vector<2x8x8xf32> -> vector<2x8x8xf32>
    "tpu.trace_stop"() : () -> ()
    %179 = vector.shape_cast %11 : vector<8x8xf32> to vector<1x8x8xf32>
    %180 = vector.broadcast %179 : vector<1x8x8xf32> to vector<2x8x8xf32>
    %181 = arith.addf %178, %180 : vector<2x8x8xf32>
    %cst_54 = arith.constant dense<0xFF800000> : vector<2x8xf32>
    %182 = vector.multi_reduction <maximumf>, %181, %cst_54 [2] : vector<2x8x8xf32> to vector<2x8xf32>
    %183 = vector.shape_cast %182 : vector<2x8xf32> to vector<2x8x1xf32>
    %184 = vector.broadcast %183 : vector<2x8x1xf32> to vector<2x8x8xf32>
    %185 = arith.subf %181, %184 : vector<2x8x8xf32>
    %186 = math.exp %185 : vector<2x8x8xf32>
    %cst_55 = arith.constant dense<0.000000e+00> : vector<2x8xf32>
    %187 = vector.multi_reduction <add>, %186, %cst_55 [2] : vector<2x8x8xf32> to vector<2x8xf32>
    %188 = vector.shape_cast %187 : vector<2x8xf32> to vector<2x8x1xf32>
    %189 = tpu.reciprocal %188 : vector<2x8x1xf32> -> vector<2x8x1xf32>
    %190 = vector.broadcast %189 : vector<2x8x1xf32> to vector<2x8x8xf32>
    %191 = arith.mulf %186, %190 : vector<2x8x8xf32>
    "tpu.trace_start"() <{level = 10 : i32, message = "bqk,bkd->bqd"}> : () -> ()
    %cst_56 = arith.constant dense<0.000000e+00> : vector<2x8x8xf32>
    %192 = tpu.matmul %191, %177, %cst_56 {dimension_numbers = #tpu.dot_dimension_numbers<[2], [1], [1], [2], [0, 0, 0, 1, 1, 2], [0], [0]>} : vector<2x8x8xf32>, vector<2x8x8xf32>, vector<2x8x8xf32> -> vector<2x8x8xf32>
    "tpu.trace_stop"() : () -> ()
    %193 = vector.shape_cast %192 : vector<2x8x8xf32> to vector<16x8xf32>
    %194 = vector.extract_strided_slice %2 {offsets = [8, 0], sizes = [8, 32], strides = [1, 1]} : vector<32x32xf32> to vector<8x32xf32>
    %cst_57 = arith.constant dense<0.000000e+00> : vector<16x32xf32>
    %195 = tpu.matmul %193, %194, %cst_57 {dimension_numbers = #tpu.dot_dimension_numbers<[1], [0], [0], [1], [0, 0, 1, 1], [], []>} : vector<16x8xf32>, vector<8x32xf32>, vector<16x32xf32> -> vector<16x32xf32>
    %196 = arith.addf %174, %195 : vector<16x32xf32>
    %197 = vector.extract_strided_slice %152 {offsets = [0, 0, 16], sizes = [2, 8, 8], strides = [1, 1, 1]} : vector<2x8x96xf32> to vector<2x8x8xf32>
    %198 = vector.extract_strided_slice %152 {offsets = [0, 0, 48], sizes = [2, 8, 8], strides = [1, 1, 1]} : vector<2x8x96xf32> to vector<2x8x8xf32>
    %199 = vector.extract_strided_slice %152 {offsets = [0, 0, 80], sizes = [2, 8, 8], strides = [1, 1, 1]} : vector<2x8x96xf32> to vector<2x8x8xf32>
    "tpu.trace_start"() <{level = 10 : i32, message = "bqd,bkd->bqk"}> : () -> ()
    %cst_58 = arith.constant dense<0.000000e+00> : vector<2x8x8xf32>
    %200 = tpu.matmul %197, %198, %cst_58 {dimension_numbers = #tpu.dot_dimension_numbers<[2], [2], [1], [1], [0, 0, 0, 1, 1, 1], [0], [0]>} : vector<2x8x8xf32>, vector<2x8x8xf32>, vector<2x8x8xf32> -> vector<2x8x8xf32>
    "tpu.trace_stop"() : () -> ()
    %201 = vector.shape_cast %11 : vector<8x8xf32> to vector<1x8x8xf32>
    %202 = vector.broadcast %201 : vector<1x8x8xf32> to vector<2x8x8xf32>
    %203 = arith.addf %200, %202 : vector<2x8x8xf32>
    %cst_59 = arith.constant dense<0xFF800000> : vector<2x8xf32>
    %204 = vector.multi_reduction <maximumf>, %203, %cst_59 [2] : vector<2x8x8xf32> to vector<2x8xf32>
    %205 = vector.shape_cast %204 : vector<2x8xf32> to vector<2x8x1xf32>
    %206 = vector.broadcast %205 : vector<2x8x1xf32> to vector<2x8x8xf32>
    %207 = arith.subf %203, %206 : vector<2x8x8xf32>
    %208 = math.exp %207 : vector<2x8x8xf32>
    %cst_60 = arith.constant dense<0.000000e+00> : vector<2x8xf32>
    %209 = vector.multi_reduction <add>, %208, %cst_60 [2] : vector<2x8x8xf32> to vector<2x8xf32>
    %210 = vector.shape_cast %209 : vector<2x8xf32> to vector<2x8x1xf32>
    %211 = tpu.reciprocal %210 : vector<2x8x1xf32> -> vector<2x8x1xf32>
    %212 = vector.broadcast %211 : vector<2x8x1xf32> to vector<2x8x8xf32>
    %213 = arith.mulf %208, %212 : vector<2x8x8xf32>
    "tpu.trace_start"() <{level = 10 : i32, message = "bqk,bkd->bqd"}> : () -> ()
    %cst_61 = arith.constant dense<0.000000e+00> : vector<2x8x8xf32>
    %214 = tpu.matmul %213, %199, %cst_61 {dimension_numbers = #tpu.dot_dimension_numbers<[2], [1], [1], [2], [0, 0, 0, 1, 1, 2], [0], [0]>} : vector<2x8x8xf32>, vector<2x8x8xf32>, vector<2x8x8xf32> -> vector<2x8x8xf32>
    "tpu.trace_stop"() : () -> ()
    %215 = vector.shape_cast %214 : vector<2x8x8xf32> to vector<16x8xf32>
    %216 = vector.extract_strided_slice %2 {offsets = [16, 0], sizes = [8, 32], strides = [1, 1]} : vector<32x32xf32> to vector<8x32xf32>
    %cst_62 = arith.constant dense<0.000000e+00> : vector<16x32xf32>
    %217 = tpu.matmul %215, %216, %cst_62 {dimension_numbers = #tpu.dot_dimension_numbers<[1], [0], [0], [1], [0, 0, 1, 1], [], []>} : vector<16x8xf32>, vector<8x32xf32>, vector<16x32xf32> -> vector<16x32xf32>
    %218 = arith.addf %196, %217 : vector<16x32xf32>
    %219 = vector.extract_strided_slice %152 {offsets = [0, 0, 24], sizes = [2, 8, 8], strides = [1, 1, 1]} : vector<2x8x96xf32> to vector<2x8x8xf32>
    %220 = vector.extract_strided_slice %152 {offsets = [0, 0, 56], sizes = [2, 8, 8], strides = [1, 1, 1]} : vector<2x8x96xf32> to vector<2x8x8xf32>
    %221 = vector.extract_strided_slice %152 {offsets = [0, 0, 88], sizes = [2, 8, 8], strides = [1, 1, 1]} : vector<2x8x96xf32> to vector<2x8x8xf32>
    "tpu.trace_start"() <{level = 10 : i32, message = "bqd,bkd->bqk"}> : () -> ()
    %cst_63 = arith.constant dense<0.000000e+00> : vector<2x8x8xf32>
    %222 = tpu.matmul %219, %220, %cst_63 {dimension_numbers = #tpu.dot_dimension_numbers<[2], [2], [1], [1], [0, 0, 0, 1, 1, 1], [0], [0]>} : vector<2x8x8xf32>, vector<2x8x8xf32>, vector<2x8x8xf32> -> vector<2x8x8xf32>
    "tpu.trace_stop"() : () -> ()
    %223 = vector.shape_cast %11 : vector<8x8xf32> to vector<1x8x8xf32>
    %224 = vector.broadcast %223 : vector<1x8x8xf32> to vector<2x8x8xf32>
    %225 = arith.addf %222, %224 : vector<2x8x8xf32>
    %cst_64 = arith.constant dense<0xFF800000> : vector<2x8xf32>
    %226 = vector.multi_reduction <maximumf>, %225, %cst_64 [2] : vector<2x8x8xf32> to vector<2x8xf32>
    %227 = vector.shape_cast %226 : vector<2x8xf32> to vector<2x8x1xf32>
    %228 = vector.broadcast %227 : vector<2x8x1xf32> to vector<2x8x8xf32>
    %229 = arith.subf %225, %228 : vector<2x8x8xf32>
    %230 = math.exp %229 : vector<2x8x8xf32>
    %cst_65 = arith.constant dense<0.000000e+00> : vector<2x8xf32>
    %231 = vector.multi_reduction <add>, %230, %cst_65 [2] : vector<2x8x8xf32> to vector<2x8xf32>
    %232 = vector.shape_cast %231 : vector<2x8xf32> to vector<2x8x1xf32>
    %233 = tpu.reciprocal %232 : vector<2x8x1xf32> -> vector<2x8x1xf32>
    %234 = vector.broadcast %233 : vector<2x8x1xf32> to vector<2x8x8xf32>
    %235 = arith.mulf %230, %234 : vector<2x8x8xf32>
    "tpu.trace_start"() <{level = 10 : i32, message = "bqk,bkd->bqd"}> : () -> ()
    %cst_66 = arith.constant dense<0.000000e+00> : vector<2x8x8xf32>
    %236 = tpu.matmul %235, %221, %cst_66 {dimension_numbers = #tpu.dot_dimension_numbers<[2], [1], [1], [2], [0, 0, 0, 1, 1, 2], [0], [0]>} : vector<2x8x8xf32>, vector<2x8x8xf32>, vector<2x8x8xf32> -> vector<2x8x8xf32>
    "tpu.trace_stop"() : () -> ()
    %237 = vector.shape_cast %236 : vector<2x8x8xf32> to vector<16x8xf32>
    %238 = vector.extract_strided_slice %2 {offsets = [24, 0], sizes = [8, 32], strides = [1, 1]} : vector<32x32xf32> to vector<8x32xf32>
    %cst_67 = arith.constant dense<0.000000e+00> : vector<16x32xf32>
    %239 = tpu.matmul %237, %238, %cst_67 {dimension_numbers = #tpu.dot_dimension_numbers<[1], [0], [0], [1], [0, 0, 1, 1], [], []>} : vector<16x8xf32>, vector<8x32xf32>, vector<16x32xf32> -> vector<16x32xf32>
    %240 = arith.addf %218, %239 : vector<16x32xf32>
    %241 = arith.addf %240, %126 : vector<16x32xf32>
    %c0_68 = arith.constant 0 : index
    %c0_69 = arith.constant 0 : index
    %242 = vector.load %arg9[%c0_68, %c0_69] : memref<16x32xf32, #tpu.memory_space<vmem>>, vector<16x32xf32>
    tpu.vector_store %arg9[%c0_68, %c0_69], %241 {strides = array<i32>} : memref<16x32xf32, #tpu.memory_space<vmem>>, vector<16x32xf32>,
    return
  }
  func.func @transform_0(%arg0: i32) -> (i32, i32) {
    %c0_i32 = arith.constant 0 : i32
    %c0_i32_0 = arith.constant 0 : i32
    return %arg0, %c0_i32 : i32, i32
  }
  func.func @transform_1(%arg0: i32) -> (i32, i32) {
    %c0_i32 = arith.constant 0 : i32
    %c0_i32_0 = arith.constant 0 : i32
    %c0_i32_1 = arith.constant 0 : i32
    return %c0_i32, %c0_i32_0 : i32, i32
  }
  func.func @transform_2(%arg0: i32) -> (i32, i32) {
    %c0_i32 = arith.constant 0 : i32
    %c0_i32_0 = arith.constant 0 : i32
    %c0_i32_1 = arith.constant 0 : i32
    return %c0_i32, %c0_i32_0 : i32, i32
  }
  func.func @transform_3(%arg0: i32) -> (i32, i32) {
    %c0_i32 = arith.constant 0 : i32
    %c0_i32_0 = arith.constant 0 : i32
    %c0_i32_1 = arith.constant 0 : i32
    return %c0_i32, %c0_i32_0 : i32, i32
  }
  func.func @transform_4(%arg0: i32) -> (i32, i32) {
    %c0_i32 = arith.constant 0 : i32
    %c0_i32_0 = arith.constant 0 : i32
    %c0_i32_1 = arith.constant 0 : i32
    return %c0_i32, %c0_i32_0 : i32, i32
  }
  func.func @transform_5(%arg0: i32) -> (i32, i32) {
    %c0_i32 = arith.constant 0 : i32
    %c0_i32_0 = arith.constant 0 : i32
    %c0_i32_1 = arith.constant 0 : i32
    return %c0_i32, %c0_i32_0 : i32, i32
  }
  func.func @transform_6(%arg0: i32) -> (i32, i32) {
    %c0_i32 = arith.constant 0 : i32
    %c0_i32_0 = arith.constant 0 : i32
    %c0_i32_1 = arith.constant 0 : i32
    return %c0_i32, %c0_i32_0 : i32, i32
  }
  func.func @transform_7(%arg0: i32) -> (i32, i32) {
    %c0_i32 = arith.constant 0 : i32
    %c0_i32_0 = arith.constant 0 : i32
    %c0_i32_1 = arith.constant 0 : i32
    return %c0_i32, %c0_i32_0 : i32, i32
  }
  func.func @transform_8(%arg0: i32) -> (i32, i32) {
    %c0_i32 = arith.constant 0 : i32
    %c0_i32_0 = arith.constant 0 : i32
    return %arg0, %c0_i32 : i32, i32
  }
}

</mosaic_0001>

<llo_original>
// kernel: tpu_custom_call.1
$region0: #{tpu_custom_call.1}
  #allocation0 [shape = 'u32[]', space=smem, size = 0x4, offset = 0x4, fixed_abs, tag = 'smem constant byte address 0x4 - core index']
  #allocation1 [shape = 'u32[144,128]{1,0:T(1,128)}', space=vmem, size = 0x12000, scoped, tag = 'internal scratch']
  %s0 = inlined_call_operand.hbm [shape: f32[16,32], index: 0, kind: input, shape index: {}]
  %s1 = inlined_call_operand.hbm [shape: f32[32,96], index: 1, kind: input, shape index: {}]
  %s2 = inlined_call_operand.hbm [shape: f32[32,32], index: 2, kind: input, shape index: {}]
  %s3 = inlined_call_operand.vmem [shape: f32[1,32], index: 3, kind: input, shape index: {}]
  %s4 = inlined_call_operand.vmem [shape: f32[1,32], index: 4, kind: input, shape index: {}]
  %s5 = inlined_call_operand.vmem [shape: f32[1,32], index: 5, kind: input, shape index: {}]
  %s6 = inlined_call_operand.vmem [shape: f32[1,32], index: 6, kind: input, shape index: {}]
  %s7 = inlined_call_operand.vmem [shape: f32[1,32], index: 7, kind: input, shape index: {}]
  %s8 = inlined_call_operand.hbm [shape: f32[16,32], index: 8, kind: output, shape index: {}]
  %s9 = sld [smem:[#allocation0]]
  $region54: #{tpu_custom_call.1} parent=0
    _
  %s11 = ssub.s32 1, %s9
  %s12 = scalar_select 0, %s11, %s9
  $region1: #{tpu_custom_call.1} parent=0
    #allocation2 [shape = 'u8[8192]{0}', space=vmem, size = 0x2000, scoped, tag = 'input window, operand 0, single buffered']
    #allocation3 [shape = 's32[1]{0}', space=sflag, size = 0x4, scoped, tag = 'scoped memory for tpu_custom_call.1']
    #allocation4 [shape = 's32[1]{0}', space=sflag, size = 0x4, scoped, tag = 'scoped memory for tpu_custom_call.1']
    #allocation5 [shape = 'u8[16384]{0}', space=vmem, size = 0x4000, scoped, tag = 'input window, operand 1, single buffered']
    #allocation6 [shape = 's32[1]{0}', space=sflag, size = 0x4, scoped, tag = 'scoped memory for tpu_custom_call.1']
    #allocation7 [shape = 'u8[16384]{0}', space=vmem, size = 0x4000, scoped, tag = 'input window, operand 2, single buffered']
    #allocation8 [shape = 'u8[8192]{0}', space=vmem, size = 0x2000, scoped, tag = 'output window, operand 0, single buffered']
    %13 = vsyncpa [#allocation3], 0
    %14 = vsyncpa [#allocation6], 0
    %15 = vsyncpa [#allocation4], 0
    // Predicated region
    $region2: #{tpu_custom_call.1} parent=1 // pred_check
      _
    $region3: #{tpu_custom_call.1} parent=1 // pred_check_branch
      %17 = sbr.rel (0) target = $region5
    $region4: #{tpu_custom_call.1} parent=1 // pred_region
      %s19 = ssub.s32 256, 256
      %20 = vsyncadd [#allocation3], %s19
      %s21 = sshll.u32 [#allocation2], 4
      %s22 = int_to_ptr.vmem [resolvable:$true] %s21
      %27 = dma.hbm_to_vmem [thread:$0]  %s0, 256, %s22, [#allocation3], 128, 128, 8
    $region5: #{tpu_custom_call.1} parent=1 // pred_fallthru
      _
    // Predicated region
    $region6: #{tpu_custom_call.1} parent=1 // pred_check
      _
    $region7: #{tpu_custom_call.1} parent=1 // pred_check_branch
      %29 = sbr.rel (0) target = $region9
    $region8: #{tpu_custom_call.1} parent=1 // pred_region
      %s31 = ssub.s32 512, 512
      %32 = vsyncadd [#allocation6], %s31
      %s33 = sshll.u32 [#allocation5], 4
      %s34 = int_to_ptr.vmem [resolvable:$true] %s33
      %39 = dma.hbm_to_vmem [thread:$0]  %s1, 512, %s34, [#allocation6], 128, 128, 8
    $region9: #{tpu_custom_call.1} parent=1 // pred_fallthru
      _
    // Predicated region
    $region10: #{tpu_custom_call.1} parent=1 // pred_check
      _
    $region11: #{tpu_custom_call.1} parent=1 // pred_check_branch
      %41 = sbr.rel (0) target = $region13
    $region12: #{tpu_custom_call.1} parent=1 // pred_region
      %s43 = ssub.s32 512, 512
      %44 = vsyncadd [#allocation6], %s43
      %s45 = sshll.u32 [#allocation7], 4
      %s46 = int_to_ptr.vmem [resolvable:$true] %s45
      %51 = dma.hbm_to_vmem [thread:$0]  %s2, 512, %s46, [#allocation6], 128, 128, 8
    $region13: #{tpu_custom_call.1} parent=1 // pred_fallthru
      _
    // Predicated region
    $region14: #{tpu_custom_call.1} parent=1 // pred_check
      _
    $region15: #{tpu_custom_call.1} parent=1 // pred_check_branch
      %53 = sbr.rel (0) target = $region17
    $region16: #{tpu_custom_call.1} parent=1 // pred_region
      _
    $region17: #{tpu_custom_call.1} parent=1 // pred_fallthru
      _
    // Predicated region
    $region18: #{tpu_custom_call.1} parent=1 // pred_check
      _
    $region19: #{tpu_custom_call.1} parent=1 // pred_check_branch
      %55 = sbr.rel (0) target = $region21
    $region20: #{tpu_custom_call.1} parent=1 // pred_region
      _
    $region21: #{tpu_custom_call.1} parent=1 // pred_fallthru
      _
    // Predicated region
    $region22: #{tpu_custom_call.1} parent=1 // pred_check
      _
    $region23: #{tpu_custom_call.1} parent=1 // pred_check_branch
      %57 = sbr.rel (0) target = $region25
    $region24: #{tpu_custom_call.1} parent=1 // pred_region
      _
    $region25: #{tpu_custom_call.1} parent=1 // pred_fallthru
      _
    // Predicated region
    $region26: #{tpu_custom_call.1} parent=1 // pred_check
      _
    $region27: #{tpu_custom_call.1} parent=1 // pred_check_branch
      %59 = sbr.rel (0) target = $region29
    $region28: #{tpu_custom_call.1} parent=1 // pred_region
      _
    $region29: #{tpu_custom_call.1} parent=1 // pred_fallthru
      _
    // Predicated region
    $region30: #{tpu_custom_call.1} parent=1 // pred_check
      _
    $region31: #{tpu_custom_call.1} parent=1 // pred_check_branch
      %61 = sbr.rel (0) target = $region33
    $region32: #{tpu_custom_call.1} parent=1 // pred_region
      _
    $region33: #{tpu_custom_call.1} parent=1 // pred_fallthru
      _
    // Predicated region
    $region34: #{tpu_custom_call.1} parent=1 // pred_check
      _
    $region35: #{tpu_custom_call.1} parent=1 // pred_check_branch
      %63 = sbr.rel (0) target = $region37
    $region36: #{tpu_custom_call.1} parent=1 // pred_region
      %64 = dma.done [#allocation3], 256
    $region37: #{tpu_custom_call.1} parent=1 // pred_fallthru
      _
    // Predicated region
    $region38: #{tpu_custom_call.1} parent=1 // pred_check
      _
    $region39: #{tpu_custom_call.1} parent=1 // pred_check_branch
      %66 = sbr.rel (0) target = $region41
    $region40: #{tpu_custom_call.1} parent=1 // pred_region
      %67 = dma.done [#allocation6], 512
    $region41: #{tpu_custom_call.1} parent=1 // pred_fallthru
      _
    // Predicated region
    $region42: #{tpu_custom_call.1} parent=1 // pred_check
      _
    $region43: #{tpu_custom_call.1} parent=1 // pred_check_branch
      %69 = sbr.rel (0) target = $region45
    $region44: #{tpu_custom_call.1} parent=1 // pred_region
      %70 = dma.done [#allocation6], 512
    $region45: #{tpu_custom_call.1} parent=1 // pred_fallthru
      _
    %v71 = vld [vmem:[#allocation2] sm:$0xff]
    %v72 = vld [vmem:[#allocation2 + $0x8] sm:$0xff]
    %v73 = vld [vmem:[#allocation5] sm:$0xff]
    %v74 = vld [vmem:[#allocation5 + $0x8] sm:$0xff]
    %v75 = vld [vmem:[#allocation5 + $0x10] sm:$0xff]
    %v76 = vld [vmem:[#allocation5 + $0x18] sm:$0xff]
    %v77 = vld [vmem:[#allocation7] sm:$0xff]
    %v78 = vld [vmem:[#allocation7 + $0x8] sm:$0xff]
    %v79 = vld [vmem:[#allocation7 + $0x10] sm:$0xff]
    %v80 = vld [vmem:[#allocation7 + $0x18] sm:$0xff]
    %v81 = vld [vmem:[%s3] sm:$0x1]
    %v83 = vlaneseq
    %v84 = vshrl.u32 %v83, 7
    %v85 = vsub.s32 0, %v84
    %v86 = vrot.slane %v81, %v85
    %v88 = vlaneseq
    %v89 = vshrl.u32 %v88, 7
    %v90 = vlaneseq
    %v91 = vand.u32 %v90, 127
    %vm92 = vcmp.gt.s32.totalorder %v91, %v89
    %v93 = vsel %vm92, -1e+30, 0.0
    %v94 = vld [vmem:[%s4] sm:$0x1]
    %v95 = vld [vmem:[%s5] sm:$0x1]
    %vm96 = vcmask 261120
    %v97 = vsel %vm96, %v71, 0.0
    %98 = vadd.xlane.f32.xlu0 %v97
    %v99 = vpop.xlane.xlu0 %98
    %v100 = vsel %vm96, %v72, 0.0
    %101 = vadd.xlane.f32.xlu0 %v100
    %v102 = vpop.xlane.xlu0 %101
    %v103 = vrcp.pop 32.0
    %v104 = vmul.f32 %v99, %v103
    %v105 = vmul.f32 %v102, %v103
    %v106 = vmul.f32 %v71, %v71
    %v107 = vmul.f32 %v72, %v72
    %v108 = vsel %vm96, %v106, 0.0
    %109 = vadd.xlane.f32.xlu0 %v108
    %v110 = vpop.xlane.xlu0 %109
    %v111 = vsel %vm96, %v107, 0.0
    %112 = vadd.xlane.f32.xlu0 %v111
    %v113 = vpop.xlane.xlu0 %112
    %v114 = vmul.f32 %v110, %v103
    %v115 = vmul.f32 %v113, %v103
    %v116 = vmul.f32 %v104, %v104
    %v117 = vmul.f32 %v105, %v105
    %v118 = vsub.f32 %v114, %v116
    %v119 = vsub.f32 %v115, %v117
    %v120 = vsub.f32 %v71, %v104
    %v121 = vsub.f32 %v72, %v105
    %v122 = vadd.f32 %v118, 1e-05
    %v123 = vadd.f32 %v119, 1e-05
    %v124 = vrsqrt.pop %v122
    %v125 = vrsqrt.pop %v123
    %v126 = vmul.f32 %v120, %v124
    %v127 = vmul.f32 %v121, %v125
    %v129 = vlaneseq
    %v130 = vshrl.u32 %v129, 7
    %v131 = vsub.s32 0, %v130
    %v132 = vrot.slane %v94, %v131
    %v134 = vmul.f32 %v132, %v126
    %v135 = vmul.f32 %v132, %v127
    %v137 = vlaneseq
    %v138 = vshrl.u32 %v137, 7
    %v139 = vsub.s32 0, %v138
    %v140 = vrot.slane %v95, %v139
    %v142 = vadd.f32 %v134, %v140
    %v143 = vadd.f32 %v135, %v140
    %v145 = vsel %vm96, %v142, 0
    %v148 = vsel %vm96, %v143, 0
    %150 = vmatprep.subr.mxu0 0.0
    %151 = vmatpush1.msra.mxu0 0.0
    %152 = vmatprep.subr.mxu0 0.0
    %153 = vmatpush1.msra.mxu0 0.0
    %154 = vmatprep.subr.mxu0 0.0
    %155 = vmatpush1.msra.mxu0 0.0
    %156 = vmatprep.subr.mxu0 0.0
    %157 = vmatpush1.msra.mxu0 0.0
    %158 = vmatprep.subr.mxu0 0.0
    %159 = vmatpush1.msra.mxu0 0.0
    %160 = vmatprep.subr.mxu0 0.0
    %161 = vmatpush1.msra.mxu0 0.0
    %162 = vmatprep.subr.mxu0 0.0
    %163 = vmatpush1.msra.mxu0 0.0
    %164 = vmatprep.subr.mxu0 0.0
    %165 = vmatpush1.msra.mxu0 0.0
    %166 = vmatprep.subr.mxu0 0.0
    %167 = vmatpush1.msra.mxu0 0.0
    %168 = vmatprep.subr.mxu0 0.0
    %169 = vmatpush1.msra.mxu0 0.0
    %170 = vmatprep.subr.mxu0 0.0
    %171 = vmatpush1.msra.mxu0 0.0
    %172 = vmatprep.subr.mxu0 0.0
    %173 = vmatpush1.msra.mxu0 0.0
    %174 = vmatprep.subr.mxu0 0.0
    %175 = vmatpush1.msra.mxu0 %v76
    %176 = vmatprep.subr.mxu0 0.0
    %177 = vmatpush1.msra.mxu0 %v75
    %178 = vmatprep.subr.mxu0 0.0
    %179 = vmatpush1.msra.mxu0 %v74
    %180 = vmatprep.subr.mxu0 0.0
    %181 = vmatpush1.msra.mxu0 %v73
    %182 = vmatprep.subr.mxu0 0.0
    %183 = vmatpush2.msra.mxu0 0.0
    %184 = vmatprep.subr.mxu0 0.0
    %185 = vmatpush2.msra.mxu0 0.0
    %186 = vmatprep.subr.mxu0 0.0
    %187 = vmatpush2.msra.mxu0 0.0
    %188 = vmatprep.subr.mxu0 0.0
    %189 = vmatpush2.msra.mxu0 0.0
    %190 = vmatprep.subr.mxu0 0.0
    %191 = vmatpush2.msra.mxu0 0.0
    %192 = vmatprep.subr.mxu0 0.0
    %193 = vmatpush2.msra.mxu0 0.0
    %194 = vmatprep.subr.mxu0 0.0
    %195 = vmatpush2.msra.mxu0 0.0
    %196 = vmatprep.subr.mxu0 0.0
    %197 = vmatpush2.msra.mxu0 0.0
    %198 = vmatprep.subr.mxu0 0.0
    %199 = vmatpush2.msra.mxu0 0.0
    %200 = vmatprep.subr.mxu0 0.0
    %201 = vmatpush2.msra.mxu0 0.0
    %202 = vmatprep.subr.mxu0 0.0
    %203 = vmatpush2.msra.mxu0 0.0
    %204 = vmatprep.subr.mxu0 0.0
    %205 = vmatpush2.msra.mxu0 0.0
    %206 = vmatprep.subr.mxu0 0.0
    %207 = vmatpush2.msra.mxu0 0.0
    %208 = vmatprep.subr.mxu0 0.0
    %209 = vmatpush2.msra.mxu0 0.0
    %210 = vmatprep.subr.mxu0 0.0
    %211 = vmatpush2.msra.mxu0 0.0
    %212 = vmatprep.subr.mxu0 0.0
    %213 = vmatpush2.msra.mxu0 0.0
    %214 = vmatprep.mubr.f32.mxu0 0.0
    %215 = vmatmul.mubr.f32.gmra.mxu0 %v145
    %v216 = vpop.f32.mrf.mxu0
    %v217 = vadd.f32 0.0, %v216
    %v218 = vpop.f32.mrf.mxu0
    %219 = vmatprep.mubr.f32.mxu0 0.0
    %220 = vmatmul.mubr.f32.gmra.mxu0 %v148
    %v221 = vpop.f32.mrf.mxu0
    %v222 = vadd.f32 0.0, %v221
    %v223 = vpop.f32.mrf.mxu0
    %224 = vdwg.mxu0
    %226 = vrot.lane.b32.xlu0 %v217, 96
    %v227 = vpop.permute.xlu0 %226
    %vm228 = vcmask 64512
    %v229 = vsel %vm228, %v217, 0
    %v231 = vsel %vm228, %v227, 0
    %233 = vmatprep.subr.mxu0 0.0
    %234 = vmatpush1.xpose.msra.mxu0 0.0
    %235 = vmatprep.subr.mxu0 0.0
    %236 = vmatpush1.xpose.msra.mxu0 0.0
    %237 = vmatprep.subr.mxu0 0.0
    %238 = vmatpush1.xpose.msra.mxu0 0.0
    %239 = vmatprep.subr.mxu0 0.0
    %240 = vmatpush1.xpose.msra.mxu0 0.0
    %241 = vmatprep.subr.mxu0 0.0
    %242 = vmatpush1.xpose.msra.mxu0 0.0
    %243 = vmatprep.subr.mxu0 0.0
    %244 = vmatpush1.xpose.msra.mxu0 0.0
    %245 = vmatprep.subr.mxu0 0.0
    %246 = vmatpush1.xpose.msra.mxu0 0.0
    %247 = vmatprep.subr.mxu0 0.0
    %248 = vmatpush1.xpose.msra.mxu0 0.0
    %249 = vmatprep.subr.mxu0 0.0
    %250 = vmatpush1.xpose.msra.mxu0 0.0
    %251 = vmatprep.subr.mxu0 0.0
    %252 = vmatpush1.xpose.msra.mxu0 0.0
    %253 = vmatprep.subr.mxu0 0.0
    %254 = vmatpush1.xpose.msra.mxu0 0.0
    %255 = vmatprep.subr.mxu0 0.0
    %256 = vmatpush1.xpose.msra.mxu0 0.0
    %257 = vmatprep.subr.mxu0 0.0
    %258 = vmatpush1.xpose.msra.mxu0 0.0
    %259 = vmatprep.subr.mxu0 0.0
    %260 = vmatpush1.xpose.msra.mxu0 0.0
    %261 = vmatprep.subr.mxu0 0.0
    %262 = vmatpush1.xpose.msra.mxu0 0.0
    %263 = vmatprep.subr.mxu0 0.0
    %264 = vmatpush1.xpose.msra.mxu0 %v231
    %265 = vmatprep.subr.mxu0 0.0
    %266 = vmatpush2.xpose.msra.mxu0 0.0
    %267 = vmatprep.subr.mxu0 0.0
    %268 = vmatpush2.xpose.msra.mxu0 0.0
    %269 = vmatprep.subr.mxu0 0.0
    %270 = vmatpush2.xpose.msra.mxu0 0.0
    %271 = vmatprep.subr.mxu0 0.0
    %272 = vmatpush2.xpose.msra.mxu0 0.0
    %273 = vmatprep.subr.mxu0 0.0
    %274 = vmatpush2.xpose.msra.mxu0 0.0
    %275 = vmatprep.subr.mxu0 0.0
    %276 = vmatpush2.xpose.msra.mxu0 0.0
    %277 = vmatprep.subr.mxu0 0.0
    %278 = vmatpush2.xpose.msra.mxu0 0.0
    %279 = vmatprep.subr.mxu0 0.0
    %280 = vmatpush2.xpose.msra.mxu0 0.0
    %281 = vmatprep.subr.mxu0 0.0
    %282 = vmatpush2.xpose.msra.mxu0 0.0
    %283 = vmatprep.subr.mxu0 0.0
    %284 = vmatpush2.xpose.msra.mxu0 0.0
    %285 = vmatprep.subr.mxu0 0.0
    %286 = vmatpush2.xpose.msra.mxu0 0.0
    %287 = vmatprep.subr.mxu0 0.0
    %288 = vmatpush2.xpose.msra.mxu0 0.0
    %289 = vmatprep.subr.mxu0 0.0
    %290 = vmatpush2.xpose.msra.mxu0 0.0
    %291 = vmatprep.subr.mxu0 0.0
    %292 = vmatpush2.xpose.msra.mxu0 0.0
    %293 = vmatprep.subr.mxu0 0.0
    %294 = vmatpush2.xpose.msra.mxu0 0.0
    %295 = vmatprep.subr.mxu0 0.0
    %296 = vmatpush2.xpose.msra.mxu0 0.0
    %297 = vmatprep.mubr.f32.mxu0 0.0
    %298 = vmatmul.mubr.f32.gmra.mxu0 %v229
    %v299 = vpop.f32.mrf.mxu0
    %v300 = vadd.f32 %v93, %v299
    %v301 = vpop.f32.mrf.mxu0
    %302 = vdwg.mxu0
    %304 = vrot.lane.b32.xlu0 %v222, 96
    %v305 = vpop.permute.xlu0 %304
    %v306 = vsel %vm228, %v222, 0
    %v308 = vsel %vm228, %v305, 0
    %310 = vmatprep.subr.mxu0 0.0
    %311 = vmatpush1.xpose.msra.mxu0 0.0
    %312 = vmatprep.subr.mxu0 0.0
    %313 = vmatpush1.xpose.msra.mxu0 0.0
    %314 = vmatprep.subr.mxu0 0.0
    %315 = vmatpush1.xpose.msra.mxu0 0.0
    %316 = vmatprep.subr.mxu0 0.0
    %317 = vmatpush1.xpose.msra.mxu0 0.0
    %318 = vmatprep.subr.mxu0 0.0
    %319 = vmatpush1.xpose.msra.mxu0 0.0
    %320 = vmatprep.subr.mxu0 0.0
    %321 = vmatpush1.xpose.msra.mxu0 0.0
    %322 = vmatprep.subr.mxu0 0.0
    %323 = vmatpush1.xpose.msra.mxu0 0.0
    %324 = vmatprep.subr.mxu0 0.0
    %325 = vmatpush1.xpose.msra.mxu0 0.0
    %326 = vmatprep.subr.mxu0 0.0
    %327 = vmatpush1.xpose.msra.mxu0 0.0
    %328 = vmatprep.subr.mxu0 0.0
    %329 = vmatpush1.xpose.msra.mxu0 0.0
    %330 = vmatprep.subr.mxu0 0.0
    %331 = vmatpush1.xpose.msra.mxu0 0.0
    %332 = vmatprep.subr.mxu0 0.0
    %333 = vmatpush1.xpose.msra.mxu0 0.0
    %334 = vmatprep.subr.mxu0 0.0
    %335 = vmatpush1.xpose.msra.mxu0 0.0
    %336 = vmatprep.subr.mxu0 0.0
    %337 = vmatpush1.xpose.msra.mxu0 0.0
    %338 = vmatprep.subr.mxu0 0.0
    %339 = vmatpush1.xpose.msra.mxu0 0.0
    %340 = vmatprep.subr.mxu0 0.0
    %341 = vmatpush1.xpose.msra.mxu0 %v308
    %342 = vmatprep.subr.mxu0 0.0
    %343 = vmatpush2.xpose.msra.mxu0 0.0
    %344 = vmatprep.subr.mxu0 0.0
    %345 = vmatpush2.xpose.msra.mxu0 0.0
    %346 = vmatprep.subr.mxu0 0.0
    %347 = vmatpush2.xpose.msra.mxu0 0.0
    %348 = vmatprep.subr.mxu0 0.0
    %349 = vmatpush2.xpose.msra.mxu0 0.0
    %350 = vmatprep.subr.mxu0 0.0
    %351 = vmatpush2.xpose.msra.mxu0 0.0
    %352 = vmatprep.subr.mxu0 0.0
    %353 = vmatpush2.xpose.msra.mxu0 0.0
    %354 = vmatprep.subr.mxu0 0.0
    %355 = vmatpush2.xpose.msra.mxu0 0.0
    %356 = vmatprep.subr.mxu0 0.0
    %357 = vmatpush2.xpose.msra.mxu0 0.0
    %358 = vmatprep.subr.mxu0 0.0
    %359 = vmatpush2.xpose.msra.mxu0 0.0
    %360 = vmatprep.subr.mxu0 0.0
    %361 = vmatpush2.xpose.msra.mxu0 0.0
    %362 = vmatprep.subr.mxu0 0.0
    %363 = vmatpush2.xpose.msra.mxu0 0.0
    %364 = vmatprep.subr.mxu0 0.0
    %365 = vmatpush2.xpose.msra.mxu0 0.0
    %366 = vmatprep.subr.mxu0 0.0
    %367 = vmatpush2.xpose.msra.mxu0 0.0
    %368 = vmatprep.subr.mxu0 0.0
    %369 = vmatpush2.xpose.msra.mxu0 0.0
    %370 = vmatprep.subr.mxu0 0.0
    %371 = vmatpush2.xpose.msra.mxu0 0.0
    %372 = vmatprep.subr.mxu0 0.0
    %373 = vmatpush2.xpose.msra.mxu0 0.0
    %374 = vmatprep.mubr.f32.mxu0 0.0
    %375 = vmatmul.mubr.f32.gmra.mxu0 %v306
    %v376 = vpop.f32.mrf.mxu0
    %v377 = vadd.f32 %v93, %v376
    %v378 = vpop.f32.mrf.mxu0
    %379 = vdwg.mxu0
    %v380 = vsel %vm228, %v300, -inf
    %381 = vmax.xlane.f32.xlu0 %v380
    %v382 = vpop.xlane.xlu0 %381
    %v383 = vsel %vm228, %v377, -inf
    %384 = vmax.xlane.f32.xlu0 %v383
    %v385 = vpop.xlane.xlu0 %384
    %v386 = vsub.f32 %v300, %v382
    %v387 = vsub.f32 %v377, %v385
    %v388 = vmul.f32 %v386, 1.442695
    %v389 = vpow.pop %v388
    %v390 = vmul.f32 %v387, 1.442695
    %v391 = vpow.pop %v390
    %v392 = vsel %vm228, %v389, 0.0
    %393 = vadd.xlane.f32.xlu0 %v392
    %v394 = vpop.xlane.xlu0 %393
    %v395 = vsel %vm228, %v391, 0.0
    %396 = vadd.xlane.f32.xlu0 %v395
    %v397 = vpop.xlane.xlu0 %396
    %v398 = vrcp.pop %v394
    %v399 = vrcp.pop %v397
    %v400 = vmul.f32 %v389, %v398
    %v401 = vmul.f32 %v391, %v399
    %402 = vrot.lane.b32.xlu0 %v217, 64
    %v403 = vpop.permute.xlu0 %402
    %v406 = vsel %vm228, %v400, 0
    %408 = vmatprep.subr.mxu0 0.0
    %409 = vmatpush1.msra.mxu0 0.0
    %410 = vmatprep.subr.mxu0 0.0
    %411 = vmatpush1.msra.mxu0 0.0
    %412 = vmatprep.subr.mxu0 0.0
    %413 = vmatpush1.msra.mxu0 0.0
    %414 = vmatprep.subr.mxu0 0.0
    %415 = vmatpush1.msra.mxu0 0.0
    %416 = vmatprep.subr.mxu0 0.0
    %417 = vmatpush1.msra.mxu0 0.0
    %418 = vmatprep.subr.mxu0 0.0
    %419 = vmatpush1.msra.mxu0 0.0
    %420 = vmatprep.subr.mxu0 0.0
    %421 = vmatpush1.msra.mxu0 0.0
    %422 = vmatprep.subr.mxu0 0.0
    %423 = vmatpush1.msra.mxu0 0.0
    %424 = vmatprep.subr.mxu0 0.0
    %425 = vmatpush1.msra.mxu0 0.0
    %426 = vmatprep.subr.mxu0 0.0
    %427 = vmatpush1.msra.mxu0 0.0
    %428 = vmatprep.subr.mxu0 0.0
    %429 = vmatpush1.msra.mxu0 0.0
    %430 = vmatprep.subr.mxu0 0.0
    %431 = vmatpush1.msra.mxu0 0.0
    %432 = vmatprep.subr.mxu0 0.0
    %433 = vmatpush1.msra.mxu0 0.0
    %434 = vmatprep.subr.mxu0 0.0
    %435 = vmatpush1.msra.mxu0 0.0
    %436 = vmatprep.subr.mxu0 0.0
    %437 = vmatpush1.msra.mxu0 0.0
    %438 = vmatprep.subr.mxu0 0.0
    %439 = vmatpush1.msra.mxu0 %v403
    %440 = vmatprep.subr.mxu0 0.0
    %441 = vmatpush2.msra.mxu0 0.0
    %442 = vmatprep.subr.mxu0 0.0
    %443 = vmatpush2.msra.mxu0 0.0
    %444 = vmatprep.subr.mxu0 0.0
    %445 = vmatpush2.msra.mxu0 0.0
    %446 = vmatprep.subr.mxu0 0.0
    %447 = vmatpush2.msra.mxu0 0.0
    %448 = vmatprep.subr.mxu0 0.0
    %449 = vmatpush2.msra.mxu0 0.0
    %450 = vmatprep.subr.mxu0 0.0
    %451 = vmatpush2.msra.mxu0 0.0
    %452 = vmatprep.subr.mxu0 0.0
    %453 = vmatpush2.msra.mxu0 0.0
    %454 = vmatprep.subr.mxu0 0.0
    %455 = vmatpush2.msra.mxu0 0.0
    %456 = vmatprep.subr.mxu0 0.0
    %457 = vmatpush2.msra.mxu0 0.0
    %458 = vmatprep.subr.mxu0 0.0
    %459 = vmatpush2.msra.mxu0 0.0
    %460 = vmatprep.subr.mxu0 0.0
    %461 = vmatpush2.msra.mxu0 0.0
    %462 = vmatprep.subr.mxu0 0.0
    %463 = vmatpush2.msra.mxu0 0.0
    %464 = vmatprep.subr.mxu0 0.0
    %465 = vmatpush2.msra.mxu0 0.0
    %466 = vmatprep.subr.mxu0 0.0
    %467 = vmatpush2.msra.mxu0 0.0
    %468 = vmatprep.subr.mxu0 0.0
    %469 = vmatpush2.msra.mxu0 0.0
    %470 = vmatprep.subr.mxu0 0.0
    %471 = vmatpush2.msra.mxu0 0.0
    %472 = vmatprep.mubr.f32.mxu0 0.0
    %473 = vmatmul.mubr.f32.gmra.mxu0 %v406
    %v474 = vpop.f32.mrf.mxu0
    %v475 = vadd.f32 0.0, %v474
    %v476 = vpop.f32.mrf.mxu0
    %477 = vdwg.mxu0
    %478 = vrot.lane.b32.xlu0 %v222, 64
    %v479 = vpop.permute.xlu0 %478
    %v482 = vsel %vm228, %v401, 0
    %484 = vmatprep.subr.mxu0 0.0
    %485 = vmatpush1.msra.mxu0 0.0
    %486 = vmatprep.subr.mxu0 0.0
    %487 = vmatpush1.msra.mxu0 0.0
    %488 = vmatprep.subr.mxu0 0.0
    %489 = vmatpush1.msra.mxu0 0.0
    %490 = vmatprep.subr.mxu0 0.0
    %491 = vmatpush1.msra.mxu0 0.0
    %492 = vmatprep.subr.mxu0 0.0
    %493 = vmatpush1.msra.mxu0 0.0
    %494 = vmatprep.subr.mxu0 0.0
    %495 = vmatpush1.msra.mxu0 0.0
    %496 = vmatprep.subr.mxu0 0.0
    %497 = vmatpush1.msra.mxu0 0.0
    %498 = vmatprep.subr.mxu0 0.0
    %499 = vmatpush1.msra.mxu0 0.0
    %500 = vmatprep.subr.mxu0 0.0
    %501 = vmatpush1.msra.mxu0 0.0
    %502 = vmatprep.subr.mxu0 0.0
    %503 = vmatpush1.msra.mxu0 0.0
    %504 = vmatprep.subr.mxu0 0.0
    %505 = vmatpush1.msra.mxu0 0.0
    %506 = vmatprep.subr.mxu0 0.0
    %507 = vmatpush1.msra.mxu0 0.0
    %508 = vmatprep.subr.mxu0 0.0
    %509 = vmatpush1.msra.mxu0 0.0
    %510 = vmatprep.subr.mxu0 0.0
    %511 = vmatpush1.msra.mxu0 0.0
    %512 = vmatprep.subr.mxu0 0.0
    %513 = vmatpush1.msra.mxu0 0.0
    %514 = vmatprep.subr.mxu0 0.0
    %515 = vmatpush1.msra.mxu0 %v479
    %516 = vmatprep.subr.mxu0 0.0
    %517 = vmatpush2.msra.mxu0 0.0
    %518 = vmatprep.subr.mxu0 0.0
    %519 = vmatpush2.msra.mxu0 0.0
    %520 = vmatprep.subr.mxu0 0.0
    %521 = vmatpush2.msra.mxu0 0.0
    %522 = vmatprep.subr.mxu0 0.0
    %523 = vmatpush2.msra.mxu0 0.0
    %524 = vmatprep.subr.mxu0 0.0
    %525 = vmatpush2.msra.mxu0 0.0
    %526 = vmatprep.subr.mxu0 0.0
    %527 = vmatpush2.msra.mxu0 0.0
    %528 = vmatprep.subr.mxu0 0.0
    %529 = vmatpush2.msra.mxu0 0.0
    %530 = vmatprep.subr.mxu0 0.0
    %531 = vmatpush2.msra.mxu0 0.0
    %532 = vmatprep.subr.mxu0 0.0
    %533 = vmatpush2.msra.mxu0 0.0
    %534 = vmatprep.subr.mxu0 0.0
    %535 = vmatpush2.msra.mxu0 0.0
    %536 = vmatprep.subr.mxu0 0.0
    %537 = vmatpush2.msra.mxu0 0.0
    %538 = vmatprep.subr.mxu0 0.0
    %539 = vmatpush2.msra.mxu0 0.0
    %540 = vmatprep.subr.mxu0 0.0
    %541 = vmatpush2.msra.mxu0 0.0
    %542 = vmatprep.subr.mxu0 0.0
    %543 = vmatpush2.msra.mxu0 0.0
    %544 = vmatprep.subr.mxu0 0.0
    %545 = vmatpush2.msra.mxu0 0.0
    %546 = vmatprep.subr.mxu0 0.0
    %547 = vmatpush2.msra.mxu0 0.0
    %548 = vmatprep.mubr.f32.mxu0 0.0
    %549 = vmatmul.mubr.f32.gmra.mxu0 %v482
    %v550 = vpop.f32.mrf.mxu0
    %v551 = vadd.f32 0.0, %v550
    %v552 = vpop.f32.mrf.mxu0
    %553 = vdwg.mxu0
    %v555 = vsel %vm228, %v475, 0
    %v558 = vsel %vm228, %v551, 0
    %560 = vmatprep.subr.mxu0 0.0
    %561 = vmatpush1.msra.mxu0 0.0
    %562 = vmatprep.subr.mxu0 0.0
    %563 = vmatpush1.msra.mxu0 0.0
    %564 = vmatprep.subr.mxu0 0.0
    %565 = vmatpush1.msra.mxu0 0.0
    %566 = vmatprep.subr.mxu0 0.0
    %567 = vmatpush1.msra.mxu0 0.0
    %568 = vmatprep.subr.mxu0 0.0
    %569 = vmatpush1.msra.mxu0 0.0
    %570 = vmatprep.subr.mxu0 0.0
    %571 = vmatpush1.msra.mxu0 0.0
    %572 = vmatprep.subr.mxu0 0.0
    %573 = vmatpush1.msra.mxu0 0.0
    %574 = vmatprep.subr.mxu0 0.0
    %575 = vmatpush1.msra.mxu0 0.0
    %576 = vmatprep.subr.mxu0 0.0
    %577 = vmatpush1.msra.mxu0 0.0
    %578 = vmatprep.subr.mxu0 0.0
    %579 = vmatpush1.msra.mxu0 0.0
    %580 = vmatprep.subr.mxu0 0.0
    %581 = vmatpush1.msra.mxu0 0.0
    %582 = vmatprep.subr.mxu0 0.0
    %583 = vmatpush1.msra.mxu0 0.0
    %584 = vmatprep.subr.mxu0 0.0
    %585 = vmatpush1.msra.mxu0 0.0
    %586 = vmatprep.subr.mxu0 0.0
    %587 = vmatpush1.msra.mxu0 0.0
    %588 = vmatprep.subr.mxu0 0.0
    %589 = vmatpush1.msra.mxu0 0.0
    %590 = vmatprep.subr.mxu0 0.0
    %591 = vmatpush1.msra.mxu0 %v77
    %592 = vmatprep.subr.mxu0 0.0
    %593 = vmatpush2.msra.mxu0 0.0
    %594 = vmatprep.subr.mxu0 0.0
    %595 = vmatpush2.msra.mxu0 0.0
    %596 = vmatprep.subr.mxu0 0.0
    %597 = vmatpush2.msra.mxu0 0.0
    %598 = vmatprep.subr.mxu0 0.0
    %599 = vmatpush2.msra.mxu0 0.0
    %600 = vmatprep.subr.mxu0 0.0
    %601 = vmatpush2.msra.mxu0 0.0
    %602 = vmatprep.subr.mxu0 0.0
    %603 = vmatpush2.msra.mxu0 0.0
    %604 = vmatprep.subr.mxu0 0.0
    %605 = vmatpush2.msra.mxu0 0.0
    %606 = vmatprep.subr.mxu0 0.0
    %607 = vmatpush2.msra.mxu0 0.0
    %608 = vmatprep.subr.mxu0 0.0
    %609 = vmatpush2.msra.mxu0 0.0
    %610 = vmatprep.subr.mxu0 0.0
    %611 = vmatpush2.msra.mxu0 0.0
    %612 = vmatprep.subr.mxu0 0.0
    %613 = vmatpush2.msra.mxu0 0.0
    %614 = vmatprep.subr.mxu0 0.0
    %615 = vmatpush2.msra.mxu0 0.0
    %616 = vmatprep.subr.mxu0 0.0
    %617 = vmatpush2.msra.mxu0 0.0
    %618 = vmatprep.subr.mxu0 0.0
    %619 = vmatpush2.msra.mxu0 0.0
    %620 = vmatprep.subr.mxu0 0.0
    %621 = vmatpush2.msra.mxu0 0.0
    %622 = vmatprep.subr.mxu0 0.0
    %623 = vmatpush2.msra.mxu0 0.0
    %624 = vmatprep.mubr.f32.mxu0 0.0
    %625 = vmatmul.mubr.f32.gmra.mxu0 %v555
    %v626 = vpop.f32.mrf.mxu0
    %v627 = vadd.f32 0.0, %v626
    %v628 = vpop.f32.mrf.mxu0
    %629 = vmatprep.mubr.f32.mxu0 0.0
    %630 = vmatmul.mubr.f32.gmra.mxu0 %v558
    %v631 = vpop.f32.mrf.mxu0
    %v632 = vadd.f32 0.0, %v631
    %v633 = vpop.f32.mrf.mxu0
    %634 = vdwg.mxu0
    %v635 = vadd.f32 %v86, %v627
    %v636 = vadd.f32 %v86, %v632
    %637 = vrot.lane.b32.xlu0 %v217, 120
    %v638 = vpop.permute.xlu0 %637
    %639 = vrot.lane.b32.xlu0 %v217, 88
    %v640 = vpop.permute.xlu0 %639
    %v641 = vsel %vm228, %v638, 0
    %v643 = vsel %vm228, %v640, 0
    %645 = vmatprep.subr.mxu0 0.0
    %646 = vmatpush1.xpose.msra.mxu0 0.0
    %647 = vmatprep.subr.mxu0 0.0
    %648 = vmatpush1.xpose.msra.mxu0 0.0
    %649 = vmatprep.subr.mxu0 0.0
    %650 = vmatpush1.xpose.msra.mxu0 0.0
    %651 = vmatprep.subr.mxu0 0.0
    %652 = vmatpush1.xpose.msra.mxu0 0.0
    %653 = vmatprep.subr.mxu0 0.0
    %654 = vmatpush1.xpose.msra.mxu0 0.0
    %655 = vmatprep.subr.mxu0 0.0
    %656 = vmatpush1.xpose.msra.mxu0 0.0
    %657 = vmatprep.subr.mxu0 0.0
    %658 = vmatpush1.xpose.msra.mxu0 0.0
    %659 = vmatprep.subr.mxu0 0.0
    %660 = vmatpush1.xpose.msra.mxu0 0.0
    %661 = vmatprep.subr.mxu0 0.0
    %662 = vmatpush1.xpose.msra.mxu0 0.0
    %663 = vmatprep.subr.mxu0 0.0
    %664 = vmatpush1.xpose.msra.mxu0 0.0
    %665 = vmatprep.subr.mxu0 0.0
    %666 = vmatpush1.xpose.msra.mxu0 0.0
    %667 = vmatprep.subr.mxu0 0.0
    %668 = vmatpush1.xpose.msra.mxu0 0.0
    %669 = vmatprep.subr.mxu0 0.0
    %670 = vmatpush1.xpose.msra.mxu0 0.0
    %671 = vmatprep.subr.mxu0 0.0
    %672 = vmatpush1.xpose.msra.mxu0 0.0
    %673 = vmatprep.subr.mxu0 0.0
    %674 = vmatpush1.xpose.msra.mxu0 0.0
    %675 = vmatprep.subr.mxu0 0.0
    %676 = vmatpush1.xpose.msra.mxu0 %v643
    %677 = vmatprep.subr.mxu0 0.0
    %678 = vmatpush2.xpose.msra.mxu0 0.0
    %679 = vmatprep.subr.mxu0 0.0
    %680 = vmatpush2.xpose.msra.mxu0 0.0
    %681 = vmatprep.subr.mxu0 0.0
    %682 = vmatpush2.xpose.msra.mxu0 0.0
    %683 = vmatprep.subr.mxu0 0.0
    %684 = vmatpush2.xpose.msra.mxu0 0.0
    %685 = vmatprep.subr.mxu0 0.0
    %686 = vmatpush2.xpose.msra.mxu0 0.0
    %687 = vmatprep.subr.mxu0 0.0
    %688 = vmatpush2.xpose.msra.mxu0 0.0
    %689 = vmatprep.subr.mxu0 0.0
    %690 = vmatpush2.xpose.msra.mxu0 0.0
    %691 = vmatprep.subr.mxu0 0.0
    %692 = vmatpush2.xpose.msra.mxu0 0.0
    %693 = vmatprep.subr.mxu0 0.0
    %694 = vmatpush2.xpose.msra.mxu0 0.0
    %695 = vmatprep.subr.mxu0 0.0
    %696 = vmatpush2.xpose.msra.mxu0 0.0
    %697 = vmatprep.subr.mxu0 0.0
    %698 = vmatpush2.xpose.msra.mxu0 0.0
    %699 = vmatprep.subr.mxu0 0.0
    %700 = vmatpush2.xpose.msra.mxu0 0.0
    %701 = vmatprep.subr.mxu0 0.0
    %702 = vmatpush2.xpose.msra.mxu0 0.0
    %703 = vmatprep.subr.mxu0 0.0
    %704 = vmatpush2.xpose.msra.mxu0 0.0
    %705 = vmatprep.subr.mxu0 0.0
    %706 = vmatpush2.xpose.msra.mxu0 0.0
    %707 = vmatprep.subr.mxu0 0.0
    %708 = vmatpush2.xpose.msra.mxu0 0.0
    %709 = vmatprep.mubr.f32.mxu0 0.0
    %710 = vmatmul.mubr.f32.gmra.mxu0 %v641
    %v711 = vpop.f32.mrf.mxu0
    %v712 = vadd.f32 %v93, %v711
    %v713 = vpop.f32.mrf.mxu0
    %714 = vdwg.mxu0
    %715 = vrot.lane.b32.xlu0 %v222, 120
    %v716 = vpop.permute.xlu0 %715
    %717 = vrot.lane.b32.xlu0 %v222, 88
    %v718 = vpop.permute.xlu0 %717
    %v719 = vsel %vm228, %v716, 0
    %v721 = vsel %vm228, %v718, 0
    %723 = vmatprep.subr.mxu0 0.0
    %724 = vmatpush1.xpose.msra.mxu0 0.0
    %725 = vmatprep.subr.mxu0 0.0
    %726 = vmatpush1.xpose.msra.mxu0 0.0
    %727 = vmatprep.subr.mxu0 0.0
    %728 = vmatpush1.xpose.msra.mxu0 0.0
    %729 = vmatprep.subr.mxu0 0.0
    %730 = vmatpush1.xpose.msra.mxu0 0.0
    %731 = vmatprep.subr.mxu0 0.0
    %732 = vmatpush1.xpose.msra.mxu0 0.0
    %733 = vmatprep.subr.mxu0 0.0
    %734 = vmatpush1.xpose.msra.mxu0 0.0
    %735 = vmatprep.subr.mxu0 0.0
    %736 = vmatpush1.xpose.msra.mxu0 0.0
    %737 = vmatprep.subr.mxu0 0.0
    %738 = vmatpush1.xpose.msra.mxu0 0.0
    %739 = vmatprep.subr.mxu0 0.0
    %740 = vmatpush1.xpose.msra.mxu0 0.0
    %741 = vmatprep.subr.mxu0 0.0
    %742 = vmatpush1.xpose.msra.mxu0 0.0
    %743 = vmatprep.subr.mxu0 0.0
    %744 = vmatpush1.xpose.msra.mxu0 0.0
    %745 = vmatprep.subr.mxu0 0.0
    %746 = vmatpush1.xpose.msra.mxu0 0.0
    %747 = vmatprep.subr.mxu0 0.0
    %748 = vmatpush1.xpose.msra.mxu0 0.0
    %749 = vmatprep.subr.mxu0 0.0
    %750 = vmatpush1.xpose.msra.mxu0 0.0
    %751 = vmatprep.subr.mxu0 0.0
    %752 = vmatpush1.xpose.msra.mxu0 0.0
    %753 = vmatprep.subr.mxu0 0.0
    %754 = vmatpush1.xpose.msra.mxu0 %v721
    %755 = vmatprep.subr.mxu0 0.0
    %756 = vmatpush2.xpose.msra.mxu0 0.0
    %757 = vmatprep.subr.mxu0 0.0
    %758 = vmatpush2.xpose.msra.mxu0 0.0
    %759 = vmatprep.subr.mxu0 0.0
    %760 = vmatpush2.xpose.msra.mxu0 0.0
    %761 = vmatprep.subr.mxu0 0.0
    %762 = vmatpush2.xpose.msra.mxu0 0.0
    %763 = vmatprep.subr.mxu0 0.0
    %764 = vmatpush2.xpose.msra.mxu0 0.0
    %765 = vmatprep.subr.mxu0 0.0
    %766 = vmatpush2.xpose.msra.mxu0 0.0
    %767 = vmatprep.subr.mxu0 0.0
    %768 = vmatpush2.xpose.msra.mxu0 0.0
    %769 = vmatprep.subr.mxu0 0.0
    %770 = vmatpush2.xpose.msra.mxu0 0.0
    %771 = vmatprep.subr.mxu0 0.0
    %772 = vmatpush2.xpose.msra.mxu0 0.0
    %773 = vmatprep.subr.mxu0 0.0
    %774 = vmatpush2.xpose.msra.mxu0 0.0
    %775 = vmatprep.subr.mxu0 0.0
    %776 = vmatpush2.xpose.msra.mxu0 0.0
    %777 = vmatprep.subr.mxu0 0.0
    %778 = vmatpush2.xpose.msra.mxu0 0.0
    %779 = vmatprep.subr.mxu0 0.0
    %780 = vmatpush2.xpose.msra.mxu0 0.0
    %781 = vmatprep.subr.mxu0 0.0
    %782 = vmatpush2.xpose.msra.mxu0 0.0
    %783 = vmatprep.subr.mxu0 0.0
    %784 = vmatpush2.xpose.msra.mxu0 0.0
    %785 = vmatprep.subr.mxu0 0.0
    %786 = vmatpush2.xpose.msra.mxu0 0.0
    %787 = vmatprep.mubr.f32.mxu0 0.0
    %788 = vmatmul.mubr.f32.gmra.mxu0 %v719
    %v789 = vpop.f32.mrf.mxu0
    %v790 = vadd.f32 %v93, %v789
    %v791 = vpop.f32.mrf.mxu0
    %792 = vdwg.mxu0
    %v793 = vsel %vm228, %v712, -inf
    %794 = vmax.xlane.f32.xlu0 %v793
    %v795 = vpop.xlane.xlu0 %794
    %v796 = vsel %vm228, %v790, -inf
    %797 = vmax.xlane.f32.xlu0 %v796
    %v798 = vpop.xlane.xlu0 %797
    %v799 = vsub.f32 %v712, %v795
    %v800 = vsub.f32 %v790, %v798
    %v801 = vmul.f32 %v799, 1.442695
    %v802 = vpow.pop %v801
    %v803 = vmul.f32 %v800, 1.442695
    %v804 = vpow.pop %v803
    %v805 = vsel %vm228, %v802, 0.0
    %806 = vadd.xlane.f32.xlu0 %v805
    %v807 = vpop.xlane.xlu0 %806
    %v808 = vsel %vm228, %v804, 0.0
    %809 = vadd.xlane.f32.xlu0 %v808
    %v810 = vpop.xlane.xlu0 %809
    %v811 = vrcp.pop %v807
    %v812 = vrcp.pop %v810
    %v813 = vmul.f32 %v802, %v811
    %v814 = vmul.f32 %v804, %v812
    %815 = vrot.lane.b32.xlu0 %v217, 56
    %v816 = vpop.permute.xlu0 %815
    %v819 = vsel %vm228, %v813, 0
    %821 = vmatprep.subr.mxu0 0.0
    %822 = vmatpush1.msra.mxu0 0.0
    %823 = vmatprep.subr.mxu0 0.0
    %824 = vmatpush1.msra.mxu0 0.0
    %825 = vmatprep.subr.mxu0 0.0
    %826 = vmatpush1.msra.mxu0 0.0
    %827 = vmatprep.subr.mxu0 0.0
    %828 = vmatpush1.msra.mxu0 0.0
    %829 = vmatprep.subr.mxu0 0.0
    %830 = vmatpush1.msra.mxu0 0.0
    %831 = vmatprep.subr.mxu0 0.0
    %832 = vmatpush1.msra.mxu0 0.0
    %833 = vmatprep.subr.mxu0 0.0
    %834 = vmatpush1.msra.mxu0 0.0
    %835 = vmatprep.subr.mxu0 0.0
    %836 = vmatpush1.msra.mxu0 0.0
    %837 = vmatprep.subr.mxu0 0.0
    %838 = vmatpush1.msra.mxu0 0.0
    %839 = vmatprep.subr.mxu0 0.0
    %840 = vmatpush1.msra.mxu0 0.0
    %841 = vmatprep.subr.mxu0 0.0
    %842 = vmatpush1.msra.mxu0 0.0
    %843 = vmatprep.subr.mxu0 0.0
    %844 = vmatpush1.msra.mxu0 0.0
    %845 = vmatprep.subr.mxu0 0.0
    %846 = vmatpush1.msra.mxu0 0.0
    %847 = vmatprep.subr.mxu0 0.0
    %848 = vmatpush1.msra.mxu0 0.0
    %849 = vmatprep.subr.mxu0 0.0
    %850 = vmatpush1.msra.mxu0 0.0
    %851 = vmatprep.subr.mxu0 0.0
    %852 = vmatpush1.msra.mxu0 %v816
    %853 = vmatprep.subr.mxu0 0.0
    %854 = vmatpush2.msra.mxu0 0.0
    %855 = vmatprep.subr.mxu0 0.0
    %856 = vmatpush2.msra.mxu0 0.0
    %857 = vmatprep.subr.mxu0 0.0
    %858 = vmatpush2.msra.mxu0 0.0
    %859 = vmatprep.subr.mxu0 0.0
    %860 = vmatpush2.msra.mxu0 0.0
    %861 = vmatprep.subr.mxu0 0.0
    %862 = vmatpush2.msra.mxu0 0.0
    %863 = vmatprep.subr.mxu0 0.0
    %864 = vmatpush2.msra.mxu0 0.0
    %865 = vmatprep.subr.mxu0 0.0
    %866 = vmatpush2.msra.mxu0 0.0
    %867 = vmatprep.subr.mxu0 0.0
    %868 = vmatpush2.msra.mxu0 0.0
    %869 = vmatprep.subr.mxu0 0.0
    %870 = vmatpush2.msra.mxu0 0.0
    %871 = vmatprep.subr.mxu0 0.0
    %872 = vmatpush2.msra.mxu0 0.0
    %873 = vmatprep.subr.mxu0 0.0
    %874 = vmatpush2.msra.mxu0 0.0
    %875 = vmatprep.subr.mxu0 0.0
    %876 = vmatpush2.msra.mxu0 0.0
    %877 = vmatprep.subr.mxu0 0.0
    %878 = vmatpush2.msra.mxu0 0.0
    %879 = vmatprep.subr.mxu0 0.0
    %880 = vmatpush2.msra.mxu0 0.0
    %881 = vmatprep.subr.mxu0 0.0
    %882 = vmatpush2.msra.mxu0 0.0
    %883 = vmatprep.subr.mxu0 0.0
    %884 = vmatpush2.msra.mxu0 0.0
    %885 = vmatprep.mubr.f32.mxu0 0.0
    %886 = vmatmul.mubr.f32.gmra.mxu0 %v819
    %v887 = vpop.f32.mrf.mxu0
    %v888 = vadd.f32 0.0, %v887
    %v889 = vpop.f32.mrf.mxu0
    %890 = vdwg.mxu0
    %891 = vrot.lane.b32.xlu0 %v222, 56
    %v892 = vpop.permute.xlu0 %891
    %v895 = vsel %vm228, %v814, 0
    %897 = vmatprep.subr.mxu0 0.0
    %898 = vmatpush1.msra.mxu0 0.0
    %899 = vmatprep.subr.mxu0 0.0
    %900 = vmatpush1.msra.mxu0 0.0
    %901 = vmatprep.subr.mxu0 0.0
    %902 = vmatpush1.msra.mxu0 0.0
    %903 = vmatprep.subr.mxu0 0.0
    %904 = vmatpush1.msra.mxu0 0.0
    %905 = vmatprep.subr.mxu0 0.0
    %906 = vmatpush1.msra.mxu0 0.0
    %907 = vmatprep.subr.mxu0 0.0
    %908 = vmatpush1.msra.mxu0 0.0
    %909 = vmatprep.subr.mxu0 0.0
    %910 = vmatpush1.msra.mxu0 0.0
    %911 = vmatprep.subr.mxu0 0.0
    %912 = vmatpush1.msra.mxu0 0.0
    %913 = vmatprep.subr.mxu0 0.0
    %914 = vmatpush1.msra.mxu0 0.0
    %915 = vmatprep.subr.mxu0 0.0
    %916 = vmatpush1.msra.mxu0 0.0
    %917 = vmatprep.subr.mxu0 0.0
    %918 = vmatpush1.msra.mxu0 0.0
    %919 = vmatprep.subr.mxu0 0.0
    %920 = vmatpush1.msra.mxu0 0.0
    %921 = vmatprep.subr.mxu0 0.0
    %922 = vmatpush1.msra.mxu0 0.0
    %923 = vmatprep.subr.mxu0 0.0
    %924 = vmatpush1.msra.mxu0 0.0
    %925 = vmatprep.subr.mxu0 0.0
    %926 = vmatpush1.msra.mxu0 0.0
    %927 = vmatprep.subr.mxu0 0.0
    %928 = vmatpush1.msra.mxu0 %v892
    %929 = vmatprep.subr.mxu0 0.0
    %930 = vmatpush2.msra.mxu0 0.0
    %931 = vmatprep.subr.mxu0 0.0
    %932 = vmatpush2.msra.mxu0 0.0
    %933 = vmatprep.subr.mxu0 0.0
    %934 = vmatpush2.msra.mxu0 0.0
    %935 = vmatprep.subr.mxu0 0.0
    %936 = vmatpush2.msra.mxu0 0.0
    %937 = vmatprep.subr.mxu0 0.0
    %938 = vmatpush2.msra.mxu0 0.0
    %939 = vmatprep.subr.mxu0 0.0
    %940 = vmatpush2.msra.mxu0 0.0
    %941 = vmatprep.subr.mxu0 0.0
    %942 = vmatpush2.msra.mxu0 0.0
    %943 = vmatprep.subr.mxu0 0.0
    %944 = vmatpush2.msra.mxu0 0.0
    %945 = vmatprep.subr.mxu0 0.0
    %946 = vmatpush2.msra.mxu0 0.0
    %947 = vmatprep.subr.mxu0 0.0
    %948 = vmatpush2.msra.mxu0 0.0
    %949 = vmatprep.subr.mxu0 0.0
    %950 = vmatpush2.msra.mxu0 0.0
    %951 = vmatprep.subr.mxu0 0.0
    %952 = vmatpush2.msra.mxu0 0.0
    %953 = vmatprep.subr.mxu0 0.0
    %954 = vmatpush2.msra.mxu0 0.0
    %955 = vmatprep.subr.mxu0 0.0
    %956 = vmatpush2.msra.mxu0 0.0
    %957 = vmatprep.subr.mxu0 0.0
    %958 = vmatpush2.msra.mxu0 0.0
    %959 = vmatprep.subr.mxu0 0.0
    %960 = vmatpush2.msra.mxu0 0.0
    %961 = vmatprep.mubr.f32.mxu0 0.0
    %962 = vmatmul.mubr.f32.gmra.mxu0 %v895
    %v963 = vpop.f32.mrf.mxu0
    %v964 = vadd.f32 0.0, %v963
    %v965 = vpop.f32.mrf.mxu0
    %966 = vdwg.mxu0
    %v968 = vsel %vm228, %v888, 0
    %v971 = vsel %vm228, %v964, 0
    %973 = vmatprep.subr.mxu0 0.0
    %974 = vmatpush1.msra.mxu0 0.0
    %975 = vmatprep.subr.mxu0 0.0
    %976 = vmatpush1.msra.mxu0 0.0
    %977 = vmatprep.subr.mxu0 0.0
    %978 = vmatpush1.msra.mxu0 0.0
    %979 = vmatprep.subr.mxu0 0.0
    %980 = vmatpush1.msra.mxu0 0.0
    %981 = vmatprep.subr.mxu0 0.0
    %982 = vmatpush1.msra.mxu0 0.0
    %983 = vmatprep.subr.mxu0 0.0
    %984 = vmatpush1.msra.mxu0 0.0
    %985 = vmatprep.subr.mxu0 0.0
    %986 = vmatpush1.msra.mxu0 0.0
    %987 = vmatprep.subr.mxu0 0.0
    %988 = vmatpush1.msra.mxu0 0.0
    %989 = vmatprep.subr.mxu0 0.0
    %990 = vmatpush1.msra.mxu0 0.0
    %991 = vmatprep.subr.mxu0 0.0
    %992 = vmatpush1.msra.mxu0 0.0
    %993 = vmatprep.subr.mxu0 0.0
    %994 = vmatpush1.msra.mxu0 0.0
    %995 = vmatprep.subr.mxu0 0.0
    %996 = vmatpush1.msra.mxu0 0.0
    %997 = vmatprep.subr.mxu0 0.0
    %998 = vmatpush1.msra.mxu0 0.0
    %999 = vmatprep.subr.mxu0 0.0
    %1000 = vmatpush1.msra.mxu0 0.0
    %1001 = vmatprep.subr.mxu0 0.0
    %1002 = vmatpush1.msra.mxu0 0.0
    %1003 = vmatprep.subr.mxu0 0.0
    %1004 = vmatpush1.msra.mxu0 %v78
    %1005 = vmatprep.subr.mxu0 0.0
    %1006 = vmatpush2.msra.mxu0 0.0
    %1007 = vmatprep.subr.mxu0 0.0
    %1008 = vmatpush2.msra.mxu0 0.0
    %1009 = vmatprep.subr.mxu0 0.0
    %1010 = vmatpush2.msra.mxu0 0.0
    %1011 = vmatprep.subr.mxu0 0.0
    %1012 = vmatpush2.msra.mxu0 0.0
    %1013 = vmatprep.subr.mxu0 0.0
    %1014 = vmatpush2.msra.mxu0 0.0
    %1015 = vmatprep.subr.mxu0 0.0
    %1016 = vmatpush2.msra.mxu0 0.0
    %1017 = vmatprep.subr.mxu0 0.0
    %1018 = vmatpush2.msra.mxu0 0.0
    %1019 = vmatprep.subr.mxu0 0.0
    %1020 = vmatpush2.msra.mxu0 0.0
    %1021 = vmatprep.subr.mxu0 0.0
    %1022 = vmatpush2.msra.mxu0 0.0
    %1023 = vmatprep.subr.mxu0 0.0
    %1024 = vmatpush2.msra.mxu0 0.0
    %1025 = vmatprep.subr.mxu0 0.0
    %1026 = vmatpush2.msra.mxu0 0.0
    %1027 = vmatprep.subr.mxu0 0.0
    %1028 = vmatpush2.msra.mxu0 0.0
    %1029 = vmatprep.subr.mxu0 0.0
    %1030 = vmatpush2.msra.mxu0 0.0
    %1031 = vmatprep.subr.mxu0 0.0
    %1032 = vmatpush2.msra.mxu0 0.0
    %1033 = vmatprep.subr.mxu0 0.0
    %1034 = vmatpush2.msra.mxu0 0.0
    %1035 = vmatprep.subr.mxu0 0.0
    %1036 = vmatpush2.msra.mxu0 0.0
    %1037 = vmatprep.mubr.f32.mxu0 0.0
    %1038 = vmatmul.mubr.f32.gmra.mxu0 %v968
    %v1039 = vpop.f32.mrf.mxu0
    %v1040 = vadd.f32 0.0, %v1039
    %v1041 = vpop.f32.mrf.mxu0
    %1042 = vmatprep.mubr.f32.mxu0 0.0
    %1043 = vmatmul.mubr.f32.gmra.mxu0 %v971
    %v1044 = vpop.f32.mrf.mxu0
    %v1045 = vadd.f32 0.0, %v1044
    %v1046 = vpop.f32.mrf.mxu0
    %1047 = vdwg.mxu0
    %v1048 = vadd.f32 %v635, %v1040
    %v1049 = vadd.f32 %v636, %v1045
    %1050 = vrot.lane.b32.xlu0 %v217, 112
    %v1051 = vpop.permute.xlu0 %1050
    %1052 = vrot.lane.b32.xlu0 %v217, 80
    %v1053 = vpop.permute.xlu0 %1052
    %v1054 = vsel %vm228, %v1051, 0
    %v1056 = vsel %vm228, %v1053, 0
    %1058 = vmatprep.subr.mxu0 0.0
    %1059 = vmatpush1.xpose.msra.mxu0 0.0
    %1060 = vmatprep.subr.mxu0 0.0
    %1061 = vmatpush1.xpose.msra.mxu0 0.0
    %1062 = vmatprep.subr.mxu0 0.0
    %1063 = vmatpush1.xpose.msra.mxu0 0.0
    %1064 = vmatprep.subr.mxu0 0.0
    %1065 = vmatpush1.xpose.msra.mxu0 0.0
    %1066 = vmatprep.subr.mxu0 0.0
    %1067 = vmatpush1.xpose.msra.mxu0 0.0
    %1068 = vmatprep.subr.mxu0 0.0
    %1069 = vmatpush1.xpose.msra.mxu0 0.0
    %1070 = vmatprep.subr.mxu0 0.0
    %1071 = vmatpush1.xpose.msra.mxu0 0.0
    %1072 = vmatprep.subr.mxu0 0.0
    %1073 = vmatpush1.xpose.msra.mxu0 0.0
    %1074 = vmatprep.subr.mxu0 0.0
    %1075 = vmatpush1.xpose.msra.mxu0 0.0
    %1076 = vmatprep.subr.mxu0 0.0
    %1077 = vmatpush1.xpose.msra.mxu0 0.0
    %1078 = vmatprep.subr.mxu0 0.0
    %1079 = vmatpush1.xpose.msra.mxu0 0.0
    %1080 = vmatprep.subr.mxu0 0.0
    %1081 = vmatpush1.xpose.msra.mxu0 0.0
    %1082 = vmatprep.subr.mxu0 0.0
    %1083 = vmatpush1.xpose.msra.mxu0 0.0
    %1084 = vmatprep.subr.mxu0 0.0
    %1085 = vmatpush1.xpose.msra.mxu0 0.0
    %1086 = vmatprep.subr.mxu0 0.0
    %1087 = vmatpush1.xpose.msra.mxu0 0.0
    %1088 = vmatprep.subr.mxu0 0.0
    %1089 = vmatpush1.xpose.msra.mxu0 %v1056
    %1090 = vmatprep.subr.mxu0 0.0
    %1091 = vmatpush2.xpose.msra.mxu0 0.0
    %1092 = vmatprep.subr.mxu0 0.0
    %1093 = vmatpush2.xpose.msra.mxu0 0.0
    %1094 = vmatprep.subr.mxu0 0.0
    %1095 = vmatpush2.xpose.msra.mxu0 0.0
    %1096 = vmatprep.subr.mxu0 0.0
    %1097 = vmatpush2.xpose.msra.mxu0 0.0
    %1098 = vmatprep.subr.mxu0 0.0
    %1099 = vmatpush2.xpose.msra.mxu0 0.0
    %1100 = vmatprep.subr.mxu0 0.0
    %1101 = vmatpush2.xpose.msra.mxu0 0.0
    %1102 = vmatprep.subr.mxu0 0.0
    %1103 = vmatpush2.xpose.msra.mxu0 0.0
    %1104 = vmatprep.subr.mxu0 0.0
    %1105 = vmatpush2.xpose.msra.mxu0 0.0
    %1106 = vmatprep.subr.mxu0 0.0
    %1107 = vmatpush2.xpose.msra.mxu0 0.0
    %1108 = vmatprep.subr.mxu0 0.0
    %1109 = vmatpush2.xpose.msra.mxu0 0.0
    %1110 = vmatprep.subr.mxu0 0.0
    %1111 = vmatpush2.xpose.msra.mxu0 0.0
    %1112 = vmatprep.subr.mxu0 0.0
    %1113 = vmatpush2.xpose.msra.mxu0 0.0
    %1114 = vmatprep.subr.mxu0 0.0
    %1115 = vmatpush2.xpose.msra.mxu0 0.0
    %1116 = vmatprep.subr.mxu0 0.0
    %1117 = vmatpush2.xpose.msra.mxu0 0.0
    %1118 = vmatprep.subr.mxu0 0.0
    %1119 = vmatpush2.xpose.msra.mxu0 0.0
    %1120 = vmatprep.subr.mxu0 0.0
    %1121 = vmatpush2.xpose.msra.mxu0 0.0
    %1122 = vmatprep.mubr.f32.mxu0 0.0
    %1123 = vmatmul.mubr.f32.gmra.mxu0 %v1054
    %v1124 = vpop.f32.mrf.mxu0
    %v1125 = vadd.f32 %v93, %v1124
    %v1126 = vpop.f32.mrf.mxu0
    %1127 = vdwg.mxu0
    %1128 = vrot.lane.b32.xlu0 %v222, 112
    %v1129 = vpop.permute.xlu0 %1128
    %1130 = vrot.lane.b32.xlu0 %v222, 80
    %v1131 = vpop.permute.xlu0 %1130
    %v1132 = vsel %vm228, %v1129, 0
    %v1134 = vsel %vm228, %v1131, 0
    %1136 = vmatprep.subr.mxu0 0.0
    %1137 = vmatpush1.xpose.msra.mxu0 0.0
    %1138 = vmatprep.subr.mxu0 0.0
    %1139 = vmatpush1.xpose.msra.mxu0 0.0
    %1140 = vmatprep.subr.mxu0 0.0
    %1141 = vmatpush1.xpose.msra.mxu0 0.0
    %1142 = vmatprep.subr.mxu0 0.0
    %1143 = vmatpush1.xpose.msra.mxu0 0.0
    %1144 = vmatprep.subr.mxu0 0.0
    %1145 = vmatpush1.xpose.msra.mxu0 0.0
    %1146 = vmatprep.subr.mxu0 0.0
    %1147 = vmatpush1.xpose.msra.mxu0 0.0
    %1148 = vmatprep.subr.mxu0 0.0
    %1149 = vmatpush1.xpose.msra.mxu0 0.0
    %1150 = vmatprep.subr.mxu0 0.0
    %1151 = vmatpush1.xpose.msra.mxu0 0.0
    %1152 = vmatprep.subr.mxu0 0.0
    %1153 = vmatpush1.xpose.msra.mxu0 0.0
    %1154 = vmatprep.subr.mxu0 0.0
    %1155 = vmatpush1.xpose.msra.mxu0 0.0
    %1156 = vmatprep.subr.mxu0 0.0
    %1157 = vmatpush1.xpose.msra.mxu0 0.0
    %1158 = vmatprep.subr.mxu0 0.0
    %1159 = vmatpush1.xpose.msra.mxu0 0.0
    %1160 = vmatprep.subr.mxu0 0.0
    %1161 = vmatpush1.xpose.msra.mxu0 0.0
    %1162 = vmatprep.subr.mxu0 0.0
    %1163 = vmatpush1.xpose.msra.mxu0 0.0
    %1164 = vmatprep.subr.mxu0 0.0
    %1165 = vmatpush1.xpose.msra.mxu0 0.0
    %1166 = vmatprep.subr.mxu0 0.0
    %1167 = vmatpush1.xpose.msra.mxu0 %v1134
    %1168 = vmatprep.subr.mxu0 0.0
    %1169 = vmatpush2.xpose.msra.mxu0 0.0
    %1170 = vmatprep.subr.mxu0 0.0
    %1171 = vmatpush2.xpose.msra.mxu0 0.0
    %1172 = vmatprep.subr.mxu0 0.0
    %1173 = vmatpush2.xpose.msra.mxu0 0.0
    %1174 = vmatprep.subr.mxu0 0.0
    %1175 = vmatpush2.xpose.msra.mxu0 0.0
    %1176 = vmatprep.subr.mxu0 0.0
    %1177 = vmatpush2.xpose.msra.mxu0 0.0
    %1178 = vmatprep.subr.mxu0 0.0
    %1179 = vmatpush2.xpose.msra.mxu0 0.0
    %1180 = vmatprep.subr.mxu0 0.0
    %1181 = vmatpush2.xpose.msra.mxu0 0.0
    %1182 = vmatprep.subr.mxu0 0.0
    %1183 = vmatpush2.xpose.msra.mxu0 0.0
    %1184 = vmatprep.subr.mxu0 0.0
    %1185 = vmatpush2.xpose.msra.mxu0 0.0
    %1186 = vmatprep.subr.mxu0 0.0
    %1187 = vmatpush2.xpose.msra.mxu0 0.0
    %1188 = vmatprep.subr.mxu0 0.0
    %1189 = vmatpush2.xpose.msra.mxu0 0.0
    %1190 = vmatprep.subr.mxu0 0.0
    %1191 = vmatpush2.xpose.msra.mxu0 0.0
    %1192 = vmatprep.subr.mxu0 0.0
    %1193 = vmatpush2.xpose.msra.mxu0 0.0
    %1194 = vmatprep.subr.mxu0 0.0
    %1195 = vmatpush2.xpose.msra.mxu0 0.0
    %1196 = vmatprep.subr.mxu0 0.0
    %1197 = vmatpush2.xpose.msra.mxu0 0.0
    %1198 = vmatprep.subr.mxu0 0.0
    %1199 = vmatpush2.xpose.msra.mxu0 0.0
    %1200 = vmatprep.mubr.f32.mxu0 0.0
    %1201 = vmatmul.mubr.f32.gmra.mxu0 %v1132
    %v1202 = vpop.f32.mrf.mxu0
    %v1203 = vadd.f32 %v93, %v1202
    %v1204 = vpop.f32.mrf.mxu0
    %1205 = vdwg.mxu0
    %v1206 = vsel %vm228, %v1125, -inf
    %1207 = vmax.xlane.f32.xlu0 %v1206
    %v1208 = vpop.xlane.xlu0 %1207
    %v1209 = vsel %vm228, %v1203, -inf
    %1210 = vmax.xlane.f32.xlu0 %v1209
    %v1211 = vpop.xlane.xlu0 %1210
    %v1212 = vsub.f32 %v1125, %v1208
    %v1213 = vsub.f32 %v1203, %v1211
    %v1214 = vmul.f32 %v1212, 1.442695
    %v1215 = vpow.pop %v1214
    %v1216 = vmul.f32 %v1213, 1.442695
    %v1217 = vpow.pop %v1216
    %v1218 = vsel %vm228, %v1215, 0.0
    %1219 = vadd.xlane.f32.xlu0 %v1218
    %v1220 = vpop.xlane.xlu0 %1219
    %v1221 = vsel %vm228, %v1217, 0.0
    %1222 = vadd.xlane.f32.xlu0 %v1221
    %v1223 = vpop.xlane.xlu0 %1222
    %v1224 = vrcp.pop %v1220
    %v1225 = vrcp.pop %v1223
    %v1226 = vmul.f32 %v1215, %v1224
    %v1227 = vmul.f32 %v1217, %v1225
    %1228 = vrot.lane.b32.xlu0 %v217, 48
    %v1229 = vpop.permute.xlu0 %1228
    %v1232 = vsel %vm228, %v1226, 0
    %1234 = vmatprep.subr.mxu0 0.0
    %1235 = vmatpush1.msra.mxu0 0.0
    %1236 = vmatprep.subr.mxu0 0.0
    %1237 = vmatpush1.msra.mxu0 0.0
    %1238 = vmatprep.subr.mxu0 0.0
    %1239 = vmatpush1.msra.mxu0 0.0
    %1240 = vmatprep.subr.mxu0 0.0
    %1241 = vmatpush1.msra.mxu0 0.0
    %1242 = vmatprep.subr.mxu0 0.0
    %1243 = vmatpush1.msra.mxu0 0.0
    %1244 = vmatprep.subr.mxu0 0.0
    %1245 = vmatpush1.msra.mxu0 0.0
    %1246 = vmatprep.subr.mxu0 0.0
    %1247 = vmatpush1.msra.mxu0 0.0
    %1248 = vmatprep.subr.mxu0 0.0
    %1249 = vmatpush1.msra.mxu0 0.0
    %1250 = vmatprep.subr.mxu0 0.0
    %1251 = vmatpush1.msra.mxu0 0.0
    %1252 = vmatprep.subr.mxu0 0.0
    %1253 = vmatpush1.msra.mxu0 0.0
    %1254 = vmatprep.subr.mxu0 0.0
    %1255 = vmatpush1.msra.mxu0 0.0
    %1256 = vmatprep.subr.mxu0 0.0
    %1257 = vmatpush1.msra.mxu0 0.0
    %1258 = vmatprep.subr.mxu0 0.0
    %1259 = vmatpush1.msra.mxu0 0.0
    %1260 = vmatprep.subr.mxu0 0.0
    %1261 = vmatpush1.msra.mxu0 0.0
    %1262 = vmatprep.subr.mxu0 0.0
    %1263 = vmatpush1.msra.mxu0 0.0
    %1264 = vmatprep.subr.mxu0 0.0
    %1265 = vmatpush1.msra.mxu0 %v1229
    %1266 = vmatprep.subr.mxu0 0.0
    %1267 = vmatpush2.msra.mxu0 0.0
    %1268 = vmatprep.subr.mxu0 0.0
    %1269 = vmatpush2.msra.mxu0 0.0
    %1270 = vmatprep.subr.mxu0 0.0
    %1271 = vmatpush2.msra.mxu0 0.0
    %1272 = vmatprep.subr.mxu0 0.0
    %1273 = vmatpush2.msra.mxu0 0.0
    %1274 = vmatprep.subr.mxu0 0.0
    %1275 = vmatpush2.msra.mxu0 0.0
    %1276 = vmatprep.subr.mxu0 0.0
    %1277 = vmatpush2.msra.mxu0 0.0
    %1278 = vmatprep.subr.mxu0 0.0
    %1279 = vmatpush2.msra.mxu0 0.0
    %1280 = vmatprep.subr.mxu0 0.0
    %1281 = vmatpush2.msra.mxu0 0.0
    %1282 = vmatprep.subr.mxu0 0.0
    %1283 = vmatpush2.msra.mxu0 0.0
    %1284 = vmatprep.subr.mxu0 0.0
    %1285 = vmatpush2.msra.mxu0 0.0
    %1286 = vmatprep.subr.mxu0 0.0
    %1287 = vmatpush2.msra.mxu0 0.0
    %1288 = vmatprep.subr.mxu0 0.0
    %1289 = vmatpush2.msra.mxu0 0.0
    %1290 = vmatprep.subr.mxu0 0.0
    %1291 = vmatpush2.msra.mxu0 0.0
    %1292 = vmatprep.subr.mxu0 0.0
    %1293 = vmatpush2.msra.mxu0 0.0
    %1294 = vmatprep.subr.mxu0 0.0
    %1295 = vmatpush2.msra.mxu0 0.0
    %1296 = vmatprep.subr.mxu0 0.0
    %1297 = vmatpush2.msra.mxu0 0.0
    %1298 = vmatprep.mubr.f32.mxu0 0.0
    %1299 = vmatmul.mubr.f32.gmra.mxu0 %v1232
    %v1300 = vpop.f32.mrf.mxu0
    %v1301 = vadd.f32 0.0, %v1300
    %v1302 = vpop.f32.mrf.mxu0
    %1303 = vdwg.mxu0
    %1304 = vrot.lane.b32.xlu0 %v222, 48
    %v1305 = vpop.permute.xlu0 %1304
    %v1308 = vsel %vm228, %v1227, 0
    %1310 = vmatprep.subr.mxu0 0.0
    %1311 = vmatpush1.msra.mxu0 0.0
    %1312 = vmatprep.subr.mxu0 0.0
    %1313 = vmatpush1.msra.mxu0 0.0
    %1314 = vmatprep.subr.mxu0 0.0
    %1315 = vmatpush1.msra.mxu0 0.0
    %1316 = vmatprep.subr.mxu0 0.0
    %1317 = vmatpush1.msra.mxu0 0.0
    %1318 = vmatprep.subr.mxu0 0.0
    %1319 = vmatpush1.msra.mxu0 0.0
    %1320 = vmatprep.subr.mxu0 0.0
    %1321 = vmatpush1.msra.mxu0 0.0
    %1322 = vmatprep.subr.mxu0 0.0
    %1323 = vmatpush1.msra.mxu0 0.0
    %1324 = vmatprep.subr.mxu0 0.0
    %1325 = vmatpush1.msra.mxu0 0.0
    %1326 = vmatprep.subr.mxu0 0.0
    %1327 = vmatpush1.msra.mxu0 0.0
    %1328 = vmatprep.subr.mxu0 0.0
    %1329 = vmatpush1.msra.mxu0 0.0
    %1330 = vmatprep.subr.mxu0 0.0
    %1331 = vmatpush1.msra.mxu0 0.0
    %1332 = vmatprep.subr.mxu0 0.0
    %1333 = vmatpush1.msra.mxu0 0.0
    %1334 = vmatprep.subr.mxu0 0.0
    %1335 = vmatpush1.msra.mxu0 0.0
    %1336 = vmatprep.subr.mxu0 0.0
    %1337 = vmatpush1.msra.mxu0 0.0
    %1338 = vmatprep.subr.mxu0 0.0
    %1339 = vmatpush1.msra.mxu0 0.0
    %1340 = vmatprep.subr.mxu0 0.0
    %1341 = vmatpush1.msra.mxu0 %v1305
    %1342 = vmatprep.subr.mxu0 0.0
    %1343 = vmatpush2.msra.mxu0 0.0
    %1344 = vmatprep.subr.mxu0 0.0
    %1345 = vmatpush2.msra.mxu0 0.0
    %1346 = vmatprep.subr.mxu0 0.0
    %1347 = vmatpush2.msra.mxu0 0.0
    %1348 = vmatprep.subr.mxu0 0.0
    %1349 = vmatpush2.msra.mxu0 0.0
    %1350 = vmatprep.subr.mxu0 0.0
    %1351 = vmatpush2.msra.mxu0 0.0
    %1352 = vmatprep.subr.mxu0 0.0
    %1353 = vmatpush2.msra.mxu0 0.0
    %1354 = vmatprep.subr.mxu0 0.0
    %1355 = vmatpush2.msra.mxu0 0.0
    %1356 = vmatprep.subr.mxu0 0.0
    %1357 = vmatpush2.msra.mxu0 0.0
    %1358 = vmatprep.subr.mxu0 0.0
    %1359 = vmatpush2.msra.mxu0 0.0
    %1360 = vmatprep.subr.mxu0 0.0
    %1361 = vmatpush2.msra.mxu0 0.0
    %1362 = vmatprep.subr.mxu0 0.0
    %1363 = vmatpush2.msra.mxu0 0.0
    %1364 = vmatprep.subr.mxu0 0.0
    %1365 = vmatpush2.msra.mxu0 0.0
    %1366 = vmatprep.subr.mxu0 0.0
    %1367 = vmatpush2.msra.mxu0 0.0
    %1368 = vmatprep.subr.mxu0 0.0
    %1369 = vmatpush2.msra.mxu0 0.0
    %1370 = vmatprep.subr.mxu0 0.0
    %1371 = vmatpush2.msra.mxu0 0.0
    %1372 = vmatprep.subr.mxu0 0.0
    %1373 = vmatpush2.msra.mxu0 0.0
    %1374 = vmatprep.mubr.f32.mxu0 0.0
    %1375 = vmatmul.mubr.f32.gmra.mxu0 %v1308
    %v1376 = vpop.f32.mrf.mxu0
    %v1377 = vadd.f32 0.0, %v1376
    %v1378 = vpop.f32.mrf.mxu0
    %1379 = vdwg.mxu0
    %v1381 = vsel %vm228, %v1301, 0
    %v1384 = vsel %vm228, %v1377, 0
    %1386 = vmatprep.subr.mxu0 0.0
    %1387 = vmatpush1.msra.mxu0 0.0
    %1388 = vmatprep.subr.mxu0 0.0
    %1389 = vmatpush1.msra.mxu0 0.0
    %1390 = vmatprep.subr.mxu0 0.0
    %1391 = vmatpush1.msra.mxu0 0.0
    %1392 = vmatprep.subr.mxu0 0.0
    %1393 = vmatpush1.msra.mxu0 0.0
    %1394 = vmatprep.subr.mxu0 0.0
    %1395 = vmatpush1.msra.mxu0 0.0
    %1396 = vmatprep.subr.mxu0 0.0
    %1397 = vmatpush1.msra.mxu0 0.0
    %1398 = vmatprep.subr.mxu0 0.0
    %1399 = vmatpush1.msra.mxu0 0.0
    %1400 = vmatprep.subr.mxu0 0.0
    %1401 = vmatpush1.msra.mxu0 0.0
    %1402 = vmatprep.subr.mxu0 0.0
    %1403 = vmatpush1.msra.mxu0 0.0
    %1404 = vmatprep.subr.mxu0 0.0
    %1405 = vmatpush1.msra.mxu0 0.0
    %1406 = vmatprep.subr.mxu0 0.0
    %1407 = vmatpush1.msra.mxu0 0.0
    %1408 = vmatprep.subr.mxu0 0.0
    %1409 = vmatpush1.msra.mxu0 0.0
    %1410 = vmatprep.subr.mxu0 0.0
    %1411 = vmatpush1.msra.mxu0 0.0
    %1412 = vmatprep.subr.mxu0 0.0
    %1413 = vmatpush1.msra.mxu0 0.0
    %1414 = vmatprep.subr.mxu0 0.0
    %1415 = vmatpush1.msra.mxu0 0.0
    %1416 = vmatprep.subr.mxu0 0.0
    %1417 = vmatpush1.msra.mxu0 %v79
    %1418 = vmatprep.subr.mxu0 0.0
    %1419 = vmatpush2.msra.mxu0 0.0
    %1420 = vmatprep.subr.mxu0 0.0
    %1421 = vmatpush2.msra.mxu0 0.0
    %1422 = vmatprep.subr.mxu0 0.0
    %1423 = vmatpush2.msra.mxu0 0.0
    %1424 = vmatprep.subr.mxu0 0.0
    %1425 = vmatpush2.msra.mxu0 0.0
    %1426 = vmatprep.subr.mxu0 0.0
    %1427 = vmatpush2.msra.mxu0 0.0
    %1428 = vmatprep.subr.mxu0 0.0
    %1429 = vmatpush2.msra.mxu0 0.0
    %1430 = vmatprep.subr.mxu0 0.0
    %1431 = vmatpush2.msra.mxu0 0.0
    %1432 = vmatprep.subr.mxu0 0.0
    %1433 = vmatpush2.msra.mxu0 0.0
    %1434 = vmatprep.subr.mxu0 0.0
    %1435 = vmatpush2.msra.mxu0 0.0
    %1436 = vmatprep.subr.mxu0 0.0
    %1437 = vmatpush2.msra.mxu0 0.0
    %1438 = vmatprep.subr.mxu0 0.0
    %1439 = vmatpush2.msra.mxu0 0.0
    %1440 = vmatprep.subr.mxu0 0.0
    %1441 = vmatpush2.msra.mxu0 0.0
    %1442 = vmatprep.subr.mxu0 0.0
    %1443 = vmatpush2.msra.mxu0 0.0
    %1444 = vmatprep.subr.mxu0 0.0
    %1445 = vmatpush2.msra.mxu0 0.0
    %1446 = vmatprep.subr.mxu0 0.0
    %1447 = vmatpush2.msra.mxu0 0.0
    %1448 = vmatprep.subr.mxu0 0.0
    %1449 = vmatpush2.msra.mxu0 0.0
    %1450 = vmatprep.mubr.f32.mxu0 0.0
    %1451 = vmatmul.mubr.f32.gmra.mxu0 %v1381
    %v1452 = vpop.f32.mrf.mxu0
    %v1453 = vadd.f32 0.0, %v1452
    %v1454 = vpop.f32.mrf.mxu0
    %1455 = vmatprep.mubr.f32.mxu0 0.0
    %1456 = vmatmul.mubr.f32.gmra.mxu0 %v1384
    %v1457 = vpop.f32.mrf.mxu0
    %v1458 = vadd.f32 0.0, %v1457
    %v1459 = vpop.f32.mrf.mxu0
    %1460 = vdwg.mxu0
    %v1461 = vadd.f32 %v1048, %v1453
    %v1462 = vadd.f32 %v1049, %v1458
    %1463 = vrot.lane.b32.xlu0 %v217, 104
    %v1464 = vpop.permute.xlu0 %1463
    %1465 = vrot.lane.b32.xlu0 %v217, 72
    %v1466 = vpop.permute.xlu0 %1465
    %v1467 = vsel %vm228, %v1464, 0
    %v1469 = vsel %vm228, %v1466, 0
    %1471 = vmatprep.subr.mxu0 0.0
    %1472 = vmatpush1.xpose.msra.mxu0 0.0
    %1473 = vmatprep.subr.mxu0 0.0
    %1474 = vmatpush1.xpose.msra.mxu0 0.0
    %1475 = vmatprep.subr.mxu0 0.0
    %1476 = vmatpush1.xpose.msra.mxu0 0.0
    %1477 = vmatprep.subr.mxu0 0.0
    %1478 = vmatpush1.xpose.msra.mxu0 0.0
    %1479 = vmatprep.subr.mxu0 0.0
    %1480 = vmatpush1.xpose.msra.mxu0 0.0
    %1481 = vmatprep.subr.mxu0 0.0
    %1482 = vmatpush1.xpose.msra.mxu0 0.0
    %1483 = vmatprep.subr.mxu0 0.0
    %1484 = vmatpush1.xpose.msra.mxu0 0.0
    %1485 = vmatprep.subr.mxu0 0.0
    %1486 = vmatpush1.xpose.msra.mxu0 0.0
    %1487 = vmatprep.subr.mxu0 0.0
    %1488 = vmatpush1.xpose.msra.mxu0 0.0
    %1489 = vmatprep.subr.mxu0 0.0
    %1490 = vmatpush1.xpose.msra.mxu0 0.0
    %1491 = vmatprep.subr.mxu0 0.0
    %1492 = vmatpush1.xpose.msra.mxu0 0.0
    %1493 = vmatprep.subr.mxu0 0.0
    %1494 = vmatpush1.xpose.msra.mxu0 0.0
    %1495 = vmatprep.subr.mxu0 0.0
    %1496 = vmatpush1.xpose.msra.mxu0 0.0
    %1497 = vmatprep.subr.mxu0 0.0
    %1498 = vmatpush1.xpose.msra.mxu0 0.0
    %1499 = vmatprep.subr.mxu0 0.0
    %1500 = vmatpush1.xpose.msra.mxu0 0.0
    %1501 = vmatprep.subr.mxu0 0.0
    %1502 = vmatpush1.xpose.msra.mxu0 %v1469
    %1503 = vmatprep.subr.mxu0 0.0
    %1504 = vmatpush2.xpose.msra.mxu0 0.0
    %1505 = vmatprep.subr.mxu0 0.0
    %1506 = vmatpush2.xpose.msra.mxu0 0.0
    %1507 = vmatprep.subr.mxu0 0.0
    %1508 = vmatpush2.xpose.msra.mxu0 0.0
    %1509 = vmatprep.subr.mxu0 0.0
    %1510 = vmatpush2.xpose.msra.mxu0 0.0
    %1511 = vmatprep.subr.mxu0 0.0
    %1512 = vmatpush2.xpose.msra.mxu0 0.0
    %1513 = vmatprep.subr.mxu0 0.0
    %1514 = vmatpush2.xpose.msra.mxu0 0.0
    %1515 = vmatprep.subr.mxu0 0.0
    %1516 = vmatpush2.xpose.msra.mxu0 0.0
    %1517 = vmatprep.subr.mxu0 0.0
    %1518 = vmatpush2.xpose.msra.mxu0 0.0
    %1519 = vmatprep.subr.mxu0 0.0
    %1520 = vmatpush2.xpose.msra.mxu0 0.0
    %1521 = vmatprep.subr.mxu0 0.0
    %1522 = vmatpush2.xpose.msra.mxu0 0.0
    %1523 = vmatprep.subr.mxu0 0.0
    %1524 = vmatpush2.xpose.msra.mxu0 0.0
    %1525 = vmatprep.subr.mxu0 0.0
    %1526 = vmatpush2.xpose.msra.mxu0 0.0
    %1527 = vmatprep.subr.mxu0 0.0
    %1528 = vmatpush2.xpose.msra.mxu0 0.0
    %1529 = vmatprep.subr.mxu0 0.0
    %1530 = vmatpush2.xpose.msra.mxu0 0.0
    %1531 = vmatprep.subr.mxu0 0.0
    %1532 = vmatpush2.xpose.msra.mxu0 0.0
    %1533 = vmatprep.subr.mxu0 0.0
    %1534 = vmatpush2.xpose.msra.mxu0 0.0
    %1535 = vmatprep.mubr.f32.mxu0 0.0
    %1536 = vmatmul.mubr.f32.gmra.mxu0 %v1467
    %v1537 = vpop.f32.mrf.mxu0
    %v1538 = vadd.f32 %v93, %v1537
    %v1539 = vpop.f32.mrf.mxu0
    %1540 = vdwg.mxu0
    %1541 = vrot.lane.b32.xlu0 %v222, 104
    %v1542 = vpop.permute.xlu0 %1541
    %1543 = vrot.lane.b32.xlu0 %v222, 72
    %v1544 = vpop.permute.xlu0 %1543
    %v1545 = vsel %vm228, %v1542, 0
    %v1547 = vsel %vm228, %v1544, 0
    %1549 = vmatprep.subr.mxu0 0.0
    %1550 = vmatpush1.xpose.msra.mxu0 0.0
    %1551 = vmatprep.subr.mxu0 0.0
    %1552 = vmatpush1.xpose.msra.mxu0 0.0
    %1553 = vmatprep.subr.mxu0 0.0
    %1554 = vmatpush1.xpose.msra.mxu0 0.0
    %1555 = vmatprep.subr.mxu0 0.0
    %1556 = vmatpush1.xpose.msra.mxu0 0.0
    %1557 = vmatprep.subr.mxu0 0.0
    %1558 = vmatpush1.xpose.msra.mxu0 0.0
    %1559 = vmatprep.subr.mxu0 0.0
    %1560 = vmatpush1.xpose.msra.mxu0 0.0
    %1561 = vmatprep.subr.mxu0 0.0
    %1562 = vmatpush1.xpose.msra.mxu0 0.0
    %1563 = vmatprep.subr.mxu0 0.0
    %1564 = vmatpush1.xpose.msra.mxu0 0.0
    %1565 = vmatprep.subr.mxu0 0.0
    %1566 = vmatpush1.xpose.msra.mxu0 0.0
    %1567 = vmatprep.subr.mxu0 0.0
    %1568 = vmatpush1.xpose.msra.mxu0 0.0
    %1569 = vmatprep.subr.mxu0 0.0
    %1570 = vmatpush1.xpose.msra.mxu0 0.0
    %1571 = vmatprep.subr.mxu0 0.0
    %1572 = vmatpush1.xpose.msra.mxu0 0.0
    %1573 = vmatprep.subr.mxu0 0.0
    %1574 = vmatpush1.xpose.msra.mxu0 0.0
    %1575 = vmatprep.subr.mxu0 0.0
    %1576 = vmatpush1.xpose.msra.mxu0 0.0
    %1577 = vmatprep.subr.mxu0 0.0
    %1578 = vmatpush1.xpose.msra.mxu0 0.0
    %1579 = vmatprep.subr.mxu0 0.0
    %1580 = vmatpush1.xpose.msra.mxu0 %v1547
    %1581 = vmatprep.subr.mxu0 0.0
    %1582 = vmatpush2.xpose.msra.mxu0 0.0
    %1583 = vmatprep.subr.mxu0 0.0
    %1584 = vmatpush2.xpose.msra.mxu0 0.0
    %1585 = vmatprep.subr.mxu0 0.0
    %1586 = vmatpush2.xpose.msra.mxu0 0.0
    %1587 = vmatprep.subr.mxu0 0.0
    %1588 = vmatpush2.xpose.msra.mxu0 0.0
    %1589 = vmatprep.subr.mxu0 0.0
    %1590 = vmatpush2.xpose.msra.mxu0 0.0
    %1591 = vmatprep.subr.mxu0 0.0
    %1592 = vmatpush2.xpose.msra.mxu0 0.0
    %1593 = vmatprep.subr.mxu0 0.0
    %1594 = vmatpush2.xpose.msra.mxu0 0.0
    %1595 = vmatprep.subr.mxu0 0.0
    %1596 = vmatpush2.xpose.msra.mxu0 0.0
    %1597 = vmatprep.subr.mxu0 0.0
    %1598 = vmatpush2.xpose.msra.mxu0 0.0
    %1599 = vmatprep.subr.mxu0 0.0
    %1600 = vmatpush2.xpose.msra.mxu0 0.0
    %1601 = vmatprep.subr.mxu0 0.0
    %1602 = vmatpush2.xpose.msra.mxu0 0.0
    %1603 = vmatprep.subr.mxu0 0.0
    %1604 = vmatpush2.xpose.msra.mxu0 0.0
    %1605 = vmatprep.subr.mxu0 0.0
    %1606 = vmatpush2.xpose.msra.mxu0 0.0
    %1607 = vmatprep.subr.mxu0 0.0
    %1608 = vmatpush2.xpose.msra.mxu0 0.0
    %1609 = vmatprep.subr.mxu0 0.0
    %1610 = vmatpush2.xpose.msra.mxu0 0.0
    %1611 = vmatprep.subr.mxu0 0.0
    %1612 = vmatpush2.xpose.msra.mxu0 0.0
    %1613 = vmatprep.mubr.f32.mxu0 0.0
    %1614 = vmatmul.mubr.f32.gmra.mxu0 %v1545
    %v1615 = vpop.f32.mrf.mxu0
    %v1616 = vadd.f32 %v93, %v1615
    %v1617 = vpop.f32.mrf.mxu0
    %1618 = vdwg.mxu0
    %v1619 = vsel %vm228, %v1538, -inf
    %1620 = vmax.xlane.f32.xlu0 %v1619
    %v1621 = vpop.xlane.xlu0 %1620
    %v1622 = vsel %vm228, %v1616, -inf
    %1623 = vmax.xlane.f32.xlu0 %v1622
    %v1624 = vpop.xlane.xlu0 %1623
    %v1625 = vsub.f32 %v1538, %v1621
    %v1626 = vsub.f32 %v1616, %v1624
    %v1627 = vmul.f32 %v1625, 1.442695
    %v1628 = vpow.pop %v1627
    %v1629 = vmul.f32 %v1626, 1.442695
    %v1630 = vpow.pop %v1629
    %v1631 = vsel %vm228, %v1628, 0.0
    %1632 = vadd.xlane.f32.xlu0 %v1631
    %v1633 = vpop.xlane.xlu0 %1632
    %v1634 = vsel %vm228, %v1630, 0.0
    %1635 = vadd.xlane.f32.xlu0 %v1634
    %v1636 = vpop.xlane.xlu0 %1635
    %v1637 = vrcp.pop %v1633
    %v1638 = vrcp.pop %v1636
    %v1639 = vmul.f32 %v1628, %v1637
    %v1640 = vmul.f32 %v1630, %v1638
    %1641 = vrot.lane.b32.xlu0 %v217, 40
    %v1642 = vpop.permute.xlu0 %1641
    %v1645 = vsel %vm228, %v1639, 0
    %1647 = vmatprep.subr.mxu0 0.0
    %1648 = vmatpush1.msra.mxu0 0.0
    %1649 = vmatprep.subr.mxu0 0.0
    %1650 = vmatpush1.msra.mxu0 0.0
    %1651 = vmatprep.subr.mxu0 0.0
    %1652 = vmatpush1.msra.mxu0 0.0
    %1653 = vmatprep.subr.mxu0 0.0
    %1654 = vmatpush1.msra.mxu0 0.0
    %1655 = vmatprep.subr.mxu0 0.0
    %1656 = vmatpush1.msra.mxu0 0.0
    %1657 = vmatprep.subr.mxu0 0.0
    %1658 = vmatpush1.msra.mxu0 0.0
    %1659 = vmatprep.subr.mxu0 0.0
    %1660 = vmatpush1.msra.mxu0 0.0
    %1661 = vmatprep.subr.mxu0 0.0
    %1662 = vmatpush1.msra.mxu0 0.0
    %1663 = vmatprep.subr.mxu0 0.0
    %1664 = vmatpush1.msra.mxu0 0.0
    %1665 = vmatprep.subr.mxu0 0.0
    %1666 = vmatpush1.msra.mxu0 0.0
    %1667 = vmatprep.subr.mxu0 0.0
    %1668 = vmatpush1.msra.mxu0 0.0
    %1669 = vmatprep.subr.mxu0 0.0
    %1670 = vmatpush1.msra.mxu0 0.0
    %1671 = vmatprep.subr.mxu0 0.0
    %1672 = vmatpush1.msra.mxu0 0.0
    %1673 = vmatprep.subr.mxu0 0.0
    %1674 = vmatpush1.msra.mxu0 0.0
    %1675 = vmatprep.subr.mxu0 0.0
    %1676 = vmatpush1.msra.mxu0 0.0
    %1677 = vmatprep.subr.mxu0 0.0
    %1678 = vmatpush1.msra.mxu0 %v1642
    %1679 = vmatprep.subr.mxu0 0.0
    %1680 = vmatpush2.msra.mxu0 0.0
    %1681 = vmatprep.subr.mxu0 0.0
    %1682 = vmatpush2.msra.mxu0 0.0
    %1683 = vmatprep.subr.mxu0 0.0
    %1684 = vmatpush2.msra.mxu0 0.0
    %1685 = vmatprep.subr.mxu0 0.0
    %1686 = vmatpush2.msra.mxu0 0.0
    %1687 = vmatprep.subr.mxu0 0.0
    %1688 = vmatpush2.msra.mxu0 0.0
    %1689 = vmatprep.subr.mxu0 0.0
    %1690 = vmatpush2.msra.mxu0 0.0
    %1691 = vmatprep.subr.mxu0 0.0
    %1692 = vmatpush2.msra.mxu0 0.0
    %1693 = vmatprep.subr.mxu0 0.0
    %1694 = vmatpush2.msra.mxu0 0.0
    %1695 = vmatprep.subr.mxu0 0.0
    %1696 = vmatpush2.msra.mxu0 0.0
    %1697 = vmatprep.subr.mxu0 0.0
    %1698 = vmatpush2.msra.mxu0 0.0
    %1699 = vmatprep.subr.mxu0 0.0
    %1700 = vmatpush2.msra.mxu0 0.0
    %1701 = vmatprep.subr.mxu0 0.0
    %1702 = vmatpush2.msra.mxu0 0.0
    %1703 = vmatprep.subr.mxu0 0.0
    %1704 = vmatpush2.msra.mxu0 0.0
    %1705 = vmatprep.subr.mxu0 0.0
    %1706 = vmatpush2.msra.mxu0 0.0
    %1707 = vmatprep.subr.mxu0 0.0
    %1708 = vmatpush2.msra.mxu0 0.0
    %1709 = vmatprep.subr.mxu0 0.0
    %1710 = vmatpush2.msra.mxu0 0.0
    %1711 = vmatprep.mubr.f32.mxu0 0.0
    %1712 = vmatmul.mubr.f32.gmra.mxu0 %v1645
    %v1713 = vpop.f32.mrf.mxu0
    %v1714 = vadd.f32 0.0, %v1713
    %v1715 = vpop.f32.mrf.mxu0
    %1716 = vdwg.mxu0
    %1717 = vrot.lane.b32.xlu0 %v222, 40
    %v1718 = vpop.permute.xlu0 %1717
    %v1721 = vsel %vm228, %v1640, 0
    %1723 = vmatprep.subr.mxu0 0.0
    %1724 = vmatpush1.msra.mxu0 0.0
    %1725 = vmatprep.subr.mxu0 0.0
    %1726 = vmatpush1.msra.mxu0 0.0
    %1727 = vmatprep.subr.mxu0 0.0
    %1728 = vmatpush1.msra.mxu0 0.0
    %1729 = vmatprep.subr.mxu0 0.0
    %1730 = vmatpush1.msra.mxu0 0.0
    %1731 = vmatprep.subr.mxu0 0.0
    %1732 = vmatpush1.msra.mxu0 0.0
    %1733 = vmatprep.subr.mxu0 0.0
    %1734 = vmatpush1.msra.mxu0 0.0
    %1735 = vmatprep.subr.mxu0 0.0
    %1736 = vmatpush1.msra.mxu0 0.0
    %1737 = vmatprep.subr.mxu0 0.0
    %1738 = vmatpush1.msra.mxu0 0.0
    %1739 = vmatprep.subr.mxu0 0.0
    %1740 = vmatpush1.msra.mxu0 0.0
    %1741 = vmatprep.subr.mxu0 0.0
    %1742 = vmatpush1.msra.mxu0 0.0
    %1743 = vmatprep.subr.mxu0 0.0
    %1744 = vmatpush1.msra.mxu0 0.0
    %1745 = vmatprep.subr.mxu0 0.0
    %1746 = vmatpush1.msra.mxu0 0.0
    %1747 = vmatprep.subr.mxu0 0.0
    %1748 = vmatpush1.msra.mxu0 0.0
    %1749 = vmatprep.subr.mxu0 0.0
    %1750 = vmatpush1.msra.mxu0 0.0
    %1751 = vmatprep.subr.mxu0 0.0
    %1752 = vmatpush1.msra.mxu0 0.0
    %1753 = vmatprep.subr.mxu0 0.0
    %1754 = vmatpush1.msra.mxu0 %v1718
    %1755 = vmatprep.subr.mxu0 0.0
    %1756 = vmatpush2.msra.mxu0 0.0
    %1757 = vmatprep.subr.mxu0 0.0
    %1758 = vmatpush2.msra.mxu0 0.0
    %1759 = vmatprep.subr.mxu0 0.0
    %1760 = vmatpush2.msra.mxu0 0.0
    %1761 = vmatprep.subr.mxu0 0.0
    %1762 = vmatpush2.msra.mxu0 0.0
    %1763 = vmatprep.subr.mxu0 0.0
    %1764 = vmatpush2.msra.mxu0 0.0
    %1765 = vmatprep.subr.mxu0 0.0
    %1766 = vmatpush2.msra.mxu0 0.0
    %1767 = vmatprep.subr.mxu0 0.0
    %1768 = vmatpush2.msra.mxu0 0.0
    %1769 = vmatprep.subr.mxu0 0.0
    %1770 = vmatpush2.msra.mxu0 0.0
    %1771 = vmatprep.subr.mxu0 0.0
    %1772 = vmatpush2.msra.mxu0 0.0
    %1773 = vmatprep.subr.mxu0 0.0
    %1774 = vmatpush2.msra.mxu0 0.0
    %1775 = vmatprep.subr.mxu0 0.0
    %1776 = vmatpush2.msra.mxu0 0.0
    %1777 = vmatprep.subr.mxu0 0.0
    %1778 = vmatpush2.msra.mxu0 0.0
    %1779 = vmatprep.subr.mxu0 0.0
    %1780 = vmatpush2.msra.mxu0 0.0
    %1781 = vmatprep.subr.mxu0 0.0
    %1782 = vmatpush2.msra.mxu0 0.0
    %1783 = vmatprep.subr.mxu0 0.0
    %1784 = vmatpush2.msra.mxu0 0.0
    %1785 = vmatprep.subr.mxu0 0.0
    %1786 = vmatpush2.msra.mxu0 0.0
    %1787 = vmatprep.mubr.f32.mxu0 0.0
    %1788 = vmatmul.mubr.f32.gmra.mxu0 %v1721
    %v1789 = vpop.f32.mrf.mxu0
    %v1790 = vadd.f32 0.0, %v1789
    %v1791 = vpop.f32.mrf.mxu0
    %1792 = vdwg.mxu0
    %v1794 = vsel %vm228, %v1714, 0
    %v1797 = vsel %vm228, %v1790, 0
    %1799 = vmatprep.subr.mxu0 0.0
    %1800 = vmatpush1.msra.mxu0 0.0
    %1801 = vmatprep.subr.mxu0 0.0
    %1802 = vmatpush1.msra.mxu0 0.0
    %1803 = vmatprep.subr.mxu0 0.0
    %1804 = vmatpush1.msra.mxu0 0.0
    %1805 = vmatprep.subr.mxu0 0.0
    %1806 = vmatpush1.msra.mxu0 0.0
    %1807 = vmatprep.subr.mxu0 0.0
    %1808 = vmatpush1.msra.mxu0 0.0
    %1809 = vmatprep.subr.mxu0 0.0
    %1810 = vmatpush1.msra.mxu0 0.0
    %1811 = vmatprep.subr.mxu0 0.0
    %1812 = vmatpush1.msra.mxu0 0.0
    %1813 = vmatprep.subr.mxu0 0.0
    %1814 = vmatpush1.msra.mxu0 0.0
    %1815 = vmatprep.subr.mxu0 0.0
    %1816 = vmatpush1.msra.mxu0 0.0
    %1817 = vmatprep.subr.mxu0 0.0
    %1818 = vmatpush1.msra.mxu0 0.0
    %1819 = vmatprep.subr.mxu0 0.0
    %1820 = vmatpush1.msra.mxu0 0.0
    %1821 = vmatprep.subr.mxu0 0.0
    %1822 = vmatpush1.msra.mxu0 0.0
    %1823 = vmatprep.subr.mxu0 0.0
    %1824 = vmatpush1.msra.mxu0 0.0
    %1825 = vmatprep.subr.mxu0 0.0
    %1826 = vmatpush1.msra.mxu0 0.0
    %1827 = vmatprep.subr.mxu0 0.0
    %1828 = vmatpush1.msra.mxu0 0.0
    %1829 = vmatprep.subr.mxu0 0.0
    %1830 = vmatpush1.msra.mxu0 %v80
    %1831 = vmatprep.subr.mxu0 0.0
    %1832 = vmatpush2.msra.mxu0 0.0
    %1833 = vmatprep.subr.mxu0 0.0
    %1834 = vmatpush2.msra.mxu0 0.0
    %1835 = vmatprep.subr.mxu0 0.0
    %1836 = vmatpush2.msra.mxu0 0.0
    %1837 = vmatprep.subr.mxu0 0.0
    %1838 = vmatpush2.msra.mxu0 0.0
    %1839 = vmatprep.subr.mxu0 0.0
    %1840 = vmatpush2.msra.mxu0 0.0
    %1841 = vmatprep.subr.mxu0 0.0
    %1842 = vmatpush2.msra.mxu0 0.0
    %1843 = vmatprep.subr.mxu0 0.0
    %1844 = vmatpush2.msra.mxu0 0.0
    %1845 = vmatprep.subr.mxu0 0.0
    %1846 = vmatpush2.msra.mxu0 0.0
    %1847 = vmatprep.subr.mxu0 0.0
    %1848 = vmatpush2.msra.mxu0 0.0
    %1849 = vmatprep.subr.mxu0 0.0
    %1850 = vmatpush2.msra.mxu0 0.0
    %1851 = vmatprep.subr.mxu0 0.0
    %1852 = vmatpush2.msra.mxu0 0.0
    %1853 = vmatprep.subr.mxu0 0.0
    %1854 = vmatpush2.msra.mxu0 0.0
    %1855 = vmatprep.subr.mxu0 0.0
    %1856 = vmatpush2.msra.mxu0 0.0
    %1857 = vmatprep.subr.mxu0 0.0
    %1858 = vmatpush2.msra.mxu0 0.0
    %1859 = vmatprep.subr.mxu0 0.0
    %1860 = vmatpush2.msra.mxu0 0.0
    %1861 = vmatprep.subr.mxu0 0.0
    %1862 = vmatpush2.msra.mxu0 0.0
    %1863 = vmatprep.mubr.f32.mxu0 0.0
    %1864 = vmatmul.mubr.f32.gmra.mxu0 %v1794
    %v1865 = vpop.f32.mrf.mxu0
    %v1866 = vadd.f32 0.0, %v1865
    %v1867 = vpop.f32.mrf.mxu0
    %1868 = vmatprep.mubr.f32.mxu0 0.0
    %1869 = vmatmul.mubr.f32.gmra.mxu0 %v1797
    %v1870 = vpop.f32.mrf.mxu0
    %v1871 = vadd.f32 0.0, %v1870
    %v1872 = vpop.f32.mrf.mxu0
    %1873 = vdwg.mxu0
    %v1874 = vadd.f32 %v1461, %v1866
    %v1875 = vadd.f32 %v1462, %v1871
    %v1876 = vadd.f32 %v1874, %v71
    %v1877 = vadd.f32 %v1875, %v72
    %v1878 = vld [vmem:[%s6] sm:$0x1]
    %v1879 = vld [vmem:[%s7] sm:$0x1]
    %v1880 = vsel %vm96, %v1876, 0.0
    %1881 = vadd.xlane.f32.xlu0 %v1880
    %v1882 = vpop.xlane.xlu0 %1881
    %v1883 = vsel %vm96, %v1877, 0.0
    %1884 = vadd.xlane.f32.xlu0 %v1883
    %v1885 = vpop.xlane.xlu0 %1884
    %v1886 = vmul.f32 %v1882, %v103
    %v1887 = vmul.f32 %v1885, %v103
    %v1888 = vmul.f32 %v1876, %v1876
    %v1889 = vmul.f32 %v1877, %v1877
    %v1890 = vsel %vm96, %v1888, 0.0
    %1891 = vadd.xlane.f32.xlu0 %v1890
    %v1892 = vpop.xlane.xlu0 %1891
    %v1893 = vsel %vm96, %v1889, 0.0
    %1894 = vadd.xlane.f32.xlu0 %v1893
    %v1895 = vpop.xlane.xlu0 %1894
    %v1896 = vmul.f32 %v1892, %v103
    %v1897 = vmul.f32 %v1895, %v103
    %v1898 = vmul.f32 %v1886, %v1886
    %v1899 = vmul.f32 %v1887, %v1887
    %v1900 = vsub.f32 %v1896, %v1898
    %v1901 = vsub.f32 %v1897, %v1899
    %v1902 = vsub.f32 %v1876, %v1886
    %v1903 = vsub.f32 %v1877, %v1887
    %v1904 = vadd.f32 %v1900, 1e-05
    %v1905 = vadd.f32 %v1901, 1e-05
    %v1906 = vrsqrt.pop %v1904
    %v1907 = vrsqrt.pop %v1905
    %v1908 = vmul.f32 %v1902, %v1906
    %v1909 = vmul.f32 %v1903, %v1907
    %v1911 = vlaneseq
    %v1912 = vshrl.u32 %v1911, 7
    %v1913 = vsub.s32 0, %v1912
    %v1914 = vrot.slane %v1878, %v1913
    %v1916 = vmul.f32 %v1914, %v1908
    %v1917 = vmul.f32 %v1914, %v1909
    %v1919 = vlaneseq
    %v1920 = vshrl.u32 %v1919, 7
    %v1921 = vsub.s32 0, %v1920
    %v1922 = vrot.slane %v1879, %v1921
    %v1924 = vadd.f32 %v1916, %v1922
    %v1925 = vadd.f32 %v1917, %v1922
    %v1927 = vsel %vm96, %v1924, 0
    %v1930 = vsel %vm96, %v1925, 0
    %1932 = vmatprep.subr.mxu0 0.0
    %1933 = vmatpush1.msra.mxu0 0.0
    %1934 = vmatprep.subr.mxu0 0.0
    %1935 = vmatpush1.msra.mxu0 0.0
    %1936 = vmatprep.subr.mxu0 0.0
    %1937 = vmatpush1.msra.mxu0 0.0
    %1938 = vmatprep.subr.mxu0 0.0
    %1939 = vmatpush1.msra.mxu0 0.0
    %1940 = vmatprep.subr.mxu0 0.0
    %1941 = vmatpush1.msra.mxu0 0.0
    %1942 = vmatprep.subr.mxu0 0.0
    %1943 = vmatpush1.msra.mxu0 0.0
    %1944 = vmatprep.subr.mxu0 0.0
    %1945 = vmatpush1.msra.mxu0 0.0
    %1946 = vmatprep.subr.mxu0 0.0
    %1947 = vmatpush1.msra.mxu0 0.0
    %1948 = vmatprep.subr.mxu0 0.0
    %1949 = vmatpush1.msra.mxu0 0.0
    %1950 = vmatprep.subr.mxu0 0.0
    %1951 = vmatpush1.msra.mxu0 0.0
    %1952 = vmatprep.subr.mxu0 0.0
    %1953 = vmatpush1.msra.mxu0 0.0
    %1954 = vmatprep.subr.mxu0 0.0
    %1955 = vmatpush1.msra.mxu0 0.0
    %1956 = vmatprep.subr.mxu0 0.0
    %1957 = vmatpush1.msra.mxu0 %v76
    %1958 = vmatprep.subr.mxu0 0.0
    %1959 = vmatpush1.msra.mxu0 %v75
    %1960 = vmatprep.subr.mxu0 0.0
    %1961 = vmatpush1.msra.mxu0 %v74
    %1962 = vmatprep.subr.mxu0 0.0
    %1963 = vmatpush1.msra.mxu0 %v73
    %1964 = vmatprep.subr.mxu0 0.0
    %1965 = vmatpush2.msra.mxu0 0.0
    %1966 = vmatprep.subr.mxu0 0.0
    %1967 = vmatpush2.msra.mxu0 0.0
    %1968 = vmatprep.subr.mxu0 0.0
    %1969 = vmatpush2.msra.mxu0 0.0
    %1970 = vmatprep.subr.mxu0 0.0
    %1971 = vmatpush2.msra.mxu0 0.0
    %1972 = vmatprep.subr.mxu0 0.0
    %1973 = vmatpush2.msra.mxu0 0.0
    %1974 = vmatprep.subr.mxu0 0.0
    %1975 = vmatpush2.msra.mxu0 0.0
    %1976 = vmatprep.subr.mxu0 0.0
    %1977 = vmatpush2.msra.mxu0 0.0
    %1978 = vmatprep.subr.mxu0 0.0
    %1979 = vmatpush2.msra.mxu0 0.0
    %1980 = vmatprep.subr.mxu0 0.0
    %1981 = vmatpush2.msra.mxu0 0.0
    %1982 = vmatprep.subr.mxu0 0.0
    %1983 = vmatpush2.msra.mxu0 0.0
    %1984 = vmatprep.subr.mxu0 0.0
    %1985 = vmatpush2.msra.mxu0 0.0
    %1986 = vmatprep.subr.mxu0 0.0
    %1987 = vmatpush2.msra.mxu0 0.0
    %1988 = vmatprep.subr.mxu0 0.0
    %1989 = vmatpush2.msra.mxu0 0.0
    %1990 = vmatprep.subr.mxu0 0.0
    %1991 = vmatpush2.msra.mxu0 0.0
    %1992 = vmatprep.subr.mxu0 0.0
    %1993 = vmatpush2.msra.mxu0 0.0
    %1994 = vmatprep.subr.mxu0 0.0
    %1995 = vmatpush2.msra.mxu0 0.0
    %1996 = vmatprep.mubr.f32.mxu0 0.0
    %1997 = vmatmul.mubr.f32.gmra.mxu0 %v1927
    %v1998 = vpop.f32.mrf.mxu0
    %v1999 = vadd.f32 0.0, %v1998
    %v2000 = vpop.f32.mrf.mxu0
    %2001 = vmatprep.mubr.f32.mxu0 0.0
    %2002 = vmatmul.mubr.f32.gmra.mxu0 %v1930
    %v2003 = vpop.f32.mrf.mxu0
    %v2004 = vadd.f32 0.0, %v2003
    %v2005 = vpop.f32.mrf.mxu0
    %2006 = vdwg.mxu0
    %2008 = vrot.lane.b32.xlu0 %v1999, 96
    %v2009 = vpop.permute.xlu0 %2008
    %v2010 = vsel %vm228, %v1999, 0
    %v2012 = vsel %vm228, %v2009, 0
    %2014 = vmatprep.subr.mxu0 0.0
    %2015 = vmatpush1.xpose.msra.mxu0 0.0
    %2016 = vmatprep.subr.mxu0 0.0
    %2017 = vmatpush1.xpose.msra.mxu0 0.0
    %2018 = vmatprep.subr.mxu0 0.0
    %2019 = vmatpush1.xpose.msra.mxu0 0.0
    %2020 = vmatprep.subr.mxu0 0.0
    %2021 = vmatpush1.xpose.msra.mxu0 0.0
    %2022 = vmatprep.subr.mxu0 0.0
    %2023 = vmatpush1.xpose.msra.mxu0 0.0
    %2024 = vmatprep.subr.mxu0 0.0
    %2025 = vmatpush1.xpose.msra.mxu0 0.0
    %2026 = vmatprep.subr.mxu0 0.0
    %2027 = vmatpush1.xpose.msra.mxu0 0.0
    %2028 = vmatprep.subr.mxu0 0.0
    %2029 = vmatpush1.xpose.msra.mxu0 0.0
    %2030 = vmatprep.subr.mxu0 0.0
    %2031 = vmatpush1.xpose.msra.mxu0 0.0
    %2032 = vmatprep.subr.mxu0 0.0
    %2033 = vmatpush1.xpose.msra.mxu0 0.0
    %2034 = vmatprep.subr.mxu0 0.0
    %2035 = vmatpush1.xpose.msra.mxu0 0.0
    %2036 = vmatprep.subr.mxu0 0.0
    %2037 = vmatpush1.xpose.msra.mxu0 0.0
    %2038 = vmatprep.subr.mxu0 0.0
    %2039 = vmatpush1.xpose.msra.mxu0 0.0
    %2040 = vmatprep.subr.mxu0 0.0
    %2041 = vmatpush1.xpose.msra.mxu0 0.0
    %2042 = vmatprep.subr.mxu0 0.0
    %2043 = vmatpush1.xpose.msra.mxu0 0.0
    %2044 = vmatprep.subr.mxu0 0.0
    %2045 = vmatpush1.xpose.msra.mxu0 %v2012
    %2046 = vmatprep.subr.mxu0 0.0
    %2047 = vmatpush2.xpose.msra.mxu0 0.0
    %2048 = vmatprep.subr.mxu0 0.0
    %2049 = vmatpush2.xpose.msra.mxu0 0.0
    %2050 = vmatprep.subr.mxu0 0.0
    %2051 = vmatpush2.xpose.msra.mxu0 0.0
    %2052 = vmatprep.subr.mxu0 0.0
    %2053 = vmatpush2.xpose.msra.mxu0 0.0
    %2054 = vmatprep.subr.mxu0 0.0
    %2055 = vmatpush2.xpose.msra.mxu0 0.0
    %2056 = vmatprep.subr.mxu0 0.0
    %2057 = vmatpush2.xpose.msra.mxu0 0.0
    %2058 = vmatprep.subr.mxu0 0.0
    %2059 = vmatpush2.xpose.msra.mxu0 0.0
    %2060 = vmatprep.subr.mxu0 0.0
    %2061 = vmatpush2.xpose.msra.mxu0 0.0
    %2062 = vmatprep.subr.mxu0 0.0
    %2063 = vmatpush2.xpose.msra.mxu0 0.0
    %2064 = vmatprep.subr.mxu0 0.0
    %2065 = vmatpush2.xpose.msra.mxu0 0.0
    %2066 = vmatprep.subr.mxu0 0.0
    %2067 = vmatpush2.xpose.msra.mxu0 0.0
    %2068 = vmatprep.subr.mxu0 0.0
    %2069 = vmatpush2.xpose.msra.mxu0 0.0
    %2070 = vmatprep.subr.mxu0 0.0
    %2071 = vmatpush2.xpose.msra.mxu0 0.0
    %2072 = vmatprep.subr.mxu0 0.0
    %2073 = vmatpush2.xpose.msra.mxu0 0.0
    %2074 = vmatprep.subr.mxu0 0.0
    %2075 = vmatpush2.xpose.msra.mxu0 0.0
    %2076 = vmatprep.subr.mxu0 0.0
    %2077 = vmatpush2.xpose.msra.mxu0 0.0
    %2078 = vmatprep.mubr.f32.mxu0 0.0
    %2079 = vmatmul.mubr.f32.gmra.mxu0 %v2010
    %v2080 = vpop.f32.mrf.mxu0
    %v2081 = vadd.f32 %v93, %v2080
    %v2082 = vpop.f32.mrf.mxu0
    %2083 = vdwg.mxu0
    %2085 = vrot.lane.b32.xlu0 %v2004, 96
    %v2086 = vpop.permute.xlu0 %2085
    %v2087 = vsel %vm228, %v2004, 0
    %v2089 = vsel %vm228, %v2086, 0
    %2091 = vmatprep.subr.mxu0 0.0
    %2092 = vmatpush1.xpose.msra.mxu0 0.0
    %2093 = vmatprep.subr.mxu0 0.0
    %2094 = vmatpush1.xpose.msra.mxu0 0.0
    %2095 = vmatprep.subr.mxu0 0.0
    %2096 = vmatpush1.xpose.msra.mxu0 0.0
    %2097 = vmatprep.subr.mxu0 0.0
    %2098 = vmatpush1.xpose.msra.mxu0 0.0
    %2099 = vmatprep.subr.mxu0 0.0
    %2100 = vmatpush1.xpose.msra.mxu0 0.0
    %2101 = vmatprep.subr.mxu0 0.0
    %2102 = vmatpush1.xpose.msra.mxu0 0.0
    %2103 = vmatprep.subr.mxu0 0.0
    %2104 = vmatpush1.xpose.msra.mxu0 0.0
    %2105 = vmatprep.subr.mxu0 0.0
    %2106 = vmatpush1.xpose.msra.mxu0 0.0
    %2107 = vmatprep.subr.mxu0 0.0
    %2108 = vmatpush1.xpose.msra.mxu0 0.0
    %2109 = vmatprep.subr.mxu0 0.0
    %2110 = vmatpush1.xpose.msra.mxu0 0.0
    %2111 = vmatprep.subr.mxu0 0.0
    %2112 = vmatpush1.xpose.msra.mxu0 0.0
    %2113 = vmatprep.subr.mxu0 0.0
    %2114 = vmatpush1.xpose.msra.mxu0 0.0
    %2115 = vmatprep.subr.mxu0 0.0
    %2116 = vmatpush1.xpose.msra.mxu0 0.0
    %2117 = vmatprep.subr.mxu0 0.0
    %2118 = vmatpush1.xpose.msra.mxu0 0.0
    %2119 = vmatprep.subr.mxu0 0.0
    %2120 = vmatpush1.xpose.msra.mxu0 0.0
    %2121 = vmatprep.subr.mxu0 0.0
    %2122 = vmatpush1.xpose.msra.mxu0 %v2089
    %2123 = vmatprep.subr.mxu0 0.0
    %2124 = vmatpush2.xpose.msra.mxu0 0.0
    %2125 = vmatprep.subr.mxu0 0.0
    %2126 = vmatpush2.xpose.msra.mxu0 0.0
    %2127 = vmatprep.subr.mxu0 0.0
    %2128 = vmatpush2.xpose.msra.mxu0 0.0
    %2129 = vmatprep.subr.mxu0 0.0
    %2130 = vmatpush2.xpose.msra.mxu0 0.0
    %2131 = vmatprep.subr.mxu0 0.0
    %2132 = vmatpush2.xpose.msra.mxu0 0.0
    %2133 = vmatprep.subr.mxu0 0.0
    %2134 = vmatpush2.xpose.msra.mxu0 0.0
    %2135 = vmatprep.subr.mxu0 0.0
    %2136 = vmatpush2.xpose.msra.mxu0 0.0
    %2137 = vmatprep.subr.mxu0 0.0
    %2138 = vmatpush2.xpose.msra.mxu0 0.0
    %2139 = vmatprep.subr.mxu0 0.0
    %2140 = vmatpush2.xpose.msra.mxu0 0.0
    %2141 = vmatprep.subr.mxu0 0.0
    %2142 = vmatpush2.xpose.msra.mxu0 0.0
    %2143 = vmatprep.subr.mxu0 0.0
    %2144 = vmatpush2.xpose.msra.mxu0 0.0
    %2145 = vmatprep.subr.mxu0 0.0
    %2146 = vmatpush2.xpose.msra.mxu0 0.0
    %2147 = vmatprep.subr.mxu0 0.0
    %2148 = vmatpush2.xpose.msra.mxu0 0.0
    %2149 = vmatprep.subr.mxu0 0.0
    %2150 = vmatpush2.xpose.msra.mxu0 0.0
    %2151 = vmatprep.subr.mxu0 0.0
    %2152 = vmatpush2.xpose.msra.mxu0 0.0
    %2153 = vmatprep.subr.mxu0 0.0
    %2154 = vmatpush2.xpose.msra.mxu0 0.0
    %2155 = vmatprep.mubr.f32.mxu0 0.0
    %2156 = vmatmul.mubr.f32.gmra.mxu0 %v2087
    %v2157 = vpop.f32.mrf.mxu0
    %v2158 = vadd.f32 %v93, %v2157
    %v2159 = vpop.f32.mrf.mxu0
    %2160 = vdwg.mxu0
    %v2161 = vsel %vm228, %v2081, -inf
    %2162 = vmax.xlane.f32.xlu0 %v2161
    %v2163 = vpop.xlane.xlu0 %2162
    %v2164 = vsel %vm228, %v2158, -inf
    %2165 = vmax.xlane.f32.xlu0 %v2164
    %v2166 = vpop.xlane.xlu0 %2165
    %v2167 = vsub.f32 %v2081, %v2163
    %v2168 = vsub.f32 %v2158, %v2166
    %v2169 = vmul.f32 %v2167, 1.442695
    %v2170 = vpow.pop %v2169
    %v2171 = vmul.f32 %v2168, 1.442695
    %v2172 = vpow.pop %v2171
    %v2173 = vsel %vm228, %v2170, 0.0
    %2174 = vadd.xlane.f32.xlu0 %v2173
    %v2175 = vpop.xlane.xlu0 %2174
    %v2176 = vsel %vm228, %v2172, 0.0
    %2177 = vadd.xlane.f32.xlu0 %v2176
    %v2178 = vpop.xlane.xlu0 %2177
    %v2179 = vrcp.pop %v2175
    %v2180 = vrcp.pop %v2178
    %v2181 = vmul.f32 %v2170, %v2179
    %v2182 = vmul.f32 %v2172, %v2180
    %2183 = vrot.lane.b32.xlu0 %v1999, 64
    %v2184 = vpop.permute.xlu0 %2183
    %v2187 = vsel %vm228, %v2181, 0
    %2189 = vmatprep.subr.mxu0 0.0
    %2190 = vmatpush1.msra.mxu0 0.0
    %2191 = vmatprep.subr.mxu0 0.0
    %2192 = vmatpush1.msra.mxu0 0.0
    %2193 = vmatprep.subr.mxu0 0.0
    %2194 = vmatpush1.msra.mxu0 0.0
    %2195 = vmatprep.subr.mxu0 0.0
    %2196 = vmatpush1.msra.mxu0 0.0
    %2197 = vmatprep.subr.mxu0 0.0
    %2198 = vmatpush1.msra.mxu0 0.0
    %2199 = vmatprep.subr.mxu0 0.0
    %2200 = vmatpush1.msra.mxu0 0.0
    %2201 = vmatprep.subr.mxu0 0.0
    %2202 = vmatpush1.msra.mxu0 0.0
    %2203 = vmatprep.subr.mxu0 0.0
    %2204 = vmatpush1.msra.mxu0 0.0
    %2205 = vmatprep.subr.mxu0 0.0
    %2206 = vmatpush1.msra.mxu0 0.0
    %2207 = vmatprep.subr.mxu0 0.0
    %2208 = vmatpush1.msra.mxu0 0.0
    %2209 = vmatprep.subr.mxu0 0.0
    %2210 = vmatpush1.msra.mxu0 0.0
    %2211 = vmatprep.subr.mxu0 0.0
    %2212 = vmatpush1.msra.mxu0 0.0
    %2213 = vmatprep.subr.mxu0 0.0
    %2214 = vmatpush1.msra.mxu0 0.0
    %2215 = vmatprep.subr.mxu0 0.0
    %2216 = vmatpush1.msra.mxu0 0.0
    %2217 = vmatprep.subr.mxu0 0.0
    %2218 = vmatpush1.msra.mxu0 0.0
    %2219 = vmatprep.subr.mxu0 0.0
    %2220 = vmatpush1.msra.mxu0 %v2184
    %2221 = vmatprep.subr.mxu0 0.0
    %2222 = vmatpush2.msra.mxu0 0.0
    %2223 = vmatprep.subr.mxu0 0.0
    %2224 = vmatpush2.msra.mxu0 0.0
    %2225 = vmatprep.subr.mxu0 0.0
    %2226 = vmatpush2.msra.mxu0 0.0
    %2227 = vmatprep.subr.mxu0 0.0
    %2228 = vmatpush2.msra.mxu0 0.0
    %2229 = vmatprep.subr.mxu0 0.0
    %2230 = vmatpush2.msra.mxu0 0.0
    %2231 = vmatprep.subr.mxu0 0.0
    %2232 = vmatpush2.msra.mxu0 0.0
    %2233 = vmatprep.subr.mxu0 0.0
    %2234 = vmatpush2.msra.mxu0 0.0
    %2235 = vmatprep.subr.mxu0 0.0
    %2236 = vmatpush2.msra.mxu0 0.0
    %2237 = vmatprep.subr.mxu0 0.0
    %2238 = vmatpush2.msra.mxu0 0.0
    %2239 = vmatprep.subr.mxu0 0.0
    %2240 = vmatpush2.msra.mxu0 0.0
    %2241 = vmatprep.subr.mxu0 0.0
    %2242 = vmatpush2.msra.mxu0 0.0
    %2243 = vmatprep.subr.mxu0 0.0
    %2244 = vmatpush2.msra.mxu0 0.0
    %2245 = vmatprep.subr.mxu0 0.0
    %2246 = vmatpush2.msra.mxu0 0.0
    %2247 = vmatprep.subr.mxu0 0.0
    %2248 = vmatpush2.msra.mxu0 0.0
    %2249 = vmatprep.subr.mxu0 0.0
    %2250 = vmatpush2.msra.mxu0 0.0
    %2251 = vmatprep.subr.mxu0 0.0
    %2252 = vmatpush2.msra.mxu0 0.0
    %2253 = vmatprep.mubr.f32.mxu0 0.0
    %2254 = vmatmul.mubr.f32.gmra.mxu0 %v2187
    %v2255 = vpop.f32.mrf.mxu0
    %v2256 = vadd.f32 0.0, %v2255
    %v2257 = vpop.f32.mrf.mxu0
    %2258 = vdwg.mxu0
    %2259 = vrot.lane.b32.xlu0 %v2004, 64
    %v2260 = vpop.permute.xlu0 %2259
    %v2263 = vsel %vm228, %v2182, 0
    %2265 = vmatprep.subr.mxu0 0.0
    %2266 = vmatpush1.msra.mxu0 0.0
    %2267 = vmatprep.subr.mxu0 0.0
    %2268 = vmatpush1.msra.mxu0 0.0
    %2269 = vmatprep.subr.mxu0 0.0
    %2270 = vmatpush1.msra.mxu0 0.0
    %2271 = vmatprep.subr.mxu0 0.0
    %2272 = vmatpush1.msra.mxu0 0.0
    %2273 = vmatprep.subr.mxu0 0.0
    %2274 = vmatpush1.msra.mxu0 0.0
    %2275 = vmatprep.subr.mxu0 0.0
    %2276 = vmatpush1.msra.mxu0 0.0
    %2277 = vmatprep.subr.mxu0 0.0
    %2278 = vmatpush1.msra.mxu0 0.0
    %2279 = vmatprep.subr.mxu0 0.0
    %2280 = vmatpush1.msra.mxu0 0.0
    %2281 = vmatprep.subr.mxu0 0.0
    %2282 = vmatpush1.msra.mxu0 0.0
    %2283 = vmatprep.subr.mxu0 0.0
    %2284 = vmatpush1.msra.mxu0 0.0
    %2285 = vmatprep.subr.mxu0 0.0
    %2286 = vmatpush1.msra.mxu0 0.0
    %2287 = vmatprep.subr.mxu0 0.0
    %2288 = vmatpush1.msra.mxu0 0.0
    %2289 = vmatprep.subr.mxu0 0.0
    %2290 = vmatpush1.msra.mxu0 0.0
    %2291 = vmatprep.subr.mxu0 0.0
    %2292 = vmatpush1.msra.mxu0 0.0
    %2293 = vmatprep.subr.mxu0 0.0
    %2294 = vmatpush1.msra.mxu0 0.0
    %2295 = vmatprep.subr.mxu0 0.0
    %2296 = vmatpush1.msra.mxu0 %v2260
    %2297 = vmatprep.subr.mxu0 0.0
    %2298 = vmatpush2.msra.mxu0 0.0
    %2299 = vmatprep.subr.mxu0 0.0
    %2300 = vmatpush2.msra.mxu0 0.0
    %2301 = vmatprep.subr.mxu0 0.0
    %2302 = vmatpush2.msra.mxu0 0.0
    %2303 = vmatprep.subr.mxu0 0.0
    %2304 = vmatpush2.msra.mxu0 0.0
    %2305 = vmatprep.subr.mxu0 0.0
    %2306 = vmatpush2.msra.mxu0 0.0
    %2307 = vmatprep.subr.mxu0 0.0
    %2308 = vmatpush2.msra.mxu0 0.0
    %2309 = vmatprep.subr.mxu0 0.0
    %2310 = vmatpush2.msra.mxu0 0.0
    %2311 = vmatprep.subr.mxu0 0.0
    %2312 = vmatpush2.msra.mxu0 0.0
    %2313 = vmatprep.subr.mxu0 0.0
    %2314 = vmatpush2.msra.mxu0 0.0
    %2315 = vmatprep.subr.mxu0 0.0
    %2316 = vmatpush2.msra.mxu0 0.0
    %2317 = vmatprep.subr.mxu0 0.0
    %2318 = vmatpush2.msra.mxu0 0.0
    %2319 = vmatprep.subr.mxu0 0.0
    %2320 = vmatpush2.msra.mxu0 0.0
    %2321 = vmatprep.subr.mxu0 0.0
    %2322 = vmatpush2.msra.mxu0 0.0
    %2323 = vmatprep.subr.mxu0 0.0
    %2324 = vmatpush2.msra.mxu0 0.0
    %2325 = vmatprep.subr.mxu0 0.0
    %2326 = vmatpush2.msra.mxu0 0.0
    %2327 = vmatprep.subr.mxu0 0.0
    %2328 = vmatpush2.msra.mxu0 0.0
    %2329 = vmatprep.mubr.f32.mxu0 0.0
    %2330 = vmatmul.mubr.f32.gmra.mxu0 %v2263
    %v2331 = vpop.f32.mrf.mxu0
    %v2332 = vadd.f32 0.0, %v2331
    %v2333 = vpop.f32.mrf.mxu0
    %2334 = vdwg.mxu0
    %v2336 = vsel %vm228, %v2256, 0
    %v2339 = vsel %vm228, %v2332, 0
    %2341 = vmatprep.subr.mxu0 0.0
    %2342 = vmatpush1.msra.mxu0 0.0
    %2343 = vmatprep.subr.mxu0 0.0
    %2344 = vmatpush1.msra.mxu0 0.0
    %2345 = vmatprep.subr.mxu0 0.0
    %2346 = vmatpush1.msra.mxu0 0.0
    %2347 = vmatprep.subr.mxu0 0.0
    %2348 = vmatpush1.msra.mxu0 0.0
    %2349 = vmatprep.subr.mxu0 0.0
    %2350 = vmatpush1.msra.mxu0 0.0
    %2351 = vmatprep.subr.mxu0 0.0
    %2352 = vmatpush1.msra.mxu0 0.0
    %2353 = vmatprep.subr.mxu0 0.0
    %2354 = vmatpush1.msra.mxu0 0.0
    %2355 = vmatprep.subr.mxu0 0.0
    %2356 = vmatpush1.msra.mxu0 0.0
    %2357 = vmatprep.subr.mxu0 0.0
    %2358 = vmatpush1.msra.mxu0 0.0
    %2359 = vmatprep.subr.mxu0 0.0
    %2360 = vmatpush1.msra.mxu0 0.0
    %2361 = vmatprep.subr.mxu0 0.0
    %2362 = vmatpush1.msra.mxu0 0.0
    %2363 = vmatprep.subr.mxu0 0.0
    %2364 = vmatpush1.msra.mxu0 0.0
    %2365 = vmatprep.subr.mxu0 0.0
    %2366 = vmatpush1.msra.mxu0 0.0
    %2367 = vmatprep.subr.mxu0 0.0
    %2368 = vmatpush1.msra.mxu0 0.0
    %2369 = vmatprep.subr.mxu0 0.0
    %2370 = vmatpush1.msra.mxu0 0.0
    %2371 = vmatprep.subr.mxu0 0.0
    %2372 = vmatpush1.msra.mxu0 %v77
    %2373 = vmatprep.subr.mxu0 0.0
    %2374 = vmatpush2.msra.mxu0 0.0
    %2375 = vmatprep.subr.mxu0 0.0
    %2376 = vmatpush2.msra.mxu0 0.0
    %2377 = vmatprep.subr.mxu0 0.0
    %2378 = vmatpush2.msra.mxu0 0.0
    %2379 = vmatprep.subr.mxu0 0.0
    %2380 = vmatpush2.msra.mxu0 0.0
    %2381 = vmatprep.subr.mxu0 0.0
    %2382 = vmatpush2.msra.mxu0 0.0
    %2383 = vmatprep.subr.mxu0 0.0
    %2384 = vmatpush2.msra.mxu0 0.0
    %2385 = vmatprep.subr.mxu0 0.0
    %2386 = vmatpush2.msra.mxu0 0.0
    %2387 = vmatprep.subr.mxu0 0.0
    %2388 = vmatpush2.msra.mxu0 0.0
    %2389 = vmatprep.subr.mxu0 0.0
    %2390 = vmatpush2.msra.mxu0 0.0
    %2391 = vmatprep.subr.mxu0 0.0
    %2392 = vmatpush2.msra.mxu0 0.0
    %2393 = vmatprep.subr.mxu0 0.0
    %2394 = vmatpush2.msra.mxu0 0.0
    %2395 = vmatprep.subr.mxu0 0.0
    %2396 = vmatpush2.msra.mxu0 0.0
    %2397 = vmatprep.subr.mxu0 0.0
    %2398 = vmatpush2.msra.mxu0 0.0
    %2399 = vmatprep.subr.mxu0 0.0
    %2400 = vmatpush2.msra.mxu0 0.0
    %2401 = vmatprep.subr.mxu0 0.0
    %2402 = vmatpush2.msra.mxu0 0.0
    %2403 = vmatprep.subr.mxu0 0.0
    %2404 = vmatpush2.msra.mxu0 0.0
    %2405 = vmatprep.mubr.f32.mxu0 0.0
    %2406 = vmatmul.mubr.f32.gmra.mxu0 %v2336
    %v2407 = vpop.f32.mrf.mxu0
    %v2408 = vadd.f32 0.0, %v2407
    %v2409 = vpop.f32.mrf.mxu0
    %2410 = vmatprep.mubr.f32.mxu0 0.0
    %2411 = vmatmul.mubr.f32.gmra.mxu0 %v2339
    %v2412 = vpop.f32.mrf.mxu0
    %v2413 = vadd.f32 0.0, %v2412
    %v2414 = vpop.f32.mrf.mxu0
    %2415 = vdwg.mxu0
    %v2416 = vadd.f32 %v86, %v2408
    %v2417 = vadd.f32 %v86, %v2413
    %2418 = vrot.lane.b32.xlu0 %v1999, 120
    %v2419 = vpop.permute.xlu0 %2418
    %2420 = vrot.lane.b32.xlu0 %v1999, 88
    %v2421 = vpop.permute.xlu0 %2420
    %v2422 = vsel %vm228, %v2419, 0
    %v2424 = vsel %vm228, %v2421, 0
    %2426 = vmatprep.subr.mxu0 0.0
    %2427 = vmatpush1.xpose.msra.mxu0 0.0
    %2428 = vmatprep.subr.mxu0 0.0
    %2429 = vmatpush1.xpose.msra.mxu0 0.0
    %2430 = vmatprep.subr.mxu0 0.0
    %2431 = vmatpush1.xpose.msra.mxu0 0.0
    %2432 = vmatprep.subr.mxu0 0.0
    %2433 = vmatpush1.xpose.msra.mxu0 0.0
    %2434 = vmatprep.subr.mxu0 0.0
    %2435 = vmatpush1.xpose.msra.mxu0 0.0
    %2436 = vmatprep.subr.mxu0 0.0
    %2437 = vmatpush1.xpose.msra.mxu0 0.0
    %2438 = vmatprep.subr.mxu0 0.0
    %2439 = vmatpush1.xpose.msra.mxu0 0.0
    %2440 = vmatprep.subr.mxu0 0.0
    %2441 = vmatpush1.xpose.msra.mxu0 0.0
    %2442 = vmatprep.subr.mxu0 0.0
    %2443 = vmatpush1.xpose.msra.mxu0 0.0
    %2444 = vmatprep.subr.mxu0 0.0
    %2445 = vmatpush1.xpose.msra.mxu0 0.0
    %2446 = vmatprep.subr.mxu0 0.0
    %2447 = vmatpush1.xpose.msra.mxu0 0.0
    %2448 = vmatprep.subr.mxu0 0.0
    %2449 = vmatpush1.xpose.msra.mxu0 0.0
    %2450 = vmatprep.subr.mxu0 0.0
    %2451 = vmatpush1.xpose.msra.mxu0 0.0
    %2452 = vmatprep.subr.mxu0 0.0
    %2453 = vmatpush1.xpose.msra.mxu0 0.0
    %2454 = vmatprep.subr.mxu0 0.0
    %2455 = vmatpush1.xpose.msra.mxu0 0.0
    %2456 = vmatprep.subr.mxu0 0.0
    %2457 = vmatpush1.xpose.msra.mxu0 %v2424
    %2458 = vmatprep.subr.mxu0 0.0
    %2459 = vmatpush2.xpose.msra.mxu0 0.0
    %2460 = vmatprep.subr.mxu0 0.0
    %2461 = vmatpush2.xpose.msra.mxu0 0.0
    %2462 = vmatprep.subr.mxu0 0.0
    %2463 = vmatpush2.xpose.msra.mxu0 0.0
    %2464 = vmatprep.subr.mxu0 0.0
    %2465 = vmatpush2.xpose.msra.mxu0 0.0
    %2466 = vmatprep.subr.mxu0 0.0
    %2467 = vmatpush2.xpose.msra.mxu0 0.0
    %2468 = vmatprep.subr.mxu0 0.0
    %2469 = vmatpush2.xpose.msra.mxu0 0.0
    %2470 = vmatprep.subr.mxu0 0.0
    %2471 = vmatpush2.xpose.msra.mxu0 0.0
    %2472 = vmatprep.subr.mxu0 0.0
    %2473 = vmatpush2.xpose.msra.mxu0 0.0
    %2474 = vmatprep.subr.mxu0 0.0
    %2475 = vmatpush2.xpose.msra.mxu0 0.0
    %2476 = vmatprep.subr.mxu0 0.0
    %2477 = vmatpush2.xpose.msra.mxu0 0.0
    %2478 = vmatprep.subr.mxu0 0.0
    %2479 = vmatpush2.xpose.msra.mxu0 0.0
    %2480 = vmatprep.subr.mxu0 0.0
    %2481 = vmatpush2.xpose.msra.mxu0 0.0
    %2482 = vmatprep.subr.mxu0 0.0
    %2483 = vmatpush2.xpose.msra.mxu0 0.0
    %2484 = vmatprep.subr.mxu0 0.0
    %2485 = vmatpush2.xpose.msra.mxu0 0.0
    %2486 = vmatprep.subr.mxu0 0.0
    %2487 = vmatpush2.xpose.msra.mxu0 0.0
    %2488 = vmatprep.subr.mxu0 0.0
    %2489 = vmatpush2.xpose.msra.mxu0 0.0
    %2490 = vmatprep.mubr.f32.mxu0 0.0
    %2491 = vmatmul.mubr.f32.gmra.mxu0 %v2422
    %v2492 = vpop.f32.mrf.mxu0
    %v2493 = vadd.f32 %v93, %v2492
    %v2494 = vpop.f32.mrf.mxu0
    %2495 = vdwg.mxu0
    %2496 = vrot.lane.b32.xlu0 %v2004, 120
    %v2497 = vpop.permute.xlu0 %2496
    %2498 = vrot.lane.b32.xlu0 %v2004, 88
    %v2499 = vpop.permute.xlu0 %2498
    %v2500 = vsel %vm228, %v2497, 0
    %v2502 = vsel %vm228, %v2499, 0
    %2504 = vmatprep.subr.mxu0 0.0
    %2505 = vmatpush1.xpose.msra.mxu0 0.0
    %2506 = vmatprep.subr.mxu0 0.0
    %2507 = vmatpush1.xpose.msra.mxu0 0.0
    %2508 = vmatprep.subr.mxu0 0.0
    %2509 = vmatpush1.xpose.msra.mxu0 0.0
    %2510 = vmatprep.subr.mxu0 0.0
    %2511 = vmatpush1.xpose.msra.mxu0 0.0
    %2512 = vmatprep.subr.mxu0 0.0
    %2513 = vmatpush1.xpose.msra.mxu0 0.0
    %2514 = vmatprep.subr.mxu0 0.0
    %2515 = vmatpush1.xpose.msra.mxu0 0.0
    %2516 = vmatprep.subr.mxu0 0.0
    %2517 = vmatpush1.xpose.msra.mxu0 0.0
    %2518 = vmatprep.subr.mxu0 0.0
    %2519 = vmatpush1.xpose.msra.mxu0 0.0
    %2520 = vmatprep.subr.mxu0 0.0
    %2521 = vmatpush1.xpose.msra.mxu0 0.0
    %2522 = vmatprep.subr.mxu0 0.0
    %2523 = vmatpush1.xpose.msra.mxu0 0.0
    %2524 = vmatprep.subr.mxu0 0.0
    %2525 = vmatpush1.xpose.msra.mxu0 0.0
    %2526 = vmatprep.subr.mxu0 0.0
    %2527 = vmatpush1.xpose.msra.mxu0 0.0
    %2528 = vmatprep.subr.mxu0 0.0
    %2529 = vmatpush1.xpose.msra.mxu0 0.0
    %2530 = vmatprep.subr.mxu0 0.0
    %2531 = vmatpush1.xpose.msra.mxu0 0.0
    %2532 = vmatprep.subr.mxu0 0.0
    %2533 = vmatpush1.xpose.msra.mxu0 0.0
    %2534 = vmatprep.subr.mxu0 0.0
    %2535 = vmatpush1.xpose.msra.mxu0 %v2502
    %2536 = vmatprep.subr.mxu0 0.0
    %2537 = vmatpush2.xpose.msra.mxu0 0.0
    %2538 = vmatprep.subr.mxu0 0.0
    %2539 = vmatpush2.xpose.msra.mxu0 0.0
    %2540 = vmatprep.subr.mxu0 0.0
    %2541 = vmatpush2.xpose.msra.mxu0 0.0
    %2542 = vmatprep.subr.mxu0 0.0
    %2543 = vmatpush2.xpose.msra.mxu0 0.0
    %2544 = vmatprep.subr.mxu0 0.0
    %2545 = vmatpush2.xpose.msra.mxu0 0.0
    %2546 = vmatprep.subr.mxu0 0.0
    %2547 = vmatpush2.xpose.msra.mxu0 0.0
    %2548 = vmatprep.subr.mxu0 0.0
    %2549 = vmatpush2.xpose.msra.mxu0 0.0
    %2550 = vmatprep.subr.mxu0 0.0
    %2551 = vmatpush2.xpose.msra.mxu0 0.0
    %2552 = vmatprep.subr.mxu0 0.0
    %2553 = vmatpush2.xpose.msra.mxu0 0.0
    %2554 = vmatprep.subr.mxu0 0.0
    %2555 = vmatpush2.xpose.msra.mxu0 0.0
    %2556 = vmatprep.subr.mxu0 0.0
    %2557 = vmatpush2.xpose.msra.mxu0 0.0
    %2558 = vmatprep.subr.mxu0 0.0
    %2559 = vmatpush2.xpose.msra.mxu0 0.0
    %2560 = vmatprep.subr.mxu0 0.0
    %2561 = vmatpush2.xpose.msra.mxu0 0.0
    %2562 = vmatprep.subr.mxu0 0.0
    %2563 = vmatpush2.xpose.msra.mxu0 0.0
    %2564 = vmatprep.subr.mxu0 0.0
    %2565 = vmatpush2.xpose.msra.mxu0 0.0
    %2566 = vmatprep.subr.mxu0 0.0
    %2567 = vmatpush2.xpose.msra.mxu0 0.0
    %2568 = vmatprep.mubr.f32.mxu0 0.0
    %2569 = vmatmul.mubr.f32.gmra.mxu0 %v2500
    %v2570 = vpop.f32.mrf.mxu0
    %v2571 = vadd.f32 %v93, %v2570
    %v2572 = vpop.f32.mrf.mxu0
    %2573 = vdwg.mxu0
    %v2574 = vsel %vm228, %v2493, -inf
    %2575 = vmax.xlane.f32.xlu0 %v2574
    %v2576 = vpop.xlane.xlu0 %2575
    %v2577 = vsel %vm228, %v2571, -inf
    %2578 = vmax.xlane.f32.xlu0 %v2577
    %v2579 = vpop.xlane.xlu0 %2578
    %v2580 = vsub.f32 %v2493, %v2576
    %v2581 = vsub.f32 %v2571, %v2579
    %v2582 = vmul.f32 %v2580, 1.442695
    %v2583 = vpow.pop %v2582
    %v2584 = vmul.f32 %v2581, 1.442695
    %v2585 = vpow.pop %v2584
    %v2586 = vsel %vm228, %v2583, 0.0
    %2587 = vadd.xlane.f32.xlu0 %v2586
    %v2588 = vpop.xlane.xlu0 %2587
    %v2589 = vsel %vm228, %v2585, 0.0
    %2590 = vadd.xlane.f32.xlu0 %v2589
    %v2591 = vpop.xlane.xlu0 %2590
    %v2592 = vrcp.pop %v2588
    %v2593 = vrcp.pop %v2591
    %v2594 = vmul.f32 %v2583, %v2592
    %v2595 = vmul.f32 %v2585, %v2593
    %2596 = vrot.lane.b32.xlu0 %v1999, 56
    %v2597 = vpop.permute.xlu0 %2596
    %v2600 = vsel %vm228, %v2594, 0
    %2602 = vmatprep.subr.mxu0 0.0
    %2603 = vmatpush1.msra.mxu0 0.0
    %2604 = vmatprep.subr.mxu0 0.0
    %2605 = vmatpush1.msra.mxu0 0.0
    %2606 = vmatprep.subr.mxu0 0.0
    %2607 = vmatpush1.msra.mxu0 0.0
    %2608 = vmatprep.subr.mxu0 0.0
    %2609 = vmatpush1.msra.mxu0 0.0
    %2610 = vmatprep.subr.mxu0 0.0
    %2611 = vmatpush1.msra.mxu0 0.0
    %2612 = vmatprep.subr.mxu0 0.0
    %2613 = vmatpush1.msra.mxu0 0.0
    %2614 = vmatprep.subr.mxu0 0.0
    %2615 = vmatpush1.msra.mxu0 0.0
    %2616 = vmatprep.subr.mxu0 0.0
    %2617 = vmatpush1.msra.mxu0 0.0
    %2618 = vmatprep.subr.mxu0 0.0
    %2619 = vmatpush1.msra.mxu0 0.0
    %2620 = vmatprep.subr.mxu0 0.0
    %2621 = vmatpush1.msra.mxu0 0.0
    %2622 = vmatprep.subr.mxu0 0.0
    %2623 = vmatpush1.msra.mxu0 0.0
    %2624 = vmatprep.subr.mxu0 0.0
    %2625 = vmatpush1.msra.mxu0 0.0
    %2626 = vmatprep.subr.mxu0 0.0
    %2627 = vmatpush1.msra.mxu0 0.0
    %2628 = vmatprep.subr.mxu0 0.0
    %2629 = vmatpush1.msra.mxu0 0.0
    %2630 = vmatprep.subr.mxu0 0.0
    %2631 = vmatpush1.msra.mxu0 0.0
    %2632 = vmatprep.subr.mxu0 0.0
    %2633 = vmatpush1.msra.mxu0 %v2597
    %2634 = vmatprep.subr.mxu0 0.0
    %2635 = vmatpush2.msra.mxu0 0.0
    %2636 = vmatprep.subr.mxu0 0.0
    %2637 = vmatpush2.msra.mxu0 0.0
    %2638 = vmatprep.subr.mxu0 0.0
    %2639 = vmatpush2.msra.mxu0 0.0
    %2640 = vmatprep.subr.mxu0 0.0
    %2641 = vmatpush2.msra.mxu0 0.0
    %2642 = vmatprep.subr.mxu0 0.0
    %2643 = vmatpush2.msra.mxu0 0.0
    %2644 = vmatprep.subr.mxu0 0.0
    %2645 = vmatpush2.msra.mxu0 0.0
    %2646 = vmatprep.subr.mxu0 0.0
    %2647 = vmatpush2.msra.mxu0 0.0
    %2648 = vmatprep.subr.mxu0 0.0
    %2649 = vmatpush2.msra.mxu0 0.0
    %2650 = vmatprep.subr.mxu0 0.0
    %2651 = vmatpush2.msra.mxu0 0.0
    %2652 = vmatprep.subr.mxu0 0.0
    %2653 = vmatpush2.msra.mxu0 0.0
    %2654 = vmatprep.subr.mxu0 0.0
    %2655 = vmatpush2.msra.mxu0 0.0
    %2656 = vmatprep.subr.mxu0 0.0
    %2657 = vmatpush2.msra.mxu0 0.0
    %2658 = vmatprep.subr.mxu0 0.0
    %2659 = vmatpush2.msra.mxu0 0.0
    %2660 = vmatprep.subr.mxu0 0.0
    %2661 = vmatpush2.msra.mxu0 0.0
    %2662 = vmatprep.subr.mxu0 0.0
    %2663 = vmatpush2.msra.mxu0 0.0
    %2664 = vmatprep.subr.mxu0 0.0
    %2665 = vmatpush2.msra.mxu0 0.0
    %2666 = vmatprep.mubr.f32.mxu0 0.0
    %2667 = vmatmul.mubr.f32.gmra.mxu0 %v2600
    %v2668 = vpop.f32.mrf.mxu0
    %v2669 = vadd.f32 0.0, %v2668
    %v2670 = vpop.f32.mrf.mxu0
    %2671 = vdwg.mxu0
    %2672 = vrot.lane.b32.xlu0 %v2004, 56
    %v2673 = vpop.permute.xlu0 %2672
    %v2676 = vsel %vm228, %v2595, 0
    %2678 = vmatprep.subr.mxu0 0.0
    %2679 = vmatpush1.msra.mxu0 0.0
    %2680 = vmatprep.subr.mxu0 0.0
    %2681 = vmatpush1.msra.mxu0 0.0
    %2682 = vmatprep.subr.mxu0 0.0
    %2683 = vmatpush1.msra.mxu0 0.0
    %2684 = vmatprep.subr.mxu0 0.0
    %2685 = vmatpush1.msra.mxu0 0.0
    %2686 = vmatprep.subr.mxu0 0.0
    %2687 = vmatpush1.msra.mxu0 0.0
    %2688 = vmatprep.subr.mxu0 0.0
    %2689 = vmatpush1.msra.mxu0 0.0
    %2690 = vmatprep.subr.mxu0 0.0
    %2691 = vmatpush1.msra.mxu0 0.0
    %2692 = vmatprep.subr.mxu0 0.0
    %2693 = vmatpush1.msra.mxu0 0.0
    %2694 = vmatprep.subr.mxu0 0.0
    %2695 = vmatpush1.msra.mxu0 0.0
    %2696 = vmatprep.subr.mxu0 0.0
    %2697 = vmatpush1.msra.mxu0 0.0
    %2698 = vmatprep.subr.mxu0 0.0
    %2699 = vmatpush1.msra.mxu0 0.0
    %2700 = vmatprep.subr.mxu0 0.0
    %2701 = vmatpush1.msra.mxu0 0.0
    %2702 = vmatprep.subr.mxu0 0.0
    %2703 = vmatpush1.msra.mxu0 0.0
    %2704 = vmatprep.subr.mxu0 0.0
    %2705 = vmatpush1.msra.mxu0 0.0
    %2706 = vmatprep.subr.mxu0 0.0
    %2707 = vmatpush1.msra.mxu0 0.0
    %2708 = vmatprep.subr.mxu0 0.0
    %2709 = vmatpush1.msra.mxu0 %v2673
    %2710 = vmatprep.subr.mxu0 0.0
    %2711 = vmatpush2.msra.mxu0 0.0
    %2712 = vmatprep.subr.mxu0 0.0
    %2713 = vmatpush2.msra.mxu0 0.0
    %2714 = vmatprep.subr.mxu0 0.0
    %2715 = vmatpush2.msra.mxu0 0.0
    %2716 = vmatprep.subr.mxu0 0.0
    %2717 = vmatpush2.msra.mxu0 0.0
    %2718 = vmatprep.subr.mxu0 0.0
    %2719 = vmatpush2.msra.mxu0 0.0
    %2720 = vmatprep.subr.mxu0 0.0
    %2721 = vmatpush2.msra.mxu0 0.0
    %2722 = vmatprep.subr.mxu0 0.0
    %2723 = vmatpush2.msra.mxu0 0.0
    %2724 = vmatprep.subr.mxu0 0.0
    %2725 = vmatpush2.msra.mxu0 0.0
    %2726 = vmatprep.subr.mxu0 0.0
    %2727 = vmatpush2.msra.mxu0 0.0
    %2728 = vmatprep.subr.mxu0 0.0
    %2729 = vmatpush2.msra.mxu0 0.0
    %2730 = vmatprep.subr.mxu0 0.0
    %2731 = vmatpush2.msra.mxu0 0.0
    %2732 = vmatprep.subr.mxu0 0.0
    %2733 = vmatpush2.msra.mxu0 0.0
    %2734 = vmatprep.subr.mxu0 0.0
    %2735 = vmatpush2.msra.mxu0 0.0
    %2736 = vmatprep.subr.mxu0 0.0
    %2737 = vmatpush2.msra.mxu0 0.0
    %2738 = vmatprep.subr.mxu0 0.0
    %2739 = vmatpush2.msra.mxu0 0.0
    %2740 = vmatprep.subr.mxu0 0.0
    %2741 = vmatpush2.msra.mxu0 0.0
    %2742 = vmatprep.mubr.f32.mxu0 0.0
    %2743 = vmatmul.mubr.f32.gmra.mxu0 %v2676
    %v2744 = vpop.f32.mrf.mxu0
    %v2745 = vadd.f32 0.0, %v2744
    %v2746 = vpop.f32.mrf.mxu0
    %2747 = vdwg.mxu0
    %v2749 = vsel %vm228, %v2669, 0
    %v2752 = vsel %vm228, %v2745, 0
    %2754 = vmatprep.subr.mxu0 0.0
    %2755 = vmatpush1.msra.mxu0 0.0
    %2756 = vmatprep.subr.mxu0 0.0
    %2757 = vmatpush1.msra.mxu0 0.0
    %2758 = vmatprep.subr.mxu0 0.0
    %2759 = vmatpush1.msra.mxu0 0.0
    %2760 = vmatprep.subr.mxu0 0.0
    %2761 = vmatpush1.msra.mxu0 0.0
    %2762 = vmatprep.subr.mxu0 0.0
    %2763 = vmatpush1.msra.mxu0 0.0
    %2764 = vmatprep.subr.mxu0 0.0
    %2765 = vmatpush1.msra.mxu0 0.0
    %2766 = vmatprep.subr.mxu0 0.0
    %2767 = vmatpush1.msra.mxu0 0.0
    %2768 = vmatprep.subr.mxu0 0.0
    %2769 = vmatpush1.msra.mxu0 0.0
    %2770 = vmatprep.subr.mxu0 0.0
    %2771 = vmatpush1.msra.mxu0 0.0
    %2772 = vmatprep.subr.mxu0 0.0
    %2773 = vmatpush1.msra.mxu0 0.0
    %2774 = vmatprep.subr.mxu0 0.0
    %2775 = vmatpush1.msra.mxu0 0.0
    %2776 = vmatprep.subr.mxu0 0.0
    %2777 = vmatpush1.msra.mxu0 0.0
    %2778 = vmatprep.subr.mxu0 0.0
    %2779 = vmatpush1.msra.mxu0 0.0
    %2780 = vmatprep.subr.mxu0 0.0
    %2781 = vmatpush1.msra.mxu0 0.0
    %2782 = vmatprep.subr.mxu0 0.0
    %2783 = vmatpush1.msra.mxu0 0.0
    %2784 = vmatprep.subr.mxu0 0.0
    %2785 = vmatpush1.msra.mxu0 %v78
    %2786 = vmatprep.subr.mxu0 0.0
    %2787 = vmatpush2.msra.mxu0 0.0
    %2788 = vmatprep.subr.mxu0 0.0
    %2789 = vmatpush2.msra.mxu0 0.0
    %2790 = vmatprep.subr.mxu0 0.0
    %2791 = vmatpush2.msra.mxu0 0.0
    %2792 = vmatprep.subr.mxu0 0.0
    %2793 = vmatpush2.msra.mxu0 0.0
    %2794 = vmatprep.subr.mxu0 0.0
    %2795 = vmatpush2.msra.mxu0 0.0
    %2796 = vmatprep.subr.mxu0 0.0
    %2797 = vmatpush2.msra.mxu0 0.0
    %2798 = vmatprep.subr.mxu0 0.0
    %2799 = vmatpush2.msra.mxu0 0.0
    %2800 = vmatprep.subr.mxu0 0.0
    %2801 = vmatpush2.msra.mxu0 0.0
    %2802 = vmatprep.subr.mxu0 0.0
    %2803 = vmatpush2.msra.mxu0 0.0
    %2804 = vmatprep.subr.mxu0 0.0
    %2805 = vmatpush2.msra.mxu0 0.0
    %2806 = vmatprep.subr.mxu0 0.0
    %2807 = vmatpush2.msra.mxu0 0.0
    %2808 = vmatprep.subr.mxu0 0.0
    %2809 = vmatpush2.msra.mxu0 0.0
    %2810 = vmatprep.subr.mxu0 0.0
    %2811 = vmatpush2.msra.mxu0 0.0
    %2812 = vmatprep.subr.mxu0 0.0
    %2813 = vmatpush2.msra.mxu0 0.0
    %2814 = vmatprep.subr.mxu0 0.0
    %2815 = vmatpush2.msra.mxu0 0.0
    %2816 = vmatprep.subr.mxu0 0.0
    %2817 = vmatpush2.msra.mxu0 0.0
    %2818 = vmatprep.mubr.f32.mxu0 0.0
    %2819 = vmatmul.mubr.f32.gmra.mxu0 %v2749
    %v2820 = vpop.f32.mrf.mxu0
    %v2821 = vadd.f32 0.0, %v2820
    %v2822 = vpop.f32.mrf.mxu0
    %2823 = vmatprep.mubr.f32.mxu0 0.0
    %2824 = vmatmul.mubr.f32.gmra.mxu0 %v2752
    %v2825 = vpop.f32.mrf.mxu0
    %v2826 = vadd.f32 0.0, %v2825
    %v2827 = vpop.f32.mrf.mxu0
    %2828 = vdwg.mxu0
    %v2829 = vadd.f32 %v2416, %v2821
    %v2830 = vadd.f32 %v2417, %v2826
    %2831 = vrot.lane.b32.xlu0 %v1999, 112
    %v2832 = vpop.permute.xlu0 %2831
    %2833 = vrot.lane.b32.xlu0 %v1999, 80
    %v2834 = vpop.permute.xlu0 %2833
    %v2835 = vsel %vm228, %v2832, 0
    %v2837 = vsel %vm228, %v2834, 0
    %2839 = vmatprep.subr.mxu0 0.0
    %2840 = vmatpush1.xpose.msra.mxu0 0.0
    %2841 = vmatprep.subr.mxu0 0.0
    %2842 = vmatpush1.xpose.msra.mxu0 0.0
    %2843 = vmatprep.subr.mxu0 0.0
    %2844 = vmatpush1.xpose.msra.mxu0 0.0
    %2845 = vmatprep.subr.mxu0 0.0
    %2846 = vmatpush1.xpose.msra.mxu0 0.0
    %2847 = vmatprep.subr.mxu0 0.0
    %2848 = vmatpush1.xpose.msra.mxu0 0.0
    %2849 = vmatprep.subr.mxu0 0.0
    %2850 = vmatpush1.xpose.msra.mxu0 0.0
    %2851 = vmatprep.subr.mxu0 0.0
    %2852 = vmatpush1.xpose.msra.mxu0 0.0
    %2853 = vmatprep.subr.mxu0 0.0
    %2854 = vmatpush1.xpose.msra.mxu0 0.0
    %2855 = vmatprep.subr.mxu0 0.0
    %2856 = vmatpush1.xpose.msra.mxu0 0.0
    %2857 = vmatprep.subr.mxu0 0.0
    %2858 = vmatpush1.xpose.msra.mxu0 0.0
    %2859 = vmatprep.subr.mxu0 0.0
    %2860 = vmatpush1.xpose.msra.mxu0 0.0
    %2861 = vmatprep.subr.mxu0 0.0
    %2862 = vmatpush1.xpose.msra.mxu0 0.0
    %2863 = vmatprep.subr.mxu0 0.0
    %2864 = vmatpush1.xpose.msra.mxu0 0.0
    %2865 = vmatprep.subr.mxu0 0.0
    %2866 = vmatpush1.xpose.msra.mxu0 0.0
    %2867 = vmatprep.subr.mxu0 0.0
    %2868 = vmatpush1.xpose.msra.mxu0 0.0
    %2869 = vmatprep.subr.mxu0 0.0
    %2870 = vmatpush1.xpose.msra.mxu0 %v2837
    %2871 = vmatprep.subr.mxu0 0.0
    %2872 = vmatpush2.xpose.msra.mxu0 0.0
    %2873 = vmatprep.subr.mxu0 0.0
    %2874 = vmatpush2.xpose.msra.mxu0 0.0
    %2875 = vmatprep.subr.mxu0 0.0
    %2876 = vmatpush2.xpose.msra.mxu0 0.0
    %2877 = vmatprep.subr.mxu0 0.0
    %2878 = vmatpush2.xpose.msra.mxu0 0.0
    %2879 = vmatprep.subr.mxu0 0.0
    %2880 = vmatpush2.xpose.msra.mxu0 0.0
    %2881 = vmatprep.subr.mxu0 0.0
    %2882 = vmatpush2.xpose.msra.mxu0 0.0
    %2883 = vmatprep.subr.mxu0 0.0
    %2884 = vmatpush2.xpose.msra.mxu0 0.0
    %2885 = vmatprep.subr.mxu0 0.0
    %2886 = vmatpush2.xpose.msra.mxu0 0.0
    %2887 = vmatprep.subr.mxu0 0.0
    %2888 = vmatpush2.xpose.msra.mxu0 0.0
    %2889 = vmatprep.subr.mxu0 0.0
    %2890 = vmatpush2.xpose.msra.mxu0 0.0
    %2891 = vmatprep.subr.mxu0 0.0
    %2892 = vmatpush2.xpose.msra.mxu0 0.0
    %2893 = vmatprep.subr.mxu0 0.0
    %2894 = vmatpush2.xpose.msra.mxu0 0.0
    %2895 = vmatprep.subr.mxu0 0.0
    %2896 = vmatpush2.xpose.msra.mxu0 0.0
    %2897 = vmatprep.subr.mxu0 0.0
    %2898 = vmatpush2.xpose.msra.mxu0 0.0
    %2899 = vmatprep.subr.mxu0 0.0
    %2900 = vmatpush2.xpose.msra.mxu0 0.0
    %2901 = vmatprep.subr.mxu0 0.0
    %2902 = vmatpush2.xpose.msra.mxu0 0.0
    %2903 = vmatprep.mubr.f32.mxu0 0.0
    %2904 = vmatmul.mubr.f32.gmra.mxu0 %v2835
    %v2905 = vpop.f32.mrf.mxu0
    %v2906 = vadd.f32 %v93, %v2905
    %v2907 = vpop.f32.mrf.mxu0
    %2908 = vdwg.mxu0
    %2909 = vrot.lane.b32.xlu0 %v2004, 112
    %v2910 = vpop.permute.xlu0 %2909
    %2911 = vrot.lane.b32.xlu0 %v2004, 80
    %v2912 = vpop.permute.xlu0 %2911
    %v2913 = vsel %vm228, %v2910, 0
    %v2915 = vsel %vm228, %v2912, 0
    %2917 = vmatprep.subr.mxu0 0.0
    %2918 = vmatpush1.xpose.msra.mxu0 0.0
    %2919 = vmatprep.subr.mxu0 0.0
    %2920 = vmatpush1.xpose.msra.mxu0 0.0
    %2921 = vmatprep.subr.mxu0 0.0
    %2922 = vmatpush1.xpose.msra.mxu0 0.0
    %2923 = vmatprep.subr.mxu0 0.0
    %2924 = vmatpush1.xpose.msra.mxu0 0.0
    %2925 = vmatprep.subr.mxu0 0.0
    %2926 = vmatpush1.xpose.msra.mxu0 0.0
    %2927 = vmatprep.subr.mxu0 0.0
    %2928 = vmatpush1.xpose.msra.mxu0 0.0
    %2929 = vmatprep.subr.mxu0 0.0
    %2930 = vmatpush1.xpose.msra.mxu0 0.0
    %2931 = vmatprep.subr.mxu0 0.0
    %2932 = vmatpush1.xpose.msra.mxu0 0.0
    %2933 = vmatprep.subr.mxu0 0.0
    %2934 = vmatpush1.xpose.msra.mxu0 0.0
    %2935 = vmatprep.subr.mxu0 0.0
    %2936 = vmatpush1.xpose.msra.mxu0 0.0
    %2937 = vmatprep.subr.mxu0 0.0
    %2938 = vmatpush1.xpose.msra.mxu0 0.0
    %2939 = vmatprep.subr.mxu0 0.0
    %2940 = vmatpush1.xpose.msra.mxu0 0.0
    %2941 = vmatprep.subr.mxu0 0.0
    %2942 = vmatpush1.xpose.msra.mxu0 0.0
    %2943 = vmatprep.subr.mxu0 0.0
    %2944 = vmatpush1.xpose.msra.mxu0 0.0
    %2945 = vmatprep.subr.mxu0 0.0
    %2946 = vmatpush1.xpose.msra.mxu0 0.0
    %2947 = vmatprep.subr.mxu0 0.0
    %2948 = vmatpush1.xpose.msra.mxu0 %v2915
    %2949 = vmatprep.subr.mxu0 0.0
    %2950 = vmatpush2.xpose.msra.mxu0 0.0
    %2951 = vmatprep.subr.mxu0 0.0
    %2952 = vmatpush2.xpose.msra.mxu0 0.0
    %2953 = vmatprep.subr.mxu0 0.0
    %2954 = vmatpush2.xpose.msra.mxu0 0.0
    %2955 = vmatprep.subr.mxu0 0.0
    %2956 = vmatpush2.xpose.msra.mxu0 0.0
    %2957 = vmatprep.subr.mxu0 0.0
    %2958 = vmatpush2.xpose.msra.mxu0 0.0
    %2959 = vmatprep.subr.mxu0 0.0
    %2960 = vmatpush2.xpose.msra.mxu0 0.0
    %2961 = vmatprep.subr.mxu0 0.0
    %2962 = vmatpush2.xpose.msra.mxu0 0.0
    %2963 = vmatprep.subr.mxu0 0.0
    %2964 = vmatpush2.xpose.msra.mxu0 0.0
    %2965 = vmatprep.subr.mxu0 0.0
    %2966 = vmatpush2.xpose.msra.mxu0 0.0
    %2967 = vmatprep.subr.mxu0 0.0
    %2968 = vmatpush2.xpose.msra.mxu0 0.0
    %2969 = vmatprep.subr.mxu0 0.0
    %2970 = vmatpush2.xpose.msra.mxu0 0.0
    %2971 = vmatprep.subr.mxu0 0.0
    %2972 = vmatpush2.xpose.msra.mxu0 0.0
    %2973 = vmatprep.subr.mxu0 0.0
    %2974 = vmatpush2.xpose.msra.mxu0 0.0
    %2975 = vmatprep.subr.mxu0 0.0
    %2976 = vmatpush2.xpose.msra.mxu0 0.0
    %2977 = vmatprep.subr.mxu0 0.0
    %2978 = vmatpush2.xpose.msra.mxu0 0.0
    %2979 = vmatprep.subr.mxu0 0.0
    %2980 = vmatpush2.xpose.msra.mxu0 0.0
    %2981 = vmatprep.mubr.f32.mxu0 0.0
    %2982 = vmatmul.mubr.f32.gmra.mxu0 %v2913
    %v2983 = vpop.f32.mrf.mxu0
    %v2984 = vadd.f32 %v93, %v2983
    %v2985 = vpop.f32.mrf.mxu0
    %2986 = vdwg.mxu0
    %v2987 = vsel %vm228, %v2906, -inf
    %2988 = vmax.xlane.f32.xlu0 %v2987
    %v2989 = vpop.xlane.xlu0 %2988
    %v2990 = vsel %vm228, %v2984, -inf
    %2991 = vmax.xlane.f32.xlu0 %v2990
    %v2992 = vpop.xlane.xlu0 %2991
    %v2993 = vsub.f32 %v2906, %v2989
    %v2994 = vsub.f32 %v2984, %v2992
    %v2995 = vmul.f32 %v2993, 1.442695
    %v2996 = vpow.pop %v2995
    %v2997 = vmul.f32 %v2994, 1.442695
    %v2998 = vpow.pop %v2997
    %v2999 = vsel %vm228, %v2996, 0.0
    %3000 = vadd.xlane.f32.xlu0 %v2999
    %v3001 = vpop.xlane.xlu0 %3000
    %v3002 = vsel %vm228, %v2998, 0.0
    %3003 = vadd.xlane.f32.xlu0 %v3002
    %v3004 = vpop.xlane.xlu0 %3003
    %v3005 = vrcp.pop %v3001
    %v3006 = vrcp.pop %v3004
    %v3007 = vmul.f32 %v2996, %v3005
    %v3008 = vmul.f32 %v2998, %v3006
    %3009 = vrot.lane.b32.xlu0 %v1999, 48
    %v3010 = vpop.permute.xlu0 %3009
    %v3013 = vsel %vm228, %v3007, 0
    %3015 = vmatprep.subr.mxu0 0.0
    %3016 = vmatpush1.msra.mxu0 0.0
    %3017 = vmatprep.subr.mxu0 0.0
    %3018 = vmatpush1.msra.mxu0 0.0
    %3019 = vmatprep.subr.mxu0 0.0
    %3020 = vmatpush1.msra.mxu0 0.0
    %3021 = vmatprep.subr.mxu0 0.0
    %3022 = vmatpush1.msra.mxu0 0.0
    %3023 = vmatprep.subr.mxu0 0.0
    %3024 = vmatpush1.msra.mxu0 0.0
    %3025 = vmatprep.subr.mxu0 0.0
    %3026 = vmatpush1.msra.mxu0 0.0
    %3027 = vmatprep.subr.mxu0 0.0
    %3028 = vmatpush1.msra.mxu0 0.0
    %3029 = vmatprep.subr.mxu0 0.0
    %3030 = vmatpush1.msra.mxu0 0.0
    %3031 = vmatprep.subr.mxu0 0.0
    %3032 = vmatpush1.msra.mxu0 0.0
    %3033 = vmatprep.subr.mxu0 0.0
    %3034 = vmatpush1.msra.mxu0 0.0
    %3035 = vmatprep.subr.mxu0 0.0
    %3036 = vmatpush1.msra.mxu0 0.0
    %3037 = vmatprep.subr.mxu0 0.0
    %3038 = vmatpush1.msra.mxu0 0.0
    %3039 = vmatprep.subr.mxu0 0.0
    %3040 = vmatpush1.msra.mxu0 0.0
    %3041 = vmatprep.subr.mxu0 0.0
    %3042 = vmatpush1.msra.mxu0 0.0
    %3043 = vmatprep.subr.mxu0 0.0
    %3044 = vmatpush1.msra.mxu0 0.0
    %3045 = vmatprep.subr.mxu0 0.0
    %3046 = vmatpush1.msra.mxu0 %v3010
    %3047 = vmatprep.subr.mxu0 0.0
    %3048 = vmatpush2.msra.mxu0 0.0
    %3049 = vmatprep.subr.mxu0 0.0
    %3050 = vmatpush2.msra.mxu0 0.0
    %3051 = vmatprep.subr.mxu0 0.0
    %3052 = vmatpush2.msra.mxu0 0.0
    %3053 = vmatprep.subr.mxu0 0.0
    %3054 = vmatpush2.msra.mxu0 0.0
    %3055 = vmatprep.subr.mxu0 0.0
    %3056 = vmatpush2.msra.mxu0 0.0
    %3057 = vmatprep.subr.mxu0 0.0
    %3058 = vmatpush2.msra.mxu0 0.0
    %3059 = vmatprep.subr.mxu0 0.0
    %3060 = vmatpush2.msra.mxu0 0.0
    %3061 = vmatprep.subr.mxu0 0.0
    %3062 = vmatpush2.msra.mxu0 0.0
    %3063 = vmatprep.subr.mxu0 0.0
    %3064 = vmatpush2.msra.mxu0 0.0
    %3065 = vmatprep.subr.mxu0 0.0
    %3066 = vmatpush2.msra.mxu0 0.0
    %3067 = vmatprep.subr.mxu0 0.0
    %3068 = vmatpush2.msra.mxu0 0.0
    %3069 = vmatprep.subr.mxu0 0.0
    %3070 = vmatpush2.msra.mxu0 0.0
    %3071 = vmatprep.subr.mxu0 0.0
    %3072 = vmatpush2.msra.mxu0 0.0
    %3073 = vmatprep.subr.mxu0 0.0
    %3074 = vmatpush2.msra.mxu0 0.0
    %3075 = vmatprep.subr.mxu0 0.0
    %3076 = vmatpush2.msra.mxu0 0.0
    %3077 = vmatprep.subr.mxu0 0.0
    %3078 = vmatpush2.msra.mxu0 0.0
    %3079 = vmatprep.mubr.f32.mxu0 0.0
    %3080 = vmatmul.mubr.f32.gmra.mxu0 %v3013
    %v3081 = vpop.f32.mrf.mxu0
    %v3082 = vadd.f32 0.0, %v3081
    %v3083 = vpop.f32.mrf.mxu0
    %3084 = vdwg.mxu0
    %3085 = vrot.lane.b32.xlu0 %v2004, 48
    %v3086 = vpop.permute.xlu0 %3085
    %v3089 = vsel %vm228, %v3008, 0
    %3091 = vmatprep.subr.mxu0 0.0
    %3092 = vmatpush1.msra.mxu0 0.0
    %3093 = vmatprep.subr.mxu0 0.0
    %3094 = vmatpush1.msra.mxu0 0.0
    %3095 = vmatprep.subr.mxu0 0.0
    %3096 = vmatpush1.msra.mxu0 0.0
    %3097 = vmatprep.subr.mxu0 0.0
    %3098 = vmatpush1.msra.mxu0 0.0
    %3099 = vmatprep.subr.mxu0 0.0
    %3100 = vmatpush1.msra.mxu0 0.0
    %3101 = vmatprep.subr.mxu0 0.0
    %3102 = vmatpush1.msra.mxu0 0.0
    %3103 = vmatprep.subr.mxu0 0.0
    %3104 = vmatpush1.msra.mxu0 0.0
    %3105 = vmatprep.subr.mxu0 0.0
    %3106 = vmatpush1.msra.mxu0 0.0
    %3107 = vmatprep.subr.mxu0 0.0
    %3108 = vmatpush1.msra.mxu0 0.0
    %3109 = vmatprep.subr.mxu0 0.0
    %3110 = vmatpush1.msra.mxu0 0.0
    %3111 = vmatprep.subr.mxu0 0.0
    %3112 = vmatpush1.msra.mxu0 0.0
    %3113 = vmatprep.subr.mxu0 0.0
    %3114 = vmatpush1.msra.mxu0 0.0
    %3115 = vmatprep.subr.mxu0 0.0
    %3116 = vmatpush1.msra.mxu0 0.0
    %3117 = vmatprep.subr.mxu0 0.0
    %3118 = vmatpush1.msra.mxu0 0.0
    %3119 = vmatprep.subr.mxu0 0.0
    %3120 = vmatpush1.msra.mxu0 0.0
    %3121 = vmatprep.subr.mxu0 0.0
    %3122 = vmatpush1.msra.mxu0 %v3086
    %3123 = vmatprep.subr.mxu0 0.0
    %3124 = vmatpush2.msra.mxu0 0.0
    %3125 = vmatprep.subr.mxu0 0.0
    %3126 = vmatpush2.msra.mxu0 0.0
    %3127 = vmatprep.subr.mxu0 0.0
    %3128 = vmatpush2.msra.mxu0 0.0
    %3129 = vmatprep.subr.mxu0 0.0
    %3130 = vmatpush2.msra.mxu0 0.0
    %3131 = vmatprep.subr.mxu0 0.0
    %3132 = vmatpush2.msra.mxu0 0.0
    %3133 = vmatprep.subr.mxu0 0.0
    %3134 = vmatpush2.msra.mxu0 0.0
    %3135 = vmatprep.subr.mxu0 0.0
    %3136 = vmatpush2.msra.mxu0 0.0
    %3137 = vmatprep.subr.mxu0 0.0
    %3138 = vmatpush2.msra.mxu0 0.0
    %3139 = vmatprep.subr.mxu0 0.0
    %3140 = vmatpush2.msra.mxu0 0.0
    %3141 = vmatprep.subr.mxu0 0.0
    %3142 = vmatpush2.msra.mxu0 0.0
    %3143 = vmatprep.subr.mxu0 0.0
    %3144 = vmatpush2.msra.mxu0 0.0
    %3145 = vmatprep.subr.mxu0 0.0
    %3146 = vmatpush2.msra.mxu0 0.0
    %3147 = vmatprep.subr.mxu0 0.0
    %3148 = vmatpush2.msra.mxu0 0.0
    %3149 = vmatprep.subr.mxu0 0.0
    %3150 = vmatpush2.msra.mxu0 0.0
    %3151 = vmatprep.subr.mxu0 0.0
    %3152 = vmatpush2.msra.mxu0 0.0
    %3153 = vmatprep.subr.mxu0 0.0
    %3154 = vmatpush2.msra.mxu0 0.0
    %3155 = vmatprep.mubr.f32.mxu0 0.0
    %3156 = vmatmul.mubr.f32.gmra.mxu0 %v3089
    %v3157 = vpop.f32.mrf.mxu0
    %v3158 = vadd.f32 0.0, %v3157
    %v3159 = vpop.f32.mrf.mxu0
    %3160 = vdwg.mxu0
    %v3162 = vsel %vm228, %v3082, 0
    %v3165 = vsel %vm228, %v3158, 0
    %3167 = vmatprep.subr.mxu0 0.0
    %3168 = vmatpush1.msra.mxu0 0.0
    %3169 = vmatprep.subr.mxu0 0.0
    %3170 = vmatpush1.msra.mxu0 0.0
    %3171 = vmatprep.subr.mxu0 0.0
    %3172 = vmatpush1.msra.mxu0 0.0
    %3173 = vmatprep.subr.mxu0 0.0
    %3174 = vmatpush1.msra.mxu0 0.0
    %3175 = vmatprep.subr.mxu0 0.0
    %3176 = vmatpush1.msra.mxu0 0.0
    %3177 = vmatprep.subr.mxu0 0.0
    %3178 = vmatpush1.msra.mxu0 0.0
    %3179 = vmatprep.subr.mxu0 0.0
    %3180 = vmatpush1.msra.mxu0 0.0
    %3181 = vmatprep.subr.mxu0 0.0
    %3182 = vmatpush1.msra.mxu0 0.0
    %3183 = vmatprep.subr.mxu0 0.0
    %3184 = vmatpush1.msra.mxu0 0.0
    %3185 = vmatprep.subr.mxu0 0.0
    %3186 = vmatpush1.msra.mxu0 0.0
    %3187 = vmatprep.subr.mxu0 0.0
    %3188 = vmatpush1.msra.mxu0 0.0
    %3189 = vmatprep.subr.mxu0 0.0
    %3190 = vmatpush1.msra.mxu0 0.0
    %3191 = vmatprep.subr.mxu0 0.0
    %3192 = vmatpush1.msra.mxu0 0.0
    %3193 = vmatprep.subr.mxu0 0.0
    %3194 = vmatpush1.msra.mxu0 0.0
    %3195 = vmatprep.subr.mxu0 0.0
    %3196 = vmatpush1.msra.mxu0 0.0
    %3197 = vmatprep.subr.mxu0 0.0
    %3198 = vmatpush1.msra.mxu0 %v79
    %3199 = vmatprep.subr.mxu0 0.0
    %3200 = vmatpush2.msra.mxu0 0.0
    %3201 = vmatprep.subr.mxu0 0.0
    %3202 = vmatpush2.msra.mxu0 0.0
    %3203 = vmatprep.subr.mxu0 0.0
    %3204 = vmatpush2.msra.mxu0 0.0
    %3205 = vmatprep.subr.mxu0 0.0
    %3206 = vmatpush2.msra.mxu0 0.0
    %3207 = vmatprep.subr.mxu0 0.0
    %3208 = vmatpush2.msra.mxu0 0.0
    %3209 = vmatprep.subr.mxu0 0.0
    %3210 = vmatpush2.msra.mxu0 0.0
    %3211 = vmatprep.subr.mxu0 0.0
    %3212 = vmatpush2.msra.mxu0 0.0
    %3213 = vmatprep.subr.mxu0 0.0
    %3214 = vmatpush2.msra.mxu0 0.0
    %3215 = vmatprep.subr.mxu0 0.0
    %3216 = vmatpush2.msra.mxu0 0.0
    %3217 = vmatprep.subr.mxu0 0.0
    %3218 = vmatpush2.msra.mxu0 0.0
    %3219 = vmatprep.subr.mxu0 0.0
    %3220 = vmatpush2.msra.mxu0 0.0
    %3221 = vmatprep.subr.mxu0 0.0
    %3222 = vmatpush2.msra.mxu0 0.0
    %3223 = vmatprep.subr.mxu0 0.0
    %3224 = vmatpush2.msra.mxu0 0.0
    %3225 = vmatprep.subr.mxu0 0.0
    %3226 = vmatpush2.msra.mxu0 0.0
    %3227 = vmatprep.subr.mxu0 0.0
    %3228 = vmatpush2.msra.mxu0 0.0
    %3229 = vmatprep.subr.mxu0 0.0
    %3230 = vmatpush2.msra.mxu0 0.0
    %3231 = vmatprep.mubr.f32.mxu0 0.0
    %3232 = vmatmul.mubr.f32.gmra.mxu0 %v3162
    %v3233 = vpop.f32.mrf.mxu0
    %v3234 = vadd.f32 0.0, %v3233
    %v3235 = vpop.f32.mrf.mxu0
    %3236 = vmatprep.mubr.f32.mxu0 0.0
    %3237 = vmatmul.mubr.f32.gmra.mxu0 %v3165
    %v3238 = vpop.f32.mrf.mxu0
    %v3239 = vadd.f32 0.0, %v3238
    %v3240 = vpop.f32.mrf.mxu0
    %3241 = vdwg.mxu0
    %v3242 = vadd.f32 %v2829, %v3234
    %v3243 = vadd.f32 %v2830, %v3239
    %3244 = vrot.lane.b32.xlu0 %v1999, 104
    %v3245 = vpop.permute.xlu0 %3244
    %3246 = vrot.lane.b32.xlu0 %v1999, 72
    %v3247 = vpop.permute.xlu0 %3246
    %v3248 = vsel %vm228, %v3245, 0
    %v3250 = vsel %vm228, %v3247, 0
    %3252 = vmatprep.subr.mxu0 0.0
    %3253 = vmatpush1.xpose.msra.mxu0 0.0
    %3254 = vmatprep.subr.mxu0 0.0
    %3255 = vmatpush1.xpose.msra.mxu0 0.0
    %3256 = vmatprep.subr.mxu0 0.0
    %3257 = vmatpush1.xpose.msra.mxu0 0.0
    %3258 = vmatprep.subr.mxu0 0.0
    %3259 = vmatpush1.xpose.msra.mxu0 0.0
    %3260 = vmatprep.subr.mxu0 0.0
    %3261 = vmatpush1.xpose.msra.mxu0 0.0
    %3262 = vmatprep.subr.mxu0 0.0
    %3263 = vmatpush1.xpose.msra.mxu0 0.0
    %3264 = vmatprep.subr.mxu0 0.0
    %3265 = vmatpush1.xpose.msra.mxu0 0.0
    %3266 = vmatprep.subr.mxu0 0.0
    %3267 = vmatpush1.xpose.msra.mxu0 0.0
    %3268 = vmatprep.subr.mxu0 0.0
    %3269 = vmatpush1.xpose.msra.mxu0 0.0
    %3270 = vmatprep.subr.mxu0 0.0
    %3271 = vmatpush1.xpose.msra.mxu0 0.0
    %3272 = vmatprep.subr.mxu0 0.0
    %3273 = vmatpush1.xpose.msra.mxu0 0.0
    %3274 = vmatprep.subr.mxu0 0.0
    %3275 = vmatpush1.xpose.msra.mxu0 0.0
    %3276 = vmatprep.subr.mxu0 0.0
    %3277 = vmatpush1.xpose.msra.mxu0 0.0
    %3278 = vmatprep.subr.mxu0 0.0
    %3279 = vmatpush1.xpose.msra.mxu0 0.0
    %3280 = vmatprep.subr.mxu0 0.0
    %3281 = vmatpush1.xpose.msra.mxu0 0.0
    %3282 = vmatprep.subr.mxu0 0.0
    %3283 = vmatpush1.xpose.msra.mxu0 %v3250
    %3284 = vmatprep.subr.mxu0 0.0
    %3285 = vmatpush2.xpose.msra.mxu0 0.0
    %3286 = vmatprep.subr.mxu0 0.0
    %3287 = vmatpush2.xpose.msra.mxu0 0.0
    %3288 = vmatprep.subr.mxu0 0.0
    %3289 = vmatpush2.xpose.msra.mxu0 0.0
    %3290 = vmatprep.subr.mxu0 0.0
    %3291 = vmatpush2.xpose.msra.mxu0 0.0
    %3292 = vmatprep.subr.mxu0 0.0
    %3293 = vmatpush2.xpose.msra.mxu0 0.0
    %3294 = vmatprep.subr.mxu0 0.0
    %3295 = vmatpush2.xpose.msra.mxu0 0.0
    %3296 = vmatprep.subr.mxu0 0.0
    %3297 = vmatpush2.xpose.msra.mxu0 0.0
    %3298 = vmatprep.subr.mxu0 0.0
    %3299 = vmatpush2.xpose.msra.mxu0 0.0
    %3300 = vmatprep.subr.mxu0 0.0
    %3301 = vmatpush2.xpose.msra.mxu0 0.0
    %3302 = vmatprep.subr.mxu0 0.0
    %3303 = vmatpush2.xpose.msra.mxu0 0.0
    %3304 = vmatprep.subr.mxu0 0.0
    %3305 = vmatpush2.xpose.msra.mxu0 0.0
    %3306 = vmatprep.subr.mxu0 0.0
    %3307 = vmatpush2.xpose.msra.mxu0 0.0
    %3308 = vmatprep.subr.mxu0 0.0
    %3309 = vmatpush2.xpose.msra.mxu0 0.0
    %3310 = vmatprep.subr.mxu0 0.0
    %3311 = vmatpush2.xpose.msra.mxu0 0.0
    %3312 = vmatprep.subr.mxu0 0.0
    %3313 = vmatpush2.xpose.msra.mxu0 0.0
    %3314 = vmatprep.subr.mxu0 0.0
    %3315 = vmatpush2.xpose.msra.mxu0 0.0
    %3316 = vmatprep.mubr.f32.mxu0 0.0
    %3317 = vmatmul.mubr.f32.gmra.mxu0 %v3248
    %v3318 = vpop.f32.mrf.mxu0
    %v3319 = vadd.f32 %v93, %v3318
    %v3320 = vpop.f32.mrf.mxu0
    %3321 = vdwg.mxu0
    %3322 = vrot.lane.b32.xlu0 %v2004, 104
    %v3323 = vpop.permute.xlu0 %3322
    %3324 = vrot.lane.b32.xlu0 %v2004, 72
    %v3325 = vpop.permute.xlu0 %3324
    %v3326 = vsel %vm228, %v3323, 0
    %v3328 = vsel %vm228, %v3325, 0
    %3330 = vmatprep.subr.mxu0 0.0
    %3331 = vmatpush1.xpose.msra.mxu0 0.0
    %3332 = vmatprep.subr.mxu0 0.0
    %3333 = vmatpush1.xpose.msra.mxu0 0.0
    %3334 = vmatprep.subr.mxu0 0.0
    %3335 = vmatpush1.xpose.msra.mxu0 0.0
    %3336 = vmatprep.subr.mxu0 0.0
    %3337 = vmatpush1.xpose.msra.mxu0 0.0
    %3338 = vmatprep.subr.mxu0 0.0
    %3339 = vmatpush1.xpose.msra.mxu0 0.0
    %3340 = vmatprep.subr.mxu0 0.0
    %3341 = vmatpush1.xpose.msra.mxu0 0.0
    %3342 = vmatprep.subr.mxu0 0.0
    %3343 = vmatpush1.xpose.msra.mxu0 0.0
    %3344 = vmatprep.subr.mxu0 0.0
    %3345 = vmatpush1.xpose.msra.mxu0 0.0
    %3346 = vmatprep.subr.mxu0 0.0
    %3347 = vmatpush1.xpose.msra.mxu0 0.0
    %3348 = vmatprep.subr.mxu0 0.0
    %3349 = vmatpush1.xpose.msra.mxu0 0.0
    %3350 = vmatprep.subr.mxu0 0.0
    %3351 = vmatpush1.xpose.msra.mxu0 0.0
    %3352 = vmatprep.subr.mxu0 0.0
    %3353 = vmatpush1.xpose.msra.mxu0 0.0
    %3354 = vmatprep.subr.mxu0 0.0
    %3355 = vmatpush1.xpose.msra.mxu0 0.0
    %3356 = vmatprep.subr.mxu0 0.0
    %3357 = vmatpush1.xpose.msra.mxu0 0.0
    %3358 = vmatprep.subr.mxu0 0.0
    %3359 = vmatpush1.xpose.msra.mxu0 0.0
    %3360 = vmatprep.subr.mxu0 0.0
    %3361 = vmatpush1.xpose.msra.mxu0 %v3328
    %3362 = vmatprep.subr.mxu0 0.0
    %3363 = vmatpush2.xpose.msra.mxu0 0.0
    %3364 = vmatprep.subr.mxu0 0.0
    %3365 = vmatpush2.xpose.msra.mxu0 0.0
    %3366 = vmatprep.subr.mxu0 0.0
    %3367 = vmatpush2.xpose.msra.mxu0 0.0
    %3368 = vmatprep.subr.mxu0 0.0
    %3369 = vmatpush2.xpose.msra.mxu0 0.0
    %3370 = vmatprep.subr.mxu0 0.0
    %3371 = vmatpush2.xpose.msra.mxu0 0.0
    %3372 = vmatprep.subr.mxu0 0.0
    %3373 = vmatpush2.xpose.msra.mxu0 0.0
    %3374 = vmatprep.subr.mxu0 0.0
    %3375 = vmatpush2.xpose.msra.mxu0 0.0
    %3376 = vmatprep.subr.mxu0 0.0
    %3377 = vmatpush2.xpose.msra.mxu0 0.0
    %3378 = vmatprep.subr.mxu0 0.0
    %3379 = vmatpush2.xpose.msra.mxu0 0.0
    %3380 = vmatprep.subr.mxu0 0.0
    %3381 = vmatpush2.xpose.msra.mxu0 0.0
    %3382 = vmatprep.subr.mxu0 0.0
    %3383 = vmatpush2.xpose.msra.mxu0 0.0
    %3384 = vmatprep.subr.mxu0 0.0
    %3385 = vmatpush2.xpose.msra.mxu0 0.0
    %3386 = vmatprep.subr.mxu0 0.0
    %3387 = vmatpush2.xpose.msra.mxu0 0.0
    %3388 = vmatprep.subr.mxu0 0.0
    %3389 = vmatpush2.xpose.msra.mxu0 0.0
    %3390 = vmatprep.subr.mxu0 0.0
    %3391 = vmatpush2.xpose.msra.mxu0 0.0
    %3392 = vmatprep.subr.mxu0 0.0
    %3393 = vmatpush2.xpose.msra.mxu0 0.0
    %3394 = vmatprep.mubr.f32.mxu0 0.0
    %3395 = vmatmul.mubr.f32.gmra.mxu0 %v3326
    %v3396 = vpop.f32.mrf.mxu0
    %v3397 = vadd.f32 %v93, %v3396
    %v3398 = vpop.f32.mrf.mxu0
    %3399 = vdwg.mxu0
    %v3400 = vsel %vm228, %v3319, -inf
    %3401 = vmax.xlane.f32.xlu0 %v3400
    %v3402 = vpop.xlane.xlu0 %3401
    %v3403 = vsel %vm228, %v3397, -inf
    %3404 = vmax.xlane.f32.xlu0 %v3403
    %v3405 = vpop.xlane.xlu0 %3404
    %v3406 = vsub.f32 %v3319, %v3402
    %v3407 = vsub.f32 %v3397, %v3405
    %v3408 = vmul.f32 %v3406, 1.442695
    %v3409 = vpow.pop %v3408
    %v3410 = vmul.f32 %v3407, 1.442695
    %v3411 = vpow.pop %v3410
    %v3412 = vsel %vm228, %v3409, 0.0
    %3413 = vadd.xlane.f32.xlu0 %v3412
    %v3414 = vpop.xlane.xlu0 %3413
    %v3415 = vsel %vm228, %v3411, 0.0
    %3416 = vadd.xlane.f32.xlu0 %v3415
    %v3417 = vpop.xlane.xlu0 %3416
    %v3418 = vrcp.pop %v3414
    %v3419 = vrcp.pop %v3417
    %v3420 = vmul.f32 %v3409, %v3418
    %v3421 = vmul.f32 %v3411, %v3419
    %3422 = vrot.lane.b32.xlu0 %v1999, 40
    %v3423 = vpop.permute.xlu0 %3422
    %v3426 = vsel %vm228, %v3420, 0
    %3428 = vmatprep.subr.mxu0 0.0
    %3429 = vmatpush1.msra.mxu0 0.0
    %3430 = vmatprep.subr.mxu0 0.0
    %3431 = vmatpush1.msra.mxu0 0.0
    %3432 = vmatprep.subr.mxu0 0.0
    %3433 = vmatpush1.msra.mxu0 0.0
    %3434 = vmatprep.subr.mxu0 0.0
    %3435 = vmatpush1.msra.mxu0 0.0
    %3436 = vmatprep.subr.mxu0 0.0
    %3437 = vmatpush1.msra.mxu0 0.0
    %3438 = vmatprep.subr.mxu0 0.0
    %3439 = vmatpush1.msra.mxu0 0.0
    %3440 = vmatprep.subr.mxu0 0.0
    %3441 = vmatpush1.msra.mxu0 0.0
    %3442 = vmatprep.subr.mxu0 0.0
    %3443 = vmatpush1.msra.mxu0 0.0
    %3444 = vmatprep.subr.mxu0 0.0
    %3445 = vmatpush1.msra.mxu0 0.0
    %3446 = vmatprep.subr.mxu0 0.0
    %3447 = vmatpush1.msra.mxu0 0.0
    %3448 = vmatprep.subr.mxu0 0.0
    %3449 = vmatpush1.msra.mxu0 0.0
    %3450 = vmatprep.subr.mxu0 0.0
    %3451 = vmatpush1.msra.mxu0 0.0
    %3452 = vmatprep.subr.mxu0 0.0
    %3453 = vmatpush1.msra.mxu0 0.0
    %3454 = vmatprep.subr.mxu0 0.0
    %3455 = vmatpush1.msra.mxu0 0.0
    %3456 = vmatprep.subr.mxu0 0.0
    %3457 = vmatpush1.msra.mxu0 0.0
    %3458 = vmatprep.subr.mxu0 0.0
    %3459 = vmatpush1.msra.mxu0 %v3423
    %3460 = vmatprep.subr.mxu0 0.0
    %3461 = vmatpush2.msra.mxu0 0.0
    %3462 = vmatprep.subr.mxu0 0.0
    %3463 = vmatpush2.msra.mxu0 0.0
    %3464 = vmatprep.subr.mxu0 0.0
    %3465 = vmatpush2.msra.mxu0 0.0
    %3466 = vmatprep.subr.mxu0 0.0
    %3467 = vmatpush2.msra.mxu0 0.0
    %3468 = vmatprep.subr.mxu0 0.0
    %3469 = vmatpush2.msra.mxu0 0.0
    %3470 = vmatprep.subr.mxu0 0.0
    %3471 = vmatpush2.msra.mxu0 0.0
    %3472 = vmatprep.subr.mxu0 0.0
    %3473 = vmatpush2.msra.mxu0 0.0
    %3474 = vmatprep.subr.mxu0 0.0
    %3475 = vmatpush2.msra.mxu0 0.0
    %3476 = vmatprep.subr.mxu0 0.0
    %3477 = vmatpush2.msra.mxu0 0.0
    %3478 = vmatprep.subr.mxu0 0.0
    %3479 = vmatpush2.msra.mxu0 0.0
    %3480 = vmatprep.subr.mxu0 0.0
    %3481 = vmatpush2.msra.mxu0 0.0
    %3482 = vmatprep.subr.mxu0 0.0
    %3483 = vmatpush2.msra.mxu0 0.0
    %3484 = vmatprep.subr.mxu0 0.0
    %3485 = vmatpush2.msra.mxu0 0.0
    %3486 = vmatprep.subr.mxu0 0.0
    %3487 = vmatpush2.msra.mxu0 0.0
    %3488 = vmatprep.subr.mxu0 0.0
    %3489 = vmatpush2.msra.mxu0 0.0
    %3490 = vmatprep.subr.mxu0 0.0
    %3491 = vmatpush2.msra.mxu0 0.0
    %3492 = vmatprep.mubr.f32.mxu0 0.0
    %3493 = vmatmul.mubr.f32.gmra.mxu0 %v3426
    %v3494 = vpop.f32.mrf.mxu0
    %v3495 = vadd.f32 0.0, %v3494
    %v3496 = vpop.f32.mrf.mxu0
    %3497 = vdwg.mxu0
    %3498 = vrot.lane.b32.xlu0 %v2004, 40
    %v3499 = vpop.permute.xlu0 %3498
    %v3502 = vsel %vm228, %v3421, 0
    %3504 = vmatprep.subr.mxu0 0.0
    %3505 = vmatpush1.msra.mxu0 0.0
    %3506 = vmatprep.subr.mxu0 0.0
    %3507 = vmatpush1.msra.mxu0 0.0
    %3508 = vmatprep.subr.mxu0 0.0
    %3509 = vmatpush1.msra.mxu0 0.0
    %3510 = vmatprep.subr.mxu0 0.0
    %3511 = vmatpush1.msra.mxu0 0.0
    %3512 = vmatprep.subr.mxu0 0.0
    %3513 = vmatpush1.msra.mxu0 0.0
    %3514 = vmatprep.subr.mxu0 0.0
    %3515 = vmatpush1.msra.mxu0 0.0
    %3516 = vmatprep.subr.mxu0 0.0
    %3517 = vmatpush1.msra.mxu0 0.0
    %3518 = vmatprep.subr.mxu0 0.0
    %3519 = vmatpush1.msra.mxu0 0.0
    %3520 = vmatprep.subr.mxu0 0.0
    %3521 = vmatpush1.msra.mxu0 0.0
    %3522 = vmatprep.subr.mxu0 0.0
    %3523 = vmatpush1.msra.mxu0 0.0
    %3524 = vmatprep.subr.mxu0 0.0
    %3525 = vmatpush1.msra.mxu0 0.0
    %3526 = vmatprep.subr.mxu0 0.0
    %3527 = vmatpush1.msra.mxu0 0.0
    %3528 = vmatprep.subr.mxu0 0.0
    %3529 = vmatpush1.msra.mxu0 0.0
    %3530 = vmatprep.subr.mxu0 0.0
    %3531 = vmatpush1.msra.mxu0 0.0
    %3532 = vmatprep.subr.mxu0 0.0
    %3533 = vmatpush1.msra.mxu0 0.0
    %3534 = vmatprep.subr.mxu0 0.0
    %3535 = vmatpush1.msra.mxu0 %v3499
    %3536 = vmatprep.subr.mxu0 0.0
    %3537 = vmatpush2.msra.mxu0 0.0
    %3538 = vmatprep.subr.mxu0 0.0
    %3539 = vmatpush2.msra.mxu0 0.0
    %3540 = vmatprep.subr.mxu0 0.0
    %3541 = vmatpush2.msra.mxu0 0.0
    %3542 = vmatprep.subr.mxu0 0.0
    %3543 = vmatpush2.msra.mxu0 0.0
    %3544 = vmatprep.subr.mxu0 0.0
    %3545 = vmatpush2.msra.mxu0 0.0
    %3546 = vmatprep.subr.mxu0 0.0
    %3547 = vmatpush2.msra.mxu0 0.0
    %3548 = vmatprep.subr.mxu0 0.0
    %3549 = vmatpush2.msra.mxu0 0.0
    %3550 = vmatprep.subr.mxu0 0.0
    %3551 = vmatpush2.msra.mxu0 0.0
    %3552 = vmatprep.subr.mxu0 0.0
    %3553 = vmatpush2.msra.mxu0 0.0
    %3554 = vmatprep.subr.mxu0 0.0
    %3555 = vmatpush2.msra.mxu0 0.0
    %3556 = vmatprep.subr.mxu0 0.0
    %3557 = vmatpush2.msra.mxu0 0.0
    %3558 = vmatprep.subr.mxu0 0.0
    %3559 = vmatpush2.msra.mxu0 0.0
    %3560 = vmatprep.subr.mxu0 0.0
    %3561 = vmatpush2.msra.mxu0 0.0
    %3562 = vmatprep.subr.mxu0 0.0
    %3563 = vmatpush2.msra.mxu0 0.0
    %3564 = vmatprep.subr.mxu0 0.0
    %3565 = vmatpush2.msra.mxu0 0.0
    %3566 = vmatprep.subr.mxu0 0.0
    %3567 = vmatpush2.msra.mxu0 0.0
    %3568 = vmatprep.mubr.f32.mxu0 0.0
    %3569 = vmatmul.mubr.f32.gmra.mxu0 %v3502
    %v3570 = vpop.f32.mrf.mxu0
    %v3571 = vadd.f32 0.0, %v3570
    %v3572 = vpop.f32.mrf.mxu0
    %3573 = vdwg.mxu0
    %v3575 = vsel %vm228, %v3495, 0
    %v3578 = vsel %vm228, %v3571, 0
    %3580 = vmatprep.subr.mxu0 0.0
    %3581 = vmatpush1.msra.mxu0 0.0
    %3582 = vmatprep.subr.mxu0 0.0
    %3583 = vmatpush1.msra.mxu0 0.0
    %3584 = vmatprep.subr.mxu0 0.0
    %3585 = vmatpush1.msra.mxu0 0.0
    %3586 = vmatprep.subr.mxu0 0.0
    %3587 = vmatpush1.msra.mxu0 0.0
    %3588 = vmatprep.subr.mxu0 0.0
    %3589 = vmatpush1.msra.mxu0 0.0
    %3590 = vmatprep.subr.mxu0 0.0
    %3591 = vmatpush1.msra.mxu0 0.0
    %3592 = vmatprep.subr.mxu0 0.0
    %3593 = vmatpush1.msra.mxu0 0.0
    %3594 = vmatprep.subr.mxu0 0.0
    %3595 = vmatpush1.msra.mxu0 0.0
    %3596 = vmatprep.subr.mxu0 0.0
    %3597 = vmatpush1.msra.mxu0 0.0
    %3598 = vmatprep.subr.mxu0 0.0
    %3599 = vmatpush1.msra.mxu0 0.0
    %3600 = vmatprep.subr.mxu0 0.0
    %3601 = vmatpush1.msra.mxu0 0.0
    %3602 = vmatprep.subr.mxu0 0.0
    %3603 = vmatpush1.msra.mxu0 0.0
    %3604 = vmatprep.subr.mxu0 0.0
    %3605 = vmatpush1.msra.mxu0 0.0
    %3606 = vmatprep.subr.mxu0 0.0
    %3607 = vmatpush1.msra.mxu0 0.0
    %3608 = vmatprep.subr.mxu0 0.0
    %3609 = vmatpush1.msra.mxu0 0.0
    %3610 = vmatprep.subr.mxu0 0.0
    %3611 = vmatpush1.msra.mxu0 %v80
    %3612 = vmatprep.subr.mxu0 0.0
    %3613 = vmatpush2.msra.mxu0 0.0
    %3614 = vmatprep.subr.mxu0 0.0
    %3615 = vmatpush2.msra.mxu0 0.0
    %3616 = vmatprep.subr.mxu0 0.0
    %3617 = vmatpush2.msra.mxu0 0.0
    %3618 = vmatprep.subr.mxu0 0.0
    %3619 = vmatpush2.msra.mxu0 0.0
    %3620 = vmatprep.subr.mxu0 0.0
    %3621 = vmatpush2.msra.mxu0 0.0
    %3622 = vmatprep.subr.mxu0 0.0
    %3623 = vmatpush2.msra.mxu0 0.0
    %3624 = vmatprep.subr.mxu0 0.0
    %3625 = vmatpush2.msra.mxu0 0.0
    %3626 = vmatprep.subr.mxu0 0.0
    %3627 = vmatpush2.msra.mxu0 0.0
    %3628 = vmatprep.subr.mxu0 0.0
    %3629 = vmatpush2.msra.mxu0 0.0
    %3630 = vmatprep.subr.mxu0 0.0
    %3631 = vmatpush2.msra.mxu0 0.0
    %3632 = vmatprep.subr.mxu0 0.0
    %3633 = vmatpush2.msra.mxu0 0.0
    %3634 = vmatprep.subr.mxu0 0.0
    %3635 = vmatpush2.msra.mxu0 0.0
    %3636 = vmatprep.subr.mxu0 0.0
    %3637 = vmatpush2.msra.mxu0 0.0
    %3638 = vmatprep.subr.mxu0 0.0
    %3639 = vmatpush2.msra.mxu0 0.0
    %3640 = vmatprep.subr.mxu0 0.0
    %3641 = vmatpush2.msra.mxu0 0.0
    %3642 = vmatprep.subr.mxu0 0.0
    %3643 = vmatpush2.msra.mxu0 0.0
    %3644 = vmatprep.mubr.f32.mxu0 0.0
    %3645 = vmatmul.mubr.f32.gmra.mxu0 %v3575
    %v3646 = vpop.f32.mrf.mxu0
    %v3647 = vadd.f32 0.0, %v3646
    %v3648 = vpop.f32.mrf.mxu0
    %3649 = vmatprep.mubr.f32.mxu0 0.0
    %3650 = vmatmul.mubr.f32.gmra.mxu0 %v3578
    %v3651 = vpop.f32.mrf.mxu0
    %v3652 = vadd.f32 0.0, %v3651
    %v3653 = vpop.f32.mrf.mxu0
    %3654 = vdwg.mxu0
    %v3655 = vadd.f32 %v3242, %v3647
    %v3656 = vadd.f32 %v3243, %v3652
    %v3657 = vadd.f32 %v3655, %v1876
    %v3658 = vadd.f32 %v3656, %v1877
    %3659 = vst.msk [vmem:[#allocation8] sm:$0xff] %vm96, %v3657
    %3660 = vst.msk [vmem:[#allocation8 + $0x8] sm:$0xff] %vm96, %v3658
    // Predicated region
    $region46: #{tpu_custom_call.1} parent=1 // pred_check
      _
    $region47: #{tpu_custom_call.1} parent=1 // pred_check_branch
      %3662 = sbr.rel (0) target = $region49
    $region48: #{tpu_custom_call.1} parent=1 // pred_region
      %s3664 = ssub.s32 256, 256
      %3665 = vsyncadd [#allocation4], %s3664
      %s3666 = sshll.u32 [#allocation8], 4
      %s3667 = int_to_ptr.vmem [resolvable:$true] %s3666
      %3672 = dma.vmem_to_hbm [thread:$0]  %s3667, 256, %s8, [#allocation4], 128, 128, 8
    $region49: #{tpu_custom_call.1} parent=1 // pred_fallthru
      _
    // Predicated region
    $region50: #{tpu_custom_call.1} parent=1 // pred_check
      _
    $region51: #{tpu_custom_call.1} parent=1 // pred_check_branch
      %3674 = sbr.rel (0) target = $region53
    $region52: #{tpu_custom_call.1} parent=1 // pred_region
      %3675 = dma.done [#allocation4], 256
    $region53: #{tpu_custom_call.1} parent=1 // pred_fallthru
      _
    %3676 = vsyncpa [#allocation3], 1
    %3677 = vsyncpa [#allocation6], 1
    %3678 = vsyncpa [#allocation4], 1

</llo_original>
